<compile_context>
chip_gen: v5e
topology: v5e:2x2
jax: 0.10.0
libtpu: 0.0.40
codegen_flags: <defaults>
</compile_context>

<pallas_src>
import jax
import jax.numpy as jnp
from jax.experimental import pallas as pl
from jax.experimental.pallas import tpu as pltpu

_BN_EPS = 1e-5
_VMEM_LIMIT = 32 * 1024 * 1024  # safe on v5e/v6e (128 MiB) and v7x (64 MiB)


# ----------------------------------------------------------------------------
# index-map helpers (index_maps receive scalar-prefetch refs as trailing args)
# ----------------------------------------------------------------------------
def _const_index_map(ndim):
    def im(*_):
        return (0,) * ndim
    return im


def _batch_index_map(ndim):
    def im(b, *_):
        return (b,) + (0,) * (ndim - 1)
    return im


# ----------------------------------------------------------------------------
# Fused forward kernel
# ----------------------------------------------------------------------------
def _make_fused_kernel(*, b_blk, h, w, n_nodes):
    h2, w2 = h // 2, w // 2
    h3, w3 = h2 // 2, w2 // 2
    p1, p3 = h * w, h3 * w3

    def dag_stage(x, stage_idx, wdag_ref, wcat_ref,
                  pre_w_ref, pre_ss_ref, node_w_ref, node_ss_ref):
        """One SearchBigDAG_CS stage on flattened rows (rows, c_in)."""
        c_dag = node_w_ref.shape[-1]
        # Hoist all SMEM scalar reads into locals once (flat f32 arrays).
        base = stage_idx * n_nodes * (n_nodes + 1)
        wd = [[wdag_ref[base + i * (n_nodes + 1) + k] for k in range(i + 2)]
              for i in range(n_nodes)]
        wc = [wcat_ref[stage_idx * n_nodes + i] for i in range(n_nodes)]

        # preprocess: relu -> 1x1 conv (pre0|pre1 batched in one matmul) -> BN
        pre_ss = pre_ss_ref[...]
        pre = (jnp.dot(jnp.maximum(x, 0.0).astype(jnp.bfloat16), pre_w_ref[...],
                       preferred_element_type=jnp.float32)
               * pre_ss[0:1, :] + pre_ss[1:2, :])
        states = [pre[:, :c_dag], pre[:, c_dag:]]

        # big-DAG nodes: weighted edge mix fused with relu->1x1conv->BN.
        nodes = []
        for i in range(n_nodes):
            mixed = wd[i][0] * states[0]
            for k in range(1, i + 2):
                mixed = mixed + wd[i][k] * states[k]
            ss_i = node_ss_ref[i]                                  # (2, c_dag)
            node = (jnp.dot(jnp.maximum(mixed, 0.0).astype(jnp.bfloat16),
                            node_w_ref[i], preferred_element_type=jnp.float32)
                    * ss_i[0:1, :] + ss_i[1:2, :])
            states.append(node)
            nodes.append(node)

        # concat-weight aggregation + concat with last node -> 2*c_dag channels
        agg = wc[0] * nodes[0]
        for i in range(1, n_nodes):
            agg = agg + wc[i] * nodes[i]
        return jnp.concatenate([agg, nodes[-1]], axis=-1)

    def reduce_cell(feat, hh, ww, ra_ref, rb_ref, red_w_ref, red_ss_ref):
        """stride-2 even-row/col subsample (no matmul) + relu->1x1conv->BN."""
        cc = feat.shape[-1]
        # even rows: group y into (y//2, y%2) on a leading scratch dim and
        # pick plane 0 with a static integer index (no stride needed).
        ra_ref[...] = feat.reshape(b_blk * hh // 2, 2, ww, cc)
        even_rows = ra_ref[:, 0, :, :]                    # (b*hh/2, ww, cc)
        # even cols: flatten rows; row parity == x parity (ww even), so a
        # sublane-strided read with stride 2 picks even x.
        rb_ref[...] = even_rows.reshape(b_blk * (hh // 2) * ww, cc)
        n_half = b_blk * (hh // 2) * (ww // 2)
        sub = rb_ref[pl.ds(0, n_half, 2), :]              # (b*hh/2*ww/2, cc)
        ss = red_ss_ref[...]
        return (jnp.dot(jnp.maximum(sub, 0.0).astype(jnp.bfloat16),
                        red_w_ref[...], preferred_element_type=jnp.float32)
                * ss[0:1, :] + ss[1:2, :])

    def kernel(wdag_ref, wcat_ref,                        # scalar prefetch SMEM
               x_ref,                                     # (b_blk, h*w, 9*Cin) bf16
               stem_w_ref, stem_ss_ref,
               d1_pre_w, d1_pre_ss, d1_node_w, d1_node_ss,
               r1_w, r1_ss,
               d2_pre_w, d2_pre_ss, d2_node_w, d2_node_ss,
               r2_w, r2_ss,
               d3_pre_w, d3_pre_ss, d3_node_w, d3_node_ss,
               lin_w_ref, lin_b_ref,
               o_ref,
               ra1, rb1, ra2, rb2):
        kin = x_ref.shape[-1]

        # --- stem: single K=9*C_in matmul (im2col done once in the wrapper) --
        x = x_ref[...].reshape(b_blk * p1, kin)           # bf16
        stem_ss = stem_ss_ref[...]
        s = (jnp.dot(x, stem_w_ref[...], preferred_element_type=jnp.float32)
             * stem_ss[0:1, :] + stem_ss[1:2, :])         # (b*p1, c_stem)

        # --- bigDAG1 ---------------------------------------------------------
        s = dag_stage(s, 0, wdag_ref, wcat_ref,
                      d1_pre_w, d1_pre_ss, d1_node_w, d1_node_ss)

        # --- reduction cell 1 + bigDAG2 --------------------------------------
        s = reduce_cell(s, h, w, ra1, rb1, r1_w, r1_ss)
        s = dag_stage(s, 1, wdag_ref, wcat_ref,
                      d2_pre_w, d2_pre_ss, d2_node_w, d2_node_ss)

        # --- reduction cell 2 + bigDAG3 --------------------------------------
        s = reduce_cell(s, h2, w2, ra2, rb2, r2_w, r2_ss)
        s = dag_stage(s, 2, wdag_ref, wcat_ref,
                      d3_pre_w, d3_pre_ss, d3_node_w, d3_node_ss)

        # --- global average pool + linear head -------------------------------
        c_feat = s.shape[-1]
        pooled = jnp.mean(s.reshape(b_blk, p3, c_feat), axis=1)   # (b_blk, 32C)
        logits = (jnp.dot(pooled.astype(jnp.bfloat16), lin_w_ref[...],
                          preferred_element_type=jnp.float32) + lin_b_ref[...])
        o_ref[...] = logits.reshape(1, b_blk, logits.shape[-1])

    return kernel


# ----------------------------------------------------------------------------
# Wrapper
# ----------------------------------------------------------------------------
def _im2col_3x3(x_nhwc):
    """(N,H,W,Cin) -> (N, H*W, 9*Cin) patches for a 3x3 / stride 1 / pad 1 conv."""
    n, h, w, c = x_nhwc.shape
    xp = jnp.pad(x_nhwc, ((0, 0), (1, 1), (1, 1), (0, 0)))
    taps = [xp[:, dy:dy + h, dx:dx + w, :] for dy in range(3) for dx in range(3)]
    return jnp.concatenate(taps, axis=-1).reshape(n, h * w, 9 * c)


def _pick_batch_block(n):
    """Batch elements per grid step; keep >= 2 steps so both v7x TCs get work."""
    for b in (8, 4, 2):
        if n % b == 0 and n // b >= 2:
            return b
    return 1


def run_fused_forward(patches, wdag_flat, wcat_flat, params, n_nodes, h, w):
    n = patches.shape[0]
    b_blk = _pick_batch_block(n)
    grid = (n // b_blk,)

    d1, d2, d3 = params["dag1"], params["dag2"], params["dag3"]
    c_in9 = patches.shape[-1]
    c_stem = params["stem_w"].shape[-1]
    c_dag1 = d1["node_w"].shape[-1]
    c_dag2 = d2["node_w"].shape[-1]
    c_dag3 = d3["node_w"].shape[-1]
    n_classes = d3["lin_w"].shape[-1]
    h2, w2, h3, w3 = h // 2, w // 2, h // 4, w // 4
    p1, p2, p3 = h * w, h2 * w2, h3 * w3

    kernel = _make_fused_kernel(b_blk=b_blk, h=h, w=w, n_nodes=n_nodes)

    tensors = [patches,
               params["stem_w"], params["stem_ss"],
               d1["pre_w"], d1["pre_ss"], d1["node_w"], d1["node_ss"],
               d2["red_w"], d2["red_ss"],
               d2["pre_w"], d2["pre_ss"], d2["node_w"], d2["node_ss"],
               d3["red_w"], d3["red_ss"],
               d3["pre_w"], d3["pre_ss"], d3["node_w"], d3["node_ss"],
               d3["lin_w"], d3["lin_b"]]
    in_specs = [pl.BlockSpec((b_blk, h * w, c_in9), _batch_index_map(3))]
    in_specs += [pl.BlockSpec(t.shape, _const_index_map(t.ndim))
                 for t in tensors[1:]]

    # per-batch-block output (parallel across TensorCores); 3-D layout keeps
    # the block's trailing dims equal to the full array dims.
    out_shape = jax.ShapeDtypeStruct((n // b_blk, b_blk, n_classes), jnp.float32)
    out_spec = pl.BlockSpec((1, b_blk, n_classes), _batch_index_map(3))

    scratch = [
        pltpu.VMEM((b_blk * h // 2, 2, w, 2 * c_dag1), jnp.float32),
        pltpu.VMEM((b_blk * (h // 2) * w, 2 * c_dag1), jnp.float32),
        pltpu.VMEM((b_blk * h2 // 2, 2, w2, 2 * c_dag2), jnp.float32),
        pltpu.VMEM((b_blk * (h2 // 2) * w2, 2 * c_dag2), jnp.float32),
    ]

    flops_per_ex = (
        2 * p1 * c_in9 * c_stem
        + 2 * p1 * c_stem * 2 * c_dag1 + n_nodes * 2 * p1 * c_dag1 * c_dag1
        + 2 * p2 * (2 * c_dag1) * (2 * c_dag1)
        + 2 * p2 * (2 * c_dag1) * 2 * c_dag2 + n_nodes * 2 * p2 * c_dag2 * c_dag2
        + 2 * p3 * (2 * c_dag2) * (2 * c_dag2)
        + 2 * p3 * (2 * c_dag2) * 2 * c_dag3 + n_nodes * 2 * p3 * c_dag3 * c_dag3
        + 2 * (2 * c_dag3) * n_classes)
    bytes_accessed = (sum(int(t.size) * t.dtype.itemsize for t in tensors)
                      + int(wdag_flat.size) * 4 + int(wcat_flat.size) * 4
                      + n * n_classes * 4)

    out = pl.pallas_call(
        kernel,
        out_shape=out_shape,
        grid_spec=pltpu.PrefetchScalarGridSpec(
            num_scalar_prefetch=2, grid=grid,
            in_specs=in_specs, out_specs=out_spec,
            scratch_shapes=scratch),
        compiler_params=pltpu.CompilerParams(
            dimension_semantics=("parallel",), vmem_limit_bytes=_VMEM_LIMIT),
        cost_estimate=pl.CostEstimate(flops=int(n * flops_per_ex),
                                      transcendentals=0,
                                      bytes_accessed=int(bytes_accessed)),
    )(wdag_flat, wcat_flat, *tensors)
    return out.reshape(n, n_classes)


# ----------------------------------------------------------------------------
# Forward pass
# ----------------------------------------------------------------------------
def search_distribution_dag_forward(x_nchw, weights_DAG, weights_concat, params,
                                     n_big_nodes):
    n_nodes = n_big_nodes
    x = jnp.transpose(x_nchw, (0, 2, 3, 1)).astype(jnp.float32)   # NCHW -> NHWC
    h, w = x.shape[1], x.shape[2]
    patches = _im2col_3x3(x).astype(jnp.bfloat16)                 # bf16 HBM bytes

    # pack ragged per-node edge weights into a flat padded f32 array (SMEM)
    wdag = jnp.zeros((3, n_nodes, n_nodes + 1), jnp.float32)
    for s in range(3):
        for i in range(n_nodes):
            wvec = weights_DAG[s * n_nodes + i].astype(jnp.float32)
            wdag = wdag.at[s, i, :i + 2].set(wvec)
    wdag_flat = wdag.reshape(-1)
    wcat_flat = jnp.asarray(weights_concat, jnp.float32).reshape(-1)

    return run_fused_forward(patches, wdag_flat, wcat_flat, params, n_nodes, h, w)


# ----------------------------------------------------------------------------
# Deterministic parameter initialization
# ----------------------------------------------------------------------------
def _bn_fold(c):
    # gamma=1, beta=0, running_mean=0, running_var=1 folded into scale/shift.
    scale = jnp.full((1, c), (1.0 + _BN_EPS) ** -0.5, jnp.float32)
    shift = jnp.zeros((1, c), jnp.float32)
    return jnp.concatenate([scale, shift], axis=0)                # (2, c)


def _conv_w(key, cin, cout):
    w = jax.random.normal(key, (cin, cout), jnp.float32) * (1.0 / (cin ** 0.5))
    return w.astype(jnp.bfloat16)


def _init_dag(key, c_in, c_dag, n_nodes):
    keys = jax.random.split(key, 2 + n_nodes)
    pre_w = jnp.concatenate(
        [_conv_w(keys[0], c_in, c_dag), _conv_w(keys[1], c_in, c_dag)], axis=1)
    pre_ss = jnp.concatenate([_bn_fold(c_dag), _bn_fold(c_dag)], axis=1)
    node_w = jnp.stack([_conv_w(keys[2 + i], c_dag, c_dag)
                        for i in range(n_nodes)], axis=0)
    node_ss = jnp.stack([_bn_fold(c_dag) for _ in range(n_nodes)], axis=0)
    return {"pre_w": pre_w, "pre_ss": pre_ss,
            "node_w": node_w, "node_ss": node_ss}


def init_params(key, C_in, C, n_classes, n_big_nodes, stem_multiplier):
    ks = jax.random.split(key, 8)
    c_stem = stem_multiplier * C
    stem_w = (jax.random.normal(ks[0], (3, 3, C_in, c_stem), jnp.float32)
              * (1.0 / ((9.0 * C_in) ** 0.5)))
    stem_w = stem_w.reshape(9 * C_in, c_stem).astype(jnp.bfloat16)
    params = {
        "stem_w": stem_w,
        "stem_ss": _bn_fold(c_stem),
        # bigDAG1: inputs = stem (3C), internal width 4*C, output 8*C
        "dag1": _init_dag(ks[1], c_stem, 4 * C, n_big_nodes),
        # reduction cell 1 (8C -> 8C, /2) fused into dag2; bigDAG2: 8C -> 16C
        "dag2": dict(_init_dag(ks[3], 8 * C, 8 * C, n_big_nodes),
                     red_w=_conv_w(ks[2], 8 * C, 8 * C), red_ss=_bn_fold(8 * C)),
        # reduction cell 2 (16C -> 16C, /2) fused into dag3; bigDAG3: 16C -> 32C
        "dag3": dict(_init_dag(ks[5], 16 * C, 16 * C, n_big_nodes),
                     red_w=_conv_w(ks[4], 16 * C, 16 * C), red_ss=_bn_fold(16 * C),
                     lin_w=_conv_w(ks[6], 32 * C, n_classes),
                     lin_b=jnp.zeros((1, n_classes), jnp.float32)),
    }
    return params


# ----------------------------------------------------------------------------
if __name__ == "__main__":
    C_in, C, n_classes = 4, 4, 10
    n_layers, n_big_nodes, stem_multiplier = 6, 2, 3
    N, H, W = 2, 16, 16

    key = jax.random.PRNGKey(0)
    k_param, k_x, k_dag, k_cat = jax.random.split(key, 4)

    params = init_params(k_param, C_in, C, n_classes, n_big_nodes, stem_multiplier)
    x = jax.random.normal(k_x, (N, C_in, H, W), jnp.float32)  # NCHW, as in PyTorch

    # architecture weights: per big node i an edge-weight vector of length i+2,
    # three stages total; plus per-stage concat weights over the big nodes.
    weights_DAG = []
    for stage in range(3):
        for i in range(n_big_nodes):
            kk = jax.random.fold_in(k_dag, stage * 16 + i)
            weights_DAG.append(
                jax.nn.softmax(jax.random.normal(kk, (i + 2,), jnp.float32)))
    weights_concat = jax.nn.softmax(
        jax.random.normal(k_cat, (3, n_big_nodes), jnp.float32), axis=-1)

    fwd = jax.jit(search_distribution_dag_forward,
                  static_argnames=("n_big_nodes",))
    logits = fwd(x, weights_DAG, weights_concat, params,
                 n_big_nodes=n_big_nodes)
    jax.block_until_ready(logits)

    assert logits.shape == (N, n_classes), logits.shape
    assert bool(jnp.all(jnp.isfinite(logits)))
    print("KERNEL_OK")
</pallas_src>

<mosaic_0001>
module attributes {stable_mosaic.version = 11 : i64} {
  func.func @kernel(%arg0: i32, %arg1: memref<18xf32, #tpu.memory_space<smem>>, %arg2: memref<6xf32, #tpu.memory_space<smem>>, %arg3: memref<1x256x36xbf16, #tpu.memory_space<vmem>>, %arg4: memref<36x12xbf16, #tpu.memory_space<vmem>>, %arg5: memref<2x12xf32, #tpu.memory_space<vmem>>, %arg6: memref<12x32xbf16, #tpu.memory_space<vmem>>, %arg7: memref<2x32xf32, #tpu.memory_space<vmem>>, %arg8: memref<2x16x16xbf16, #tpu.memory_space<vmem>>, %arg9: memref<2x2x16xf32, #tpu.memory_space<vmem>>, %arg10: memref<32x32xbf16, #tpu.memory_space<vmem>>, %arg11: memref<2x32xf32, #tpu.memory_space<vmem>>, %arg12: memref<32x64xbf16, #tpu.memory_space<vmem>>, %arg13: memref<2x64xf32, #tpu.memory_space<vmem>>, %arg14: memref<2x32x32xbf16, #tpu.memory_space<vmem>>, %arg15: memref<2x2x32xf32, #tpu.memory_space<vmem>>, %arg16: memref<64x64xbf16, #tpu.memory_space<vmem>>, %arg17: memref<2x64xf32, #tpu.memory_space<vmem>>, %arg18: memref<64x128xbf16, #tpu.memory_space<vmem>>, %arg19: memref<2x128xf32, #tpu.memory_space<vmem>>, %arg20: memref<2x64x64xbf16, #tpu.memory_space<vmem>>, %arg21: memref<2x2x64xf32, #tpu.memory_space<vmem>>, %arg22: memref<128x10xbf16, #tpu.memory_space<vmem>>, %arg23: memref<1x10xf32, #tpu.memory_space<vmem>>, %arg24: memref<1x1x10xf32, #tpu.memory_space<vmem>>, %arg25: memref<8x2x16x32xf32, #tpu.memory_space<vmem>>, %arg26: memref<128x32xf32, #tpu.memory_space<vmem>>, %arg27: memref<4x2x8x64xf32, #tpu.memory_space<vmem>>, %arg28: memref<32x64xf32, #tpu.memory_space<vmem>>) attributes {dimension_semantics = [#tpu.dimension_semantics<parallel>], iteration_bounds = array<i64: 2>, scalar_prefetch = 2 : i64, scratch_operands = 4 : i64, tpu.core_type = #tpu.core_type<tc>, window_params = [{transform_indices = @transform_0, window_bounds = array<i64: 1, 256, 36>}, {pipeline_mode = #tpu.pipeline_mode<synchronous>, transform_indices = @transform_1, window_bounds = array<i64: 36, 12>}, {pipeline_mode = #tpu.pipeline_mode<synchronous>, transform_indices = @transform_2, window_bounds = array<i64: 2, 12>}, {pipeline_mode = #tpu.pipeline_mode<synchronous>, transform_indices = @transform_3, window_bounds = array<i64: 12, 32>}, {pipeline_mode = #tpu.pipeline_mode<synchronous>, transform_indices = @transform_4, window_bounds = array<i64: 2, 32>}, {pipeline_mode = #tpu.pipeline_mode<synchronous>, transform_indices = @transform_5, window_bounds = array<i64: 2, 16, 16>}, {pipeline_mode = #tpu.pipeline_mode<synchronous>, transform_indices = @transform_6, window_bounds = array<i64: 2, 2, 16>}, {pipeline_mode = #tpu.pipeline_mode<synchronous>, transform_indices = @transform_7, window_bounds = array<i64: 32, 32>}, {pipeline_mode = #tpu.pipeline_mode<synchronous>, transform_indices = @transform_8, window_bounds = array<i64: 2, 32>}, {pipeline_mode = #tpu.pipeline_mode<synchronous>, transform_indices = @transform_9, window_bounds = array<i64: 32, 64>}, {pipeline_mode = #tpu.pipeline_mode<synchronous>, transform_indices = @transform_10, window_bounds = array<i64: 2, 64>}, {pipeline_mode = #tpu.pipeline_mode<synchronous>, transform_indices = @transform_11, window_bounds = array<i64: 2, 32, 32>}, {pipeline_mode = #tpu.pipeline_mode<synchronous>, transform_indices = @transform_12, window_bounds = array<i64: 2, 2, 32>}, {pipeline_mode = #tpu.pipeline_mode<synchronous>, transform_indices = @transform_13, window_bounds = array<i64: 64, 64>}, {pipeline_mode = #tpu.pipeline_mode<synchronous>, transform_indices = @transform_14, window_bounds = array<i64: 2, 64>}, {pipeline_mode = #tpu.pipeline_mode<synchronous>, transform_indices = @transform_15, window_bounds = array<i64: 64, 128>}, {pipeline_mode = #tpu.pipeline_mode<synchronous>, transform_indices = @transform_16, window_bounds = array<i64: 2, 128>}, {pipeline_mode = #tpu.pipeline_mode<synchronous>, transform_indices = @transform_17, window_bounds = array<i64: 2, 64, 64>}, {pipeline_mode = #tpu.pipeline_mode<synchronous>, transform_indices = @transform_18, window_bounds = array<i64: 2, 2, 64>}, {pipeline_mode = #tpu.pipeline_mode<synchronous>, transform_indices = @transform_19, window_bounds = array<i64: 128, 10>}, {pipeline_mode = #tpu.pipeline_mode<synchronous>, transform_indices = @transform_20, window_bounds = array<i64: 1, 10>}, {transform_indices = @transform_21, window_bounds = array<i64: 1, 1, 10>}]} {
    %c0 = arith.constant 0 : index
    %c0_0 = arith.constant 0 : index
    %c0_1 = arith.constant 0 : index
    %0 = vector.load %arg3[%c0, %c0_0, %c0_1] : memref<1x256x36xbf16, #tpu.memory_space<vmem>>, vector<1x256x36xbf16>
    %1 = vector.shape_cast %0 : vector<1x256x36xbf16> to vector<256x36xbf16>
    %c0_2 = arith.constant 0 : index
    %c0_3 = arith.constant 0 : index
    %2 = vector.load %arg5[%c0_2, %c0_3] : memref<2x12xf32, #tpu.memory_space<vmem>>, vector<2x12xf32>
    %c0_4 = arith.constant 0 : index
    %c0_5 = arith.constant 0 : index
    %3 = vector.load %arg4[%c0_4, %c0_5] : memref<36x12xbf16, #tpu.memory_space<vmem>>, vector<36x12xbf16>
    %cst = arith.constant dense<0.000000e+00> : vector<256x12xf32>
    %4 = tpu.matmul %1, %3, %cst {dimension_numbers = #tpu.dot_dimension_numbers<[1], [0], [0], [1], [0, 0, 1, 1], [], []>} : vector<256x36xbf16>, vector<36x12xbf16>, vector<256x12xf32> -> vector<256x12xf32>
    %5 = vector.extract_strided_slice %2 {offsets = [0, 0], sizes = [1, 12], strides = [1, 1]} : vector<2x12xf32> to vector<1x12xf32>
    %6 = vector.broadcast %5 : vector<1x12xf32> to vector<256x12xf32>
    %7 = arith.mulf %4, %6 : vector<256x12xf32>
    %8 = vector.extract_strided_slice %2 {offsets = [1, 0], sizes = [1, 12], strides = [1, 1]} : vector<2x12xf32> to vector<1x12xf32>
    %9 = vector.broadcast %8 : vector<1x12xf32> to vector<256x12xf32>
    %10 = arith.addf %7, %9 : vector<256x12xf32>
    %c0_6 = arith.constant 0 : index
    %11 = memref.load %arg1[%c0_6] : memref<18xf32, #tpu.memory_space<smem>>
    %c1 = arith.constant 1 : index
    %12 = memref.load %arg1[%c1] : memref<18xf32, #tpu.memory_space<smem>>
    %c3 = arith.constant 3 : index
    %13 = memref.load %arg1[%c3] : memref<18xf32, #tpu.memory_space<smem>>
    %c4 = arith.constant 4 : index
    %14 = memref.load %arg1[%c4] : memref<18xf32, #tpu.memory_space<smem>>
    %c5 = arith.constant 5 : index
    %15 = memref.load %arg1[%c5] : memref<18xf32, #tpu.memory_space<smem>>
    %c0_7 = arith.constant 0 : index
    %16 = memref.load %arg2[%c0_7] : memref<6xf32, #tpu.memory_space<smem>>
    %c1_8 = arith.constant 1 : index
    %17 = memref.load %arg2[%c1_8] : memref<6xf32, #tpu.memory_space<smem>>
    %c0_9 = arith.constant 0 : index
    %c0_10 = arith.constant 0 : index
    %18 = vector.load %arg7[%c0_9, %c0_10] : memref<2x32xf32, #tpu.memory_space<vmem>>, vector<2x32xf32>
    %cst_11 = arith.constant 0.000000e+00 : f32
    %19 = vector.broadcast %cst_11 : f32 to vector<256x12xf32>
    %20 = arith.maximumf %10, %19 : vector<256x12xf32>
    %21 = arith.truncf %20 : vector<256x12xf32> to vector<256x12xbf16>
    %c0_12 = arith.constant 0 : index
    %c0_13 = arith.constant 0 : index
    %22 = vector.load %arg6[%c0_12, %c0_13] : memref<12x32xbf16, #tpu.memory_space<vmem>>, vector<12x32xbf16>
    %cst_14 = arith.constant dense<0.000000e+00> : vector<256x32xf32>
    %23 = tpu.matmul %21, %22, %cst_14 {dimension_numbers = #tpu.dot_dimension_numbers<[1], [0], [0], [1], [0, 0, 1, 1], [], []>} : vector<256x12xbf16>, vector<12x32xbf16>, vector<256x32xf32> -> vector<256x32xf32>
    %24 = vector.extract_strided_slice %18 {offsets = [0, 0], sizes = [1, 32], strides = [1, 1]} : vector<2x32xf32> to vector<1x32xf32>
    %25 = vector.broadcast %24 : vector<1x32xf32> to vector<256x32xf32>
    %26 = arith.mulf %23, %25 : vector<256x32xf32>
    %27 = vector.extract_strided_slice %18 {offsets = [1, 0], sizes = [1, 32], strides = [1, 1]} : vector<2x32xf32> to vector<1x32xf32>
    %28 = vector.broadcast %27 : vector<1x32xf32> to vector<256x32xf32>
    %29 = arith.addf %26, %28 : vector<256x32xf32>
    %30 = vector.extract_strided_slice %29 {offsets = [0, 0], sizes = [256, 16], strides = [1, 1]} : vector<256x32xf32> to vector<256x16xf32>
    %31 = vector.extract_strided_slice %29 {offsets = [0, 16], sizes = [256, 16], strides = [1, 1]} : vector<256x32xf32> to vector<256x16xf32>
    %32 = vector.broadcast %11 : f32 to vector<256x16xf32>
    %33 = arith.mulf %32, %30 : vector<256x16xf32>
    %34 = vector.broadcast %12 : f32 to vector<256x16xf32>
    %35 = arith.mulf %34, %31 : vector<256x16xf32>
    %36 = arith.addf %33, %35 : vector<256x16xf32>
    %c0_15 = arith.constant 0 : index
    %c0_16 = arith.constant 0 : index
    %c0_17 = arith.constant 0 : index
    %37 = vector.load %arg9[%c0_15, %c0_16, %c0_17] : memref<2x2x16xf32, #tpu.memory_space<vmem>>, vector<1x2x16xf32>
    %38 = vector.shape_cast %37 : vector<1x2x16xf32> to vector<2x16xf32>
    %cst_18 = arith.constant 0.000000e+00 : f32
    %39 = vector.broadcast %cst_18 : f32 to vector<256x16xf32>
    %40 = arith.maximumf %36, %39 : vector<256x16xf32>
    %41 = arith.truncf %40 : vector<256x16xf32> to vector<256x16xbf16>
    %c0_19 = arith.constant 0 : index
    %c0_20 = arith.constant 0 : index
    %c0_21 = arith.constant 0 : index
    %42 = vector.load %arg8[%c0_19, %c0_20, %c0_21] : memref<2x16x16xbf16, #tpu.memory_space<vmem>>, vector<1x16x16xbf16>
    %43 = vector.shape_cast %42 : vector<1x16x16xbf16> to vector<16x16xbf16>
    %cst_22 = arith.constant dense<0.000000e+00> : vector<256x16xf32>
    %44 = tpu.matmul %41, %43, %cst_22 {dimension_numbers = #tpu.dot_dimension_numbers<[1], [0], [0], [1], [0, 0, 1, 1], [], []>} : vector<256x16xbf16>, vector<16x16xbf16>, vector<256x16xf32> -> vector<256x16xf32>
    %45 = vector.extract_strided_slice %38 {offsets = [0, 0], sizes = [1, 16], strides = [1, 1]} : vector<2x16xf32> to vector<1x16xf32>
    %46 = vector.broadcast %45 : vector<1x16xf32> to vector<256x16xf32>
    %47 = arith.mulf %44, %46 : vector<256x16xf32>
    %48 = vector.extract_strided_slice %38 {offsets = [1, 0], sizes = [1, 16], strides = [1, 1]} : vector<2x16xf32> to vector<1x16xf32>
    %49 = vector.broadcast %48 : vector<1x16xf32> to vector<256x16xf32>
    %50 = arith.addf %47, %49 : vector<256x16xf32>
    %51 = vector.broadcast %13 : f32 to vector<256x16xf32>
    %52 = arith.mulf %51, %30 : vector<256x16xf32>
    %53 = vector.broadcast %14 : f32 to vector<256x16xf32>
    %54 = arith.mulf %53, %31 : vector<256x16xf32>
    %55 = arith.addf %52, %54 : vector<256x16xf32>
    %56 = vector.broadcast %15 : f32 to vector<256x16xf32>
    %57 = arith.mulf %56, %50 : vector<256x16xf32>
    %58 = arith.addf %55, %57 : vector<256x16xf32>
    %c1_23 = arith.constant 1 : index
    %c0_24 = arith.constant 0 : index
    %c0_25 = arith.constant 0 : index
    %59 = vector.load %arg9[%c1_23, %c0_24, %c0_25] : memref<2x2x16xf32, #tpu.memory_space<vmem>>, vector<1x2x16xf32>
    %60 = vector.shape_cast %59 : vector<1x2x16xf32> to vector<2x16xf32>
    %cst_26 = arith.constant 0.000000e+00 : f32
    %61 = vector.broadcast %cst_26 : f32 to vector<256x16xf32>
    %62 = arith.maximumf %58, %61 : vector<256x16xf32>
    %63 = arith.truncf %62 : vector<256x16xf32> to vector<256x16xbf16>
    %c1_27 = arith.constant 1 : index
    %c0_28 = arith.constant 0 : index
    %c0_29 = arith.constant 0 : index
    %64 = vector.load %arg8[%c1_27, %c0_28, %c0_29] : memref<2x16x16xbf16, #tpu.memory_space<vmem>>, vector<1x16x16xbf16>
    %65 = vector.shape_cast %64 : vector<1x16x16xbf16> to vector<16x16xbf16>
    %cst_30 = arith.constant dense<0.000000e+00> : vector<256x16xf32>
    %66 = tpu.matmul %63, %65, %cst_30 {dimension_numbers = #tpu.dot_dimension_numbers<[1], [0], [0], [1], [0, 0, 1, 1], [], []>} : vector<256x16xbf16>, vector<16x16xbf16>, vector<256x16xf32> -> vector<256x16xf32>
    %67 = vector.extract_strided_slice %60 {offsets = [0, 0], sizes = [1, 16], strides = [1, 1]} : vector<2x16xf32> to vector<1x16xf32>
    %68 = vector.broadcast %67 : vector<1x16xf32> to vector<256x16xf32>
    %69 = arith.mulf %66, %68 : vector<256x16xf32>
    %70 = vector.extract_strided_slice %60 {offsets = [1, 0], sizes = [1, 16], strides = [1, 1]} : vector<2x16xf32> to vector<1x16xf32>
    %71 = vector.broadcast %70 : vector<1x16xf32> to vector<256x16xf32>
    %72 = arith.addf %69, %71 : vector<256x16xf32>
    %73 = vector.broadcast %16 : f32 to vector<256x16xf32>
    %74 = arith.mulf %73, %50 : vector<256x16xf32>
    %75 = vector.broadcast %17 : f32 to vector<256x16xf32>
    %76 = arith.mulf %75, %72 : vector<256x16xf32>
    %77 = arith.addf %74, %76 : vector<256x16xf32>
    %78 = tpu.concatenate %77, %72 in 1 : vector<256x16xf32>, vector<256x16xf32> -> vector<256x32xf32>
    %79 = vector.shape_cast %78 : vector<256x32xf32> to vector<8x2x16x32xf32>
    %c0_31 = arith.constant 0 : index
    %c0_32 = arith.constant 0 : index
    %c0_33 = arith.constant 0 : index
    %c0_34 = arith.constant 0 : index
    %80 = vector.load %arg25[%c0_31, %c0_32, %c0_33, %c0_34] : memref<8x2x16x32xf32, #tpu.memory_space<vmem>>, vector<8x2x16x32xf32>
    tpu.vector_store %arg25[%c0_31, %c0_32, %c0_33, %c0_34], %79 {strides = array<i32>} : memref<8x2x16x32xf32, #tpu.memory_space<vmem>>, vector<8x2x16x32xf32>,
    %c0_35 = arith.constant 0 : index
    %c0_36 = arith.constant 0 : index
    %c0_37 = arith.constant 0 : index
    %c0_38 = arith.constant 0 : index
    %81 = vector.load %arg25[%c0_35, %c0_36, %c0_37, %c0_38] : memref<8x2x16x32xf32, #tpu.memory_space<vmem>>, vector<8x1x16x32xf32>
    %82 = vector.shape_cast %81 : vector<8x1x16x32xf32> to vector<8x16x32xf32>
    %83 = vector.shape_cast %82 : vector<8x16x32xf32> to vector<128x32xf32>
    %c0_39 = arith.constant 0 : index
    %c0_40 = arith.constant 0 : index
    %84 = vector.load %arg26[%c0_39, %c0_40] : memref<128x32xf32, #tpu.memory_space<vmem>>, vector<128x32xf32>
    tpu.vector_store %arg26[%c0_39, %c0_40], %83 {strides = array<i32>} : memref<128x32xf32, #tpu.memory_space<vmem>>, vector<128x32xf32>,
    %c0_41 = arith.constant 0 : index
    %c0_42 = arith.constant 0 : index
    %85 = tpu.strided_load %arg26[%c0_41, %c0_42] {strides = array<i32: 2, 1>} : memref<128x32xf32, #tpu.memory_space<vmem>>, vector<64x32xf32>
    %c0_43 = arith.constant 0 : index
    %c0_44 = arith.constant 0 : index
    %86 = vector.load %arg11[%c0_43, %c0_44] : memref<2x32xf32, #tpu.memory_space<vmem>>, vector<2x32xf32>
    %cst_45 = arith.constant 0.000000e+00 : f32
    %87 = vector.broadcast %cst_45 : f32 to vector<64x32xf32>
    %88 = arith.maximumf %85, %87 : vector<64x32xf32>
    %89 = arith.truncf %88 : vector<64x32xf32> to vector<64x32xbf16>
    %c0_46 = arith.constant 0 : index
    %c0_47 = arith.constant 0 : index
    %90 = vector.load %arg10[%c0_46, %c0_47] : memref<32x32xbf16, #tpu.memory_space<vmem>>, vector<32x32xbf16>
    %cst_48 = arith.constant dense<0.000000e+00> : vector<64x32xf32>
    %91 = tpu.matmul %89, %90, %cst_48 {dimension_numbers = #tpu.dot_dimension_numbers<[1], [0], [0], [1], [0, 0, 1, 1], [], []>} : vector<64x32xbf16>, vector<32x32xbf16>, vector<64x32xf32> -> vector<64x32xf32>
    %92 = vector.extract_strided_slice %86 {offsets = [0, 0], sizes = [1, 32], strides = [1, 1]} : vector<2x32xf32> to vector<1x32xf32>
    %93 = vector.broadcast %92 : vector<1x32xf32> to vector<64x32xf32>
    %94 = arith.mulf %91, %93 : vector<64x32xf32>
    %95 = vector.extract_strided_slice %86 {offsets = [1, 0], sizes = [1, 32], strides = [1, 1]} : vector<2x32xf32> to vector<1x32xf32>
    %96 = vector.broadcast %95 : vector<1x32xf32> to vector<64x32xf32>
    %97 = arith.addf %94, %96 : vector<64x32xf32>
    %c6 = arith.constant 6 : index
    %98 = memref.load %arg1[%c6] : memref<18xf32, #tpu.memory_space<smem>>
    %c7 = arith.constant 7 : index
    %99 = memref.load %arg1[%c7] : memref<18xf32, #tpu.memory_space<smem>>
    %c9 = arith.constant 9 : index
    %100 = memref.load %arg1[%c9] : memref<18xf32, #tpu.memory_space<smem>>
    %c10 = arith.constant 10 : index
    %101 = memref.load %arg1[%c10] : memref<18xf32, #tpu.memory_space<smem>>
    %c11 = arith.constant 11 : index
    %102 = memref.load %arg1[%c11] : memref<18xf32, #tpu.memory_space<smem>>
    %c2 = arith.constant 2 : index
    %103 = memref.load %arg2[%c2] : memref<6xf32, #tpu.memory_space<smem>>
    %c3_49 = arith.constant 3 : index
    %104 = memref.load %arg2[%c3_49] : memref<6xf32, #tpu.memory_space<smem>>
    %c0_50 = arith.constant 0 : index
    %c0_51 = arith.constant 0 : index
    %105 = vector.load %arg13[%c0_50, %c0_51] : memref<2x64xf32, #tpu.memory_space<vmem>>, vector<2x64xf32>
    %cst_52 = arith.constant 0.000000e+00 : f32
    %106 = vector.broadcast %cst_52 : f32 to vector<64x32xf32>
    %107 = arith.maximumf %97, %106 : vector<64x32xf32>
    %108 = arith.truncf %107 : vector<64x32xf32> to vector<64x32xbf16>
    %c0_53 = arith.constant 0 : index
    %c0_54 = arith.constant 0 : index
    %109 = vector.load %arg12[%c0_53, %c0_54] : memref<32x64xbf16, #tpu.memory_space<vmem>>, vector<32x64xbf16>
    %cst_55 = arith.constant dense<0.000000e+00> : vector<64x64xf32>
    %110 = tpu.matmul %108, %109, %cst_55 {dimension_numbers = #tpu.dot_dimension_numbers<[1], [0], [0], [1], [0, 0, 1, 1], [], []>} : vector<64x32xbf16>, vector<32x64xbf16>, vector<64x64xf32> -> vector<64x64xf32>
    %111 = vector.extract_strided_slice %105 {offsets = [0, 0], sizes = [1, 64], strides = [1, 1]} : vector<2x64xf32> to vector<1x64xf32>
    %112 = vector.broadcast %111 : vector<1x64xf32> to vector<64x64xf32>
    %113 = arith.mulf %110, %112 : vector<64x64xf32>
    %114 = vector.extract_strided_slice %105 {offsets = [1, 0], sizes = [1, 64], strides = [1, 1]} : vector<2x64xf32> to vector<1x64xf32>
    %115 = vector.broadcast %114 : vector<1x64xf32> to vector<64x64xf32>
    %116 = arith.addf %113, %115 : vector<64x64xf32>
    %117 = vector.extract_strided_slice %116 {offsets = [0, 0], sizes = [64, 32], strides = [1, 1]} : vector<64x64xf32> to vector<64x32xf32>
    %118 = vector.extract_strided_slice %116 {offsets = [0, 32], sizes = [64, 32], strides = [1, 1]} : vector<64x64xf32> to vector<64x32xf32>
    %119 = vector.broadcast %98 : f32 to vector<64x32xf32>
    %120 = arith.mulf %119, %117 : vector<64x32xf32>
    %121 = vector.broadcast %99 : f32 to vector<64x32xf32>
    %122 = arith.mulf %121, %118 : vector<64x32xf32>
    %123 = arith.addf %120, %122 : vector<64x32xf32>
    %c0_56 = arith.constant 0 : index
    %c0_57 = arith.constant 0 : index
    %c0_58 = arith.constant 0 : index
    %124 = vector.load %arg15[%c0_56, %c0_57, %c0_58] : memref<2x2x32xf32, #tpu.memory_space<vmem>>, vector<1x2x32xf32>
    %125 = vector.shape_cast %124 : vector<1x2x32xf32> to vector<2x32xf32>
    %cst_59 = arith.constant 0.000000e+00 : f32
    %126 = vector.broadcast %cst_59 : f32 to vector<64x32xf32>
    %127 = arith.maximumf %123, %126 : vector<64x32xf32>
    %128 = arith.truncf %127 : vector<64x32xf32> to vector<64x32xbf16>
    %c0_60 = arith.constant 0 : index
    %c0_61 = arith.constant 0 : index
    %c0_62 = arith.constant 0 : index
    %129 = vector.load %arg14[%c0_60, %c0_61, %c0_62] : memref<2x32x32xbf16, #tpu.memory_space<vmem>>, vector<1x32x32xbf16>
    %130 = vector.shape_cast %129 : vector<1x32x32xbf16> to vector<32x32xbf16>
    %cst_63 = arith.constant dense<0.000000e+00> : vector<64x32xf32>
    %131 = tpu.matmul %128, %130, %cst_63 {dimension_numbers = #tpu.dot_dimension_numbers<[1], [0], [0], [1], [0, 0, 1, 1], [], []>} : vector<64x32xbf16>, vector<32x32xbf16>, vector<64x32xf32> -> vector<64x32xf32>
    %132 = vector.extract_strided_slice %125 {offsets = [0, 0], sizes = [1, 32], strides = [1, 1]} : vector<2x32xf32> to vector<1x32xf32>
    %133 = vector.broadcast %132 : vector<1x32xf32> to vector<64x32xf32>
    %134 = arith.mulf %131, %133 : vector<64x32xf32>
    %135 = vector.extract_strided_slice %125 {offsets = [1, 0], sizes = [1, 32], strides = [1, 1]} : vector<2x32xf32> to vector<1x32xf32>
    %136 = vector.broadcast %135 : vector<1x32xf32> to vector<64x32xf32>
    %137 = arith.addf %134, %136 : vector<64x32xf32>
    %138 = vector.broadcast %100 : f32 to vector<64x32xf32>
    %139 = arith.mulf %138, %117 : vector<64x32xf32>
    %140 = vector.broadcast %101 : f32 to vector<64x32xf32>
    %141 = arith.mulf %140, %118 : vector<64x32xf32>
    %142 = arith.addf %139, %141 : vector<64x32xf32>
    %143 = vector.broadcast %102 : f32 to vector<64x32xf32>
    %144 = arith.mulf %143, %137 : vector<64x32xf32>
    %145 = arith.addf %142, %144 : vector<64x32xf32>
    %c1_64 = arith.constant 1 : index
    %c0_65 = arith.constant 0 : index
    %c0_66 = arith.constant 0 : index
    %146 = vector.load %arg15[%c1_64, %c0_65, %c0_66] : memref<2x2x32xf32, #tpu.memory_space<vmem>>, vector<1x2x32xf32>
    %147 = vector.shape_cast %146 : vector<1x2x32xf32> to vector<2x32xf32>
    %cst_67 = arith.constant 0.000000e+00 : f32
    %148 = vector.broadcast %cst_67 : f32 to vector<64x32xf32>
    %149 = arith.maximumf %145, %148 : vector<64x32xf32>
    %150 = arith.truncf %149 : vector<64x32xf32> to vector<64x32xbf16>
    %c1_68 = arith.constant 1 : index
    %c0_69 = arith.constant 0 : index
    %c0_70 = arith.constant 0 : index
    %151 = vector.load %arg14[%c1_68, %c0_69, %c0_70] : memref<2x32x32xbf16, #tpu.memory_space<vmem>>, vector<1x32x32xbf16>
    %152 = vector.shape_cast %151 : vector<1x32x32xbf16> to vector<32x32xbf16>
    %cst_71 = arith.constant dense<0.000000e+00> : vector<64x32xf32>
    %153 = tpu.matmul %150, %152, %cst_71 {dimension_numbers = #tpu.dot_dimension_numbers<[1], [0], [0], [1], [0, 0, 1, 1], [], []>} : vector<64x32xbf16>, vector<32x32xbf16>, vector<64x32xf32> -> vector<64x32xf32>
    %154 = vector.extract_strided_slice %147 {offsets = [0, 0], sizes = [1, 32], strides = [1, 1]} : vector<2x32xf32> to vector<1x32xf32>
    %155 = vector.broadcast %154 : vector<1x32xf32> to vector<64x32xf32>
    %156 = arith.mulf %153, %155 : vector<64x32xf32>
    %157 = vector.extract_strided_slice %147 {offsets = [1, 0], sizes = [1, 32], strides = [1, 1]} : vector<2x32xf32> to vector<1x32xf32>
    %158 = vector.broadcast %157 : vector<1x32xf32> to vector<64x32xf32>
    %159 = arith.addf %156, %158 : vector<64x32xf32>
    %160 = vector.broadcast %103 : f32 to vector<64x32xf32>
    %161 = arith.mulf %160, %137 : vector<64x32xf32>
    %162 = vector.broadcast %104 : f32 to vector<64x32xf32>
    %163 = arith.mulf %162, %159 : vector<64x32xf32>
    %164 = arith.addf %161, %163 : vector<64x32xf32>
    %165 = tpu.concatenate %164, %159 in 1 : vector<64x32xf32>, vector<64x32xf32> -> vector<64x64xf32>
    %166 = vector.shape_cast %165 : vector<64x64xf32> to vector<4x2x8x64xf32>
    %c0_72 = arith.constant 0 : index
    %c0_73 = arith.constant 0 : index
    %c0_74 = arith.constant 0 : index
    %c0_75 = arith.constant 0 : index
    %167 = vector.load %arg27[%c0_72, %c0_73, %c0_74, %c0_75] : memref<4x2x8x64xf32, #tpu.memory_space<vmem>>, vector<4x2x8x64xf32>
    tpu.vector_store %arg27[%c0_72, %c0_73, %c0_74, %c0_75], %166 {strides = array<i32>} : memref<4x2x8x64xf32, #tpu.memory_space<vmem>>, vector<4x2x8x64xf32>,
    %c0_76 = arith.constant 0 : index
    %c0_77 = arith.constant 0 : index
    %c0_78 = arith.constant 0 : index
    %c0_79 = arith.constant 0 : index
    %168 = vector.load %arg27[%c0_76, %c0_77, %c0_78, %c0_79] : memref<4x2x8x64xf32, #tpu.memory_space<vmem>>, vector<4x1x8x64xf32>
    %169 = vector.shape_cast %168 : vector<4x1x8x64xf32> to vector<4x8x64xf32>
    %170 = vector.shape_cast %169 : vector<4x8x64xf32> to vector<32x64xf32>
    %c0_80 = arith.constant 0 : index
    %c0_81 = arith.constant 0 : index
    %171 = vector.load %arg28[%c0_80, %c0_81] : memref<32x64xf32, #tpu.memory_space<vmem>>, vector<32x64xf32>
    tpu.vector_store %arg28[%c0_80, %c0_81], %170 {strides = array<i32>} : memref<32x64xf32, #tpu.memory_space<vmem>>, vector<32x64xf32>,
    %c0_82 = arith.constant 0 : index
    %c0_83 = arith.constant 0 : index
    %172 = tpu.strided_load %arg28[%c0_82, %c0_83] {strides = array<i32: 2, 1>} : memref<32x64xf32, #tpu.memory_space<vmem>>, vector<16x64xf32>
    %c0_84 = arith.constant 0 : index
    %c0_85 = arith.constant 0 : index
    %173 = vector.load %arg17[%c0_84, %c0_85] : memref<2x64xf32, #tpu.memory_space<vmem>>, vector<2x64xf32>
    %cst_86 = arith.constant 0.000000e+00 : f32
    %174 = vector.broadcast %cst_86 : f32 to vector<16x64xf32>
    %175 = arith.maximumf %172, %174 : vector<16x64xf32>
    %176 = arith.truncf %175 : vector<16x64xf32> to vector<16x64xbf16>
    %c0_87 = arith.constant 0 : index
    %c0_88 = arith.constant 0 : index
    %177 = vector.load %arg16[%c0_87, %c0_88] : memref<64x64xbf16, #tpu.memory_space<vmem>>, vector<64x64xbf16>
    %cst_89 = arith.constant dense<0.000000e+00> : vector<16x64xf32>
    %178 = tpu.matmul %176, %177, %cst_89 {dimension_numbers = #tpu.dot_dimension_numbers<[1], [0], [0], [1], [0, 0, 1, 1], [], []>} : vector<16x64xbf16>, vector<64x64xbf16>, vector<16x64xf32> -> vector<16x64xf32>
    %179 = vector.extract_strided_slice %173 {offsets = [0, 0], sizes = [1, 64], strides = [1, 1]} : vector<2x64xf32> to vector<1x64xf32>
    %180 = vector.broadcast %179 : vector<1x64xf32> to vector<16x64xf32>
    %181 = arith.mulf %178, %180 : vector<16x64xf32>
    %182 = vector.extract_strided_slice %173 {offsets = [1, 0], sizes = [1, 64], strides = [1, 1]} : vector<2x64xf32> to vector<1x64xf32>
    %183 = vector.broadcast %182 : vector<1x64xf32> to vector<16x64xf32>
    %184 = arith.addf %181, %183 : vector<16x64xf32>
    %c12 = arith.constant 12 : index
    %185 = memref.load %arg1[%c12] : memref<18xf32, #tpu.memory_space<smem>>
    %c13 = arith.constant 13 : index
    %186 = memref.load %arg1[%c13] : memref<18xf32, #tpu.memory_space<smem>>
    %c15 = arith.constant 15 : index
    %187 = memref.load %arg1[%c15] : memref<18xf32, #tpu.memory_space<smem>>
    %c16 = arith.constant 16 : index
    %188 = memref.load %arg1[%c16] : memref<18xf32, #tpu.memory_space<smem>>
    %c17 = arith.constant 17 : index
    %189 = memref.load %arg1[%c17] : memref<18xf32, #tpu.memory_space<smem>>
    %c4_90 = arith.constant 4 : index
    %190 = memref.load %arg2[%c4_90] : memref<6xf32, #tpu.memory_space<smem>>
    %c5_91 = arith.constant 5 : index
    %191 = memref.load %arg2[%c5_91] : memref<6xf32, #tpu.memory_space<smem>>
    %c0_92 = arith.constant 0 : index
    %c0_93 = arith.constant 0 : index
    %192 = vector.load %arg19[%c0_92, %c0_93] : memref<2x128xf32, #tpu.memory_space<vmem>>, vector<2x128xf32>
    %cst_94 = arith.constant 0.000000e+00 : f32
    %193 = vector.broadcast %cst_94 : f32 to vector<16x64xf32>
    %194 = arith.maximumf %184, %193 : vector<16x64xf32>
    %195 = arith.truncf %194 : vector<16x64xf32> to vector<16x64xbf16>
    %c0_95 = arith.constant 0 : index
    %c0_96 = arith.constant 0 : index
    %196 = vector.load %arg18[%c0_95, %c0_96] : memref<64x128xbf16, #tpu.memory_space<vmem>>, vector<64x128xbf16>
    %cst_97 = arith.constant dense<0.000000e+00> : vector<16x128xf32>
    %197 = tpu.matmul %195, %196, %cst_97 {dimension_numbers = #tpu.dot_dimension_numbers<[1], [0], [0], [1], [0, 0, 1, 1], [], []>} : vector<16x64xbf16>, vector<64x128xbf16>, vector<16x128xf32> -> vector<16x128xf32>
    %198 = vector.extract_strided_slice %192 {offsets = [0, 0], sizes = [1, 128], strides = [1, 1]} : vector<2x128xf32> to vector<1x128xf32>
    %199 = vector.broadcast %198 : vector<1x128xf32> to vector<16x128xf32>
    %200 = arith.mulf %197, %199 : vector<16x128xf32>
    %201 = vector.extract_strided_slice %192 {offsets = [1, 0], sizes = [1, 128], strides = [1, 1]} : vector<2x128xf32> to vector<1x128xf32>
    %202 = vector.broadcast %201 : vector<1x128xf32> to vector<16x128xf32>
    %203 = arith.addf %200, %202 : vector<16x128xf32>
    %204 = vector.extract_strided_slice %203 {offsets = [0, 0], sizes = [16, 64], strides = [1, 1]} : vector<16x128xf32> to vector<16x64xf32>
    %205 = vector.extract_strided_slice %203 {offsets = [0, 64], sizes = [16, 64], strides = [1, 1]} : vector<16x128xf32> to vector<16x64xf32>
    %206 = vector.broadcast %185 : f32 to vector<16x64xf32>
    %207 = arith.mulf %206, %204 : vector<16x64xf32>
    %208 = vector.broadcast %186 : f32 to vector<16x64xf32>
    %209 = arith.mulf %208, %205 : vector<16x64xf32>
    %210 = arith.addf %207, %209 : vector<16x64xf32>
    %c0_98 = arith.constant 0 : index
    %c0_99 = arith.constant 0 : index
    %c0_100 = arith.constant 0 : index
    %211 = vector.load %arg21[%c0_98, %c0_99, %c0_100] : memref<2x2x64xf32, #tpu.memory_space<vmem>>, vector<1x2x64xf32>
    %212 = vector.shape_cast %211 : vector<1x2x64xf32> to vector<2x64xf32>
    %cst_101 = arith.constant 0.000000e+00 : f32
    %213 = vector.broadcast %cst_101 : f32 to vector<16x64xf32>
    %214 = arith.maximumf %210, %213 : vector<16x64xf32>
    %215 = arith.truncf %214 : vector<16x64xf32> to vector<16x64xbf16>
    %c0_102 = arith.constant 0 : index
    %c0_103 = arith.constant 0 : index
    %c0_104 = arith.constant 0 : index
    %216 = vector.load %arg20[%c0_102, %c0_103, %c0_104] : memref<2x64x64xbf16, #tpu.memory_space<vmem>>, vector<1x64x64xbf16>
    %217 = vector.shape_cast %216 : vector<1x64x64xbf16> to vector<64x64xbf16>
    %cst_105 = arith.constant dense<0.000000e+00> : vector<16x64xf32>
    %218 = tpu.matmul %215, %217, %cst_105 {dimension_numbers = #tpu.dot_dimension_numbers<[1], [0], [0], [1], [0, 0, 1, 1], [], []>} : vector<16x64xbf16>, vector<64x64xbf16>, vector<16x64xf32> -> vector<16x64xf32>
    %219 = vector.extract_strided_slice %212 {offsets = [0, 0], sizes = [1, 64], strides = [1, 1]} : vector<2x64xf32> to vector<1x64xf32>
    %220 = vector.broadcast %219 : vector<1x64xf32> to vector<16x64xf32>
    %221 = arith.mulf %218, %220 : vector<16x64xf32>
    %222 = vector.extract_strided_slice %212 {offsets = [1, 0], sizes = [1, 64], strides = [1, 1]} : vector<2x64xf32> to vector<1x64xf32>
    %223 = vector.broadcast %222 : vector<1x64xf32> to vector<16x64xf32>
    %224 = arith.addf %221, %223 : vector<16x64xf32>
    %225 = vector.broadcast %187 : f32 to vector<16x64xf32>
    %226 = arith.mulf %225, %204 : vector<16x64xf32>
    %227 = vector.broadcast %188 : f32 to vector<16x64xf32>
    %228 = arith.mulf %227, %205 : vector<16x64xf32>
    %229 = arith.addf %226, %228 : vector<16x64xf32>
    %230 = vector.broadcast %189 : f32 to vector<16x64xf32>
    %231 = arith.mulf %230, %224 : vector<16x64xf32>
    %232 = arith.addf %229, %231 : vector<16x64xf32>
    %c1_106 = arith.constant 1 : index
    %c0_107 = arith.constant 0 : index
    %c0_108 = arith.constant 0 : index
    %233 = vector.load %arg21[%c1_106, %c0_107, %c0_108] : memref<2x2x64xf32, #tpu.memory_space<vmem>>, vector<1x2x64xf32>
    %234 = vector.shape_cast %233 : vector<1x2x64xf32> to vector<2x64xf32>
    %cst_109 = arith.constant 0.000000e+00 : f32
    %235 = vector.broadcast %cst_109 : f32 to vector<16x64xf32>
    %236 = arith.maximumf %232, %235 : vector<16x64xf32>
    %237 = arith.truncf %236 : vector<16x64xf32> to vector<16x64xbf16>
    %c1_110 = arith.constant 1 : index
    %c0_111 = arith.constant 0 : index
    %c0_112 = arith.constant 0 : index
    %238 = vector.load %arg20[%c1_110, %c0_111, %c0_112] : memref<2x64x64xbf16, #tpu.memory_space<vmem>>, vector<1x64x64xbf16>
    %239 = vector.shape_cast %238 : vector<1x64x64xbf16> to vector<64x64xbf16>
    %cst_113 = arith.constant dense<0.000000e+00> : vector<16x64xf32>
    %240 = tpu.matmul %237, %239, %cst_113 {dimension_numbers = #tpu.dot_dimension_numbers<[1], [0], [0], [1], [0, 0, 1, 1], [], []>} : vector<16x64xbf16>, vector<64x64xbf16>, vector<16x64xf32> -> vector<16x64xf32>
    %241 = vector.extract_strided_slice %234 {offsets = [0, 0], sizes = [1, 64], strides = [1, 1]} : vector<2x64xf32> to vector<1x64xf32>
    %242 = vector.broadcast %241 : vector<1x64xf32> to vector<16x64xf32>
    %243 = arith.mulf %240, %242 : vector<16x64xf32>
    %244 = vector.extract_strided_slice %234 {offsets = [1, 0], sizes = [1, 64], strides = [1, 1]} : vector<2x64xf32> to vector<1x64xf32>
    %245 = vector.broadcast %244 : vector<1x64xf32> to vector<16x64xf32>
    %246 = arith.addf %243, %245 : vector<16x64xf32>
    %247 = vector.broadcast %190 : f32 to vector<16x64xf32>
    %248 = arith.mulf %247, %224 : vector<16x64xf32>
    %249 = vector.broadcast %191 : f32 to vector<16x64xf32>
    %250 = arith.mulf %249, %246 : vector<16x64xf32>
    %251 = arith.addf %248, %250 : vector<16x64xf32>
    %252 = tpu.concatenate %251, %246 in 1 : vector<16x64xf32>, vector<16x64xf32> -> vector<16x128xf32>
    %253 = vector.shape_cast %252 : vector<16x128xf32> to vector<1x16x128xf32>
    %cst_114 = arith.constant dense<0.000000e+00> : vector<1x128xf32>
    %254 = vector.multi_reduction <add>, %253, %cst_114 [1] : vector<1x16x128xf32> to vector<1x128xf32>
    %cst_115 = arith.constant 1.600000e+01 : f32
    %255 = vector.broadcast %cst_115 : f32 to vector<1x128xf32>
    %256 = arith.divf %254, %255 : vector<1x128xf32>
    %257 = arith.truncf %256 : vector<1x128xf32> to vector<1x128xbf16>
    %c0_116 = arith.constant 0 : index
    %c0_117 = arith.constant 0 : index
    %258 = vector.load %arg22[%c0_116, %c0_117] : memref<128x10xbf16, #tpu.memory_space<vmem>>, vector<128x10xbf16>
    %cst_118 = arith.constant dense<0.000000e+00> : vector<1x10xf32>
    %259 = tpu.matmul %257, %258, %cst_118 {dimension_numbers = #tpu.dot_dimension_numbers<[1], [0], [0], [1], [0, 0, 1, 1], [], []>} : vector<1x128xbf16>, vector<128x10xbf16>, vector<1x10xf32> -> vector<1x10xf32>
    %c0_119 = arith.constant 0 : index
    %c0_120 = arith.constant 0 : index
    %260 = vector.load %arg23[%c0_119, %c0_120] : memref<1x10xf32, #tpu.memory_space<vmem>>, vector<1x10xf32>
    %261 = arith.addf %259, %260 : vector<1x10xf32>
    %262 = vector.shape_cast %261 : vector<1x10xf32> to vector<1x1x10xf32>
    %c0_121 = arith.constant 0 : index
    %c0_122 = arith.constant 0 : index
    %c0_123 = arith.constant 0 : index
    %263 = vector.load %arg24[%c0_121, %c0_122, %c0_123] : memref<1x1x10xf32, #tpu.memory_space<vmem>>, vector<1x1x10xf32>
    tpu.vector_store %arg24[%c0_121, %c0_122, %c0_123], %262 {strides = array<i32>} : memref<1x1x10xf32, #tpu.memory_space<vmem>>, vector<1x1x10xf32>,
    return
  }
  func.func @transform_0(%arg0: i32, %arg1: memref<18xf32, #tpu.memory_space<smem>>, %arg2: memref<6xf32, #tpu.memory_space<smem>>) -> (i32, i32, i32) {
    %c0_i32 = arith.constant 0 : i32
    %c0_i32_0 = arith.constant 0 : i32
    %c0_i32_1 = arith.constant 0 : i32
    return %arg0, %c0_i32, %c0_i32_0 : i32, i32, i32
  }
  func.func @transform_1(%arg0: i32, %arg1: memref<18xf32, #tpu.memory_space<smem>>, %arg2: memref<6xf32, #tpu.memory_space<smem>>) -> (i32, i32) {
    %c0_i32 = arith.constant 0 : i32
    %c0_i32_0 = arith.constant 0 : i32
    %c0_i32_1 = arith.constant 0 : i32
    return %c0_i32, %c0_i32_0 : i32, i32
  }
  func.func @transform_2(%arg0: i32, %arg1: memref<18xf32, #tpu.memory_space<smem>>, %arg2: memref<6xf32, #tpu.memory_space<smem>>) -> (i32, i32) {
    %c0_i32 = arith.constant 0 : i32
    %c0_i32_0 = arith.constant 0 : i32
    %c0_i32_1 = arith.constant 0 : i32
    return %c0_i32, %c0_i32_0 : i32, i32
  }
  func.func @transform_3(%arg0: i32, %arg1: memref<18xf32, #tpu.memory_space<smem>>, %arg2: memref<6xf32, #tpu.memory_space<smem>>) -> (i32, i32) {
    %c0_i32 = arith.constant 0 : i32
    %c0_i32_0 = arith.constant 0 : i32
    %c0_i32_1 = arith.constant 0 : i32
    return %c0_i32, %c0_i32_0 : i32, i32
  }
  func.func @transform_4(%arg0: i32, %arg1: memref<18xf32, #tpu.memory_space<smem>>, %arg2: memref<6xf32, #tpu.memory_space<smem>>) -> (i32, i32) {
    %c0_i32 = arith.constant 0 : i32
    %c0_i32_0 = arith.constant 0 : i32
    %c0_i32_1 = arith.constant 0 : i32
    return %c0_i32, %c0_i32_0 : i32, i32
  }
  func.func @transform_5(%arg0: i32, %arg1: memref<18xf32, #tpu.memory_space<smem>>, %arg2: memref<6xf32, #tpu.memory_space<smem>>) -> (i32, i32, i32) {
    %c0_i32 = arith.constant 0 : i32
    %c0_i32_0 = arith.constant 0 : i32
    %c0_i32_1 = arith.constant 0 : i32
    %c0_i32_2 = arith.constant 0 : i32
    return %c0_i32, %c0_i32_0, %c0_i32_1 : i32, i32, i32
  }
  func.func @transform_6(%arg0: i32, %arg1: memref<18xf32, #tpu.memory_space<smem>>, %arg2: memref<6xf32, #tpu.memory_space<smem>>) -> (i32, i32, i32) {
    %c0_i32 = arith.constant 0 : i32
    %c0_i32_0 = arith.constant 0 : i32
    %c0_i32_1 = arith.constant 0 : i32
    %c0_i32_2 = arith.constant 0 : i32
    return %c0_i32, %c0_i32_0, %c0_i32_1 : i32, i32, i32
  }
  func.func @transform_7(%arg0: i32, %arg1: memref<18xf32, #tpu.memory_space<smem>>, %arg2: memref<6xf32, #tpu.memory_space<smem>>) -> (i32, i32) {
    %c0_i32 = arith.constant 0 : i32
    %c0_i32_0 = arith.constant 0 : i32
    %c0_i32_1 = arith.constant 0 : i32
    return %c0_i32, %c0_i32_0 : i32, i32
  }
  func.func @transform_8(%arg0: i32, %arg1: memref<18xf32, #tpu.memory_space<smem>>, %arg2: memref<6xf32, #tpu.memory_space<smem>>) -> (i32, i32) {
    %c0_i32 = arith.constant 0 : i32
    %c0_i32_0 = arith.constant 0 : i32
    %c0_i32_1 = arith.constant 0 : i32
    return %c0_i32, %c0_i32_0 : i32, i32
  }
  func.func @transform_9(%arg0: i32, %arg1: memref<18xf32, #tpu.memory_space<smem>>, %arg2: memref<6xf32, #tpu.memory_space<smem>>) -> (i32, i32) {
    %c0_i32 = arith.constant 0 : i32
    %c0_i32_0 = arith.constant 0 : i32
    %c0_i32_1 = arith.constant 0 : i32
    return %c0_i32, %c0_i32_0 : i32, i32
  }
  func.func @transform_10(%arg0: i32, %arg1: memref<18xf32, #tpu.memory_space<smem>>, %arg2: memref<6xf32, #tpu.memory_space<smem>>) -> (i32, i32) {
    %c0_i32 = arith.constant 0 : i32
    %c0_i32_0 = arith.constant 0 : i32
    %c0_i32_1 = arith.constant 0 : i32
    return %c0_i32, %c0_i32_0 : i32, i32
  }
  func.func @transform_11(%arg0: i32, %arg1: memref<18xf32, #tpu.memory_space<smem>>, %arg2: memref<6xf32, #tpu.memory_space<smem>>) -> (i32, i32, i32) {
    %c0_i32 = arith.constant 0 : i32
    %c0_i32_0 = arith.constant 0 : i32
    %c0_i32_1 = arith.constant 0 : i32
    %c0_i32_2 = arith.constant 0 : i32
    return %c0_i32, %c0_i32_0, %c0_i32_1 : i32, i32, i32
  }
  func.func @transform_12(%arg0: i32, %arg1: memref<18xf32, #tpu.memory_space<smem>>, %arg2: memref<6xf32, #tpu.memory_space<smem>>) -> (i32, i32, i32) {
    %c0_i32 = arith.constant 0 : i32
    %c0_i32_0 = arith.constant 0 : i32
    %c0_i32_1 = arith.constant 0 : i32
    %c0_i32_2 = arith.constant 0 : i32
    return %c0_i32, %c0_i32_0, %c0_i32_1 : i32, i32, i32
  }
  func.func @transform_13(%arg0: i32, %arg1: memref<18xf32, #tpu.memory_space<smem>>, %arg2: memref<6xf32, #tpu.memory_space<smem>>) -> (i32, i32) {
    %c0_i32 = arith.constant 0 : i32
    %c0_i32_0 = arith.constant 0 : i32
    %c0_i32_1 = arith.constant 0 : i32
    return %c0_i32, %c0_i32_0 : i32, i32
  }
  func.func @transform_14(%arg0: i32, %arg1: memref<18xf32, #tpu.memory_space<smem>>, %arg2: memref<6xf32, #tpu.memory_space<smem>>) -> (i32, i32) {
    %c0_i32 = arith.constant 0 : i32
    %c0_i32_0 = arith.constant 0 : i32
    %c0_i32_1 = arith.constant 0 : i32
    return %c0_i32, %c0_i32_0 : i32, i32
  }
  func.func @transform_15(%arg0: i32, %arg1: memref<18xf32, #tpu.memory_space<smem>>, %arg2: memref<6xf32, #tpu.memory_space<smem>>) -> (i32, i32) {
    %c0_i32 = arith.constant 0 : i32
    %c0_i32_0 = arith.constant 0 : i32
    %c0_i32_1 = arith.constant 0 : i32
    return %c0_i32, %c0_i32_0 : i32, i32
  }
  func.func @transform_16(%arg0: i32, %arg1: memref<18xf32, #tpu.memory_space<smem>>, %arg2: memref<6xf32, #tpu.memory_space<smem>>) -> (i32, i32) {
    %c0_i32 = arith.constant 0 : i32
    %c0_i32_0 = arith.constant 0 : i32
    %c0_i32_1 = arith.constant 0 : i32
    return %c0_i32, %c0_i32_0 : i32, i32
  }
  func.func @transform_17(%arg0: i32, %arg1: memref<18xf32, #tpu.memory_space<smem>>, %arg2: memref<6xf32, #tpu.memory_space<smem>>) -> (i32, i32, i32) {
    %c0_i32 = arith.constant 0 : i32
    %c0_i32_0 = arith.constant 0 : i32
    %c0_i32_1 = arith.constant 0 : i32
    %c0_i32_2 = arith.constant 0 : i32
    return %c0_i32, %c0_i32_0, %c0_i32_1 : i32, i32, i32
  }
  func.func @transform_18(%arg0: i32, %arg1: memref<18xf32, #tpu.memory_space<smem>>, %arg2: memref<6xf32, #tpu.memory_space<smem>>) -> (i32, i32, i32) {
    %c0_i32 = arith.constant 0 : i32
    %c0_i32_0 = arith.constant 0 : i32
    %c0_i32_1 = arith.constant 0 : i32
    %c0_i32_2 = arith.constant 0 : i32
    return %c0_i32, %c0_i32_0, %c0_i32_1 : i32, i32, i32
  }
  func.func @transform_19(%arg0: i32, %arg1: memref<18xf32, #tpu.memory_space<smem>>, %arg2: memref<6xf32, #tpu.memory_space<smem>>) -> (i32, i32) {
    %c0_i32 = arith.constant 0 : i32
    %c0_i32_0 = arith.constant 0 : i32
    %c0_i32_1 = arith.constant 0 : i32
    return %c0_i32, %c0_i32_0 : i32, i32
  }
  func.func @transform_20(%arg0: i32, %arg1: memref<18xf32, #tpu.memory_space<smem>>, %arg2: memref<6xf32, #tpu.memory_space<smem>>) -> (i32, i32) {
    %c0_i32 = arith.constant 0 : i32
    %c0_i32_0 = arith.constant 0 : i32
    %c0_i32_1 = arith.constant 0 : i32
    return %c0_i32, %c0_i32_0 : i32, i32
  }
  func.func @transform_21(%arg0: i32, %arg1: memref<18xf32, #tpu.memory_space<smem>>, %arg2: memref<6xf32, #tpu.memory_space<smem>>) -> (i32, i32, i32) {
    %c0_i32 = arith.constant 0 : i32
    %c0_i32_0 = arith.constant 0 : i32
    %c0_i32_1 = arith.constant 0 : i32
    return %arg0, %c0_i32, %c0_i32_0 : i32, i32, i32
  }
}

</mosaic_0001>

<llo_original>
// kernel: search_distribution_dag_forward.1
$region0: #{search_distribution_dag_forward.1}
  #allocation0 [shape = 'u32[]', space=smem, size = 0x4, offset = 0x4, fixed_abs, tag = 'smem constant byte address 0x4 - core index']
  #allocation1 [shape = 'u32[72,128]{1,0:T(1,128)}', space=vmem, size = 0x9000, scoped, tag = 'internal scratch']
  #allocation2 [shape = 'f32[8,2,16,32]{3,2,1,0:T(8,128)}', space=vmem, size = 0x20000, scoped, tag = 'scratch operand']
  #allocation3 [shape = 'f32[128,32]{1,0:T(8,128)}', space=vmem, size = 0x10000, scoped, tag = 'scratch operand']
  #allocation4 [shape = 'f32[4,2,8,64]{3,2,1,0:T(8,128)}', space=vmem, size = 0x8000, scoped, tag = 'scratch operand']
  #allocation5 [shape = 'f32[32,64]{1,0:T(8,128)}', space=vmem, size = 0x4000, scoped, tag = 'scratch operand']
  #allocation6 [shape = 's32[1]{0}', space=sflag, size = 0x4, scoped, tag = 'scoped memory for search_distribution_dag_forward.1']
  #allocation7 [shape = 'u8[512]{0}', space=smem, size = 0x200, scoped, tag = 'prefetched SMEM operand 0']
  #allocation8 [shape = 'u8[512]{0}', space=smem, size = 0x200, scoped, tag = 'prefetched SMEM operand 1']
  %s0 = inlined_call_operand.vmem [shape: f32[18], index: 0, kind: input, shape index: {}]
  %s1 = inlined_call_operand.vmem [shape: f32[6], index: 1, kind: input, shape index: {}]
  %s2 = inlined_call_operand.vmem [shape: bf16[2,256,36], index: 2, kind: input, shape index: {}]
  %s3 = inlined_call_operand.vmem [shape: bf16[36,12], index: 3, kind: input, shape index: {}]
  %s4 = inlined_call_operand.vmem [shape: f32[2,12], index: 4, kind: input, shape index: {}]
  %s5 = inlined_call_operand.vmem [shape: bf16[12,32], index: 5, kind: input, shape index: {}]
  %s6 = inlined_call_operand.vmem [shape: f32[2,32], index: 6, kind: input, shape index: {}]
  %s7 = inlined_call_operand.vmem [shape: bf16[2,16,16], index: 7, kind: input, shape index: {}]
  %s8 = inlined_call_operand.vmem [shape: f32[2,2,16], index: 8, kind: input, shape index: {}]
  %s9 = inlined_call_operand.vmem [shape: bf16[32,32], index: 9, kind: input, shape index: {}]
  %s10 = inlined_call_operand.vmem [shape: f32[2,32], index: 10, kind: input, shape index: {}]
  %s11 = inlined_call_operand.vmem [shape: bf16[32,64], index: 11, kind: input, shape index: {}]
  %s12 = inlined_call_operand.vmem [shape: f32[2,64], index: 12, kind: input, shape index: {}]
  %s13 = inlined_call_operand.vmem [shape: bf16[2,32,32], index: 13, kind: input, shape index: {}]
  %s14 = inlined_call_operand.vmem [shape: f32[2,2,32], index: 14, kind: input, shape index: {}]
  %s15 = inlined_call_operand.vmem [shape: bf16[64,64], index: 15, kind: input, shape index: {}]
  %s16 = inlined_call_operand.vmem [shape: f32[2,64], index: 16, kind: input, shape index: {}]
  %s17 = inlined_call_operand.vmem [shape: bf16[64,128], index: 17, kind: input, shape index: {}]
  %s18 = inlined_call_operand.vmem [shape: f32[2,128], index: 18, kind: input, shape index: {}]
  %s19 = inlined_call_operand.vmem [shape: bf16[2,64,64], index: 19, kind: input, shape index: {}]
  %s20 = inlined_call_operand.vmem [shape: f32[2,2,64], index: 20, kind: input, shape index: {}]
  %s21 = inlined_call_operand.vmem [shape: bf16[128,10], index: 21, kind: input, shape index: {}]
  %s22 = inlined_call_operand.vmem [shape: f32[1,10], index: 22, kind: input, shape index: {}]
  %s23 = inlined_call_operand.hbm [shape: f32[2,1,10], index: 23, kind: output, shape index: {}]
  %s24 = sld [smem:[#allocation0]]
  $region117: #{search_distribution_dag_forward.1} parent=0
    _
  %s26 = ssub.s32 1, %s24
  %s27 = scalar_select 0, %s26, %s24
  %s29 = sshll.u32 %s0, 4
  %s30 = int_to_ptr.vmem [resolvable:$true] %s29
  %32 = dma.vmem_to_smem %s30, 16, [#allocation7], [#allocation6]
  %s34 = sshll.u32 %s1, 4
  %s35 = int_to_ptr.vmem [resolvable:$true] %s34
  %37 = dma.vmem_to_smem %s35, 16, [#allocation8], [#allocation6]
  %39 = dma.done [#allocation6], 32
  %40 = sfence
  $region1: #{search_distribution_dag_forward.1} parent=0
    #allocation9 [shape = 'u8[1024]{0}', space=vmem, size = 0x400, scoped, tag = 'output window, operand 0']
    #allocation10 [shape = 's32[2]{0}', space=sflag, size = 0x8, scoped, tag = 'scoped memory for search_distribution_dag_forward.1']
    %41 = vsyncpa [#allocation10], 0
    %s42 = scalar_lea.sflag [#allocation10], 1
    %43 = vsyncpa %s42, 0
    loop: start=0, step=1, limit=4
    $region2: #{search_distribution_dag_forward.1} parent=1 // loop_pre_header
      _
    $region3: #{search_distribution_dag_forward.1} parent=1 // loop_header
      %s45 = sphi 0, %s49
      %p46 = scmp.ge.s32.totalorder %s45, 4
      %s55 = sphi 0, %s57
      %s58 = sphi 0, %s55
      %s59 = sphi 0, %s58
      %s75 = sphi 0, %s59
      %s79 = sphi 0, %s79
      %s81 = sphi 0, %s79
      %s82 = sphi 0, %s81
      %s96 = sphi 0, %s82
      %s100 = sphi 0, %s100
      %s102 = sphi 0, %s100
      %s103 = sphi 0, %s102
      %s117 = sphi 0, %s103
      %s121 = sphi 0, %s121
      %s123 = sphi 0, %s121
      %s124 = sphi 0, %s123
      %s138 = sphi 0, %s124
      %s142 = sphi 0, %s142
      %s144 = sphi 0, %s142
      %s145 = sphi 0, %s144
      %s159 = sphi 0, %s145
      %s163 = sphi 0, %s163
      %s165 = sphi 0, %s163
      %s166 = sphi 0, %s165
      %s180 = sphi 0, %s166
      %s184 = sphi 0, %s184
      %s186 = sphi 0, %s184
      %s187 = sphi 0, %s186
      %s201 = sphi 0, %s187
      %s205 = sphi 0, %s205
      %s207 = sphi 0, %s205
      %s208 = sphi 0, %s207
      %s222 = sphi 0, %s208
      %s226 = sphi 0, %s226
      %s228 = sphi 0, %s226
      %s229 = sphi 0, %s228
      %s243 = sphi 0, %s229
      %s247 = sphi 0, %s247
      %s249 = sphi 0, %s247
      %s250 = sphi 0, %s249
      %s264 = sphi 0, %s250
      %s268 = sphi 0, %s268
      %s270 = sphi 0, %s268
      %s271 = sphi 0, %s270
      %s285 = sphi 0, %s271
      %s289 = sphi 0, %s289
      %s291 = sphi 0, %s289
      %s292 = sphi 0, %s291
      %s306 = sphi 0, %s292
      %s310 = sphi 0, %s310
      %s312 = sphi 0, %s310
      %s313 = sphi 0, %s312
      %s327 = sphi 0, %s313
      %s331 = sphi 0, %s331
      %s333 = sphi 0, %s331
      %s334 = sphi 0, %s333
      %s348 = sphi 0, %s334
      %s352 = sphi 0, %s352
      %s354 = sphi 0, %s352
      %s355 = sphi 0, %s354
      %s369 = sphi 0, %s355
      %s373 = sphi 0, %s373
      %s375 = sphi 0, %s373
      %s376 = sphi 0, %s375
      %s390 = sphi 0, %s376
      %s394 = sphi 0, %s394
      %s396 = sphi 0, %s394
      %s397 = sphi 0, %s396
      %s411 = sphi 0, %s397
      %s415 = sphi 0, %s415
      %s417 = sphi 0, %s415
      %s418 = sphi 0, %s417
      %s432 = sphi 0, %s418
      %s436 = sphi 0, %s436
      %s438 = sphi 0, %s436
      %s439 = sphi 0, %s438
      %s453 = sphi 0, %s439
      %s457 = sphi 0, %s457
      %s459 = sphi 0, %s457
      %s460 = sphi 0, %s459
      %s474 = sphi 0, %s460
      %s478 = sphi 0, %s478
      %s480 = sphi 0, %s478
      %s481 = sphi 0, %s480
      %s495 = sphi 0, %s481
      %s501 = sphi 0, %s503
      %s504 = sphi 0, %s501
      %s505 = sphi 0, %s504
      %s521 = sphi 0, %s505
    $region4: #{search_distribution_dag_forward.1} parent=1 // loop_header_branch
      %48 = sbr.rel (%p46) target = $region8
    $region5: #{search_distribution_dag_forward.1} parent=1 // loop_body
      %s50 = ssub.s32 %s45, 1
      %s51 = ssub.s32 %s45, 2
      %s52 = sadd.s32 %s45, 1
      %s53 = ssub.s32 %s45, %s52
      %p54 = scmp.eq.s32.totalorder %s53, 0
      %s56 = sadd.s32 %s55, 1
      %s57 = scalar_select %p54, %s55, %s56
      %p60 = pneg %p54
      %p61 = scmp.eq.s32.totalorder %s45, 1
      %p62 = por %p60, %p61
      %p63 = scmp.ne.s32.totalorder %s55, %s58
      %p64 = scmp.eq.s32.totalorder %s45, 0
      %p65 = por %p63, %p64
      %p66 = scmp.ne.s32.totalorder %s55, %s58
      %p67 = scmp.eq.s32.totalorder %s50, 1
      %p68 = por %p66, %p67
      %p69 = scmp.ne.s32.totalorder %s58, %s59
      %p70 = scmp.eq.s32.totalorder %s50, 0
      %p71 = por %p69, %p70
      %p72 = scmp.ne.s32.totalorder %s58, %s59
      %p73 = scmp.eq.s32.totalorder %s51, 1
      %p74 = por %p72, %p73
      %p76 = scmp.ne.s32.totalorder %s59, %s75
      %p77 = scmp.eq.s32.totalorder %s51, 0
      %p78 = por %p76, %p77
      %s80 = sadd.s32 %s79, 1
      %p83 = scmp.eq.s32.totalorder %s45, 1
      %p84 = scmp.ne.s32.totalorder %s79, %s81
      %p85 = scmp.eq.s32.totalorder %s45, 0
      %p86 = por %p84, %p85
      %p87 = scmp.ne.s32.totalorder %s79, %s81
      %p88 = scmp.eq.s32.totalorder %s50, 1
      %p89 = por %p87, %p88
      %p90 = scmp.ne.s32.totalorder %s81, %s82
      %p91 = scmp.eq.s32.totalorder %s50, 0
      %p92 = por %p90, %p91
      %p93 = scmp.ne.s32.totalorder %s81, %s82
      %p94 = scmp.eq.s32.totalorder %s51, 1
      %p95 = por %p93, %p94
      %p97 = scmp.ne.s32.totalorder %s82, %s96
      %p98 = scmp.eq.s32.totalorder %s51, 0
      %p99 = por %p97, %p98
      %s101 = sadd.s32 %s100, 1
      %p104 = scmp.eq.s32.totalorder %s45, 1
      %p105 = scmp.ne.s32.totalorder %s100, %s102
      %p106 = scmp.eq.s32.totalorder %s45, 0
      %p107 = por %p105, %p106
      %p108 = scmp.ne.s32.totalorder %s100, %s102
      %p109 = scmp.eq.s32.totalorder %s50, 1
      %p110 = por %p108, %p109
      %p111 = scmp.ne.s32.totalorder %s102, %s103
      %p112 = scmp.eq.s32.totalorder %s50, 0
      %p113 = por %p111, %p112
      %p114 = scmp.ne.s32.totalorder %s102, %s103
      %p115 = scmp.eq.s32.totalorder %s51, 1
      %p116 = por %p114, %p115
      %p118 = scmp.ne.s32.totalorder %s103, %s117
      %p119 = scmp.eq.s32.totalorder %s51, 0
      %p120 = por %p118, %p119
      %s122 = sadd.s32 %s121, 1
      %p125 = scmp.eq.s32.totalorder %s45, 1
      %p126 = scmp.ne.s32.totalorder %s121, %s123
      %p127 = scmp.eq.s32.totalorder %s45, 0
      %p128 = por %p126, %p127
      %p129 = scmp.ne.s32.totalorder %s121, %s123
      %p130 = scmp.eq.s32.totalorder %s50, 1
      %p131 = por %p129, %p130
      %p132 = scmp.ne.s32.totalorder %s123, %s124
      %p133 = scmp.eq.s32.totalorder %s50, 0
      %p134 = por %p132, %p133
      %p135 = scmp.ne.s32.totalorder %s123, %s124
      %p136 = scmp.eq.s32.totalorder %s51, 1
      %p137 = por %p135, %p136
      %p139 = scmp.ne.s32.totalorder %s124, %s138
      %p140 = scmp.eq.s32.totalorder %s51, 0
      %p141 = por %p139, %p140
      %s143 = sadd.s32 %s142, 1
      %p146 = scmp.eq.s32.totalorder %s45, 1
      %p147 = scmp.ne.s32.totalorder %s142, %s144
      %p148 = scmp.eq.s32.totalorder %s45, 0
      %p149 = por %p147, %p148
      %p150 = scmp.ne.s32.totalorder %s142, %s144
      %p151 = scmp.eq.s32.totalorder %s50, 1
      %p152 = por %p150, %p151
      %p153 = scmp.ne.s32.totalorder %s144, %s145
      %p154 = scmp.eq.s32.totalorder %s50, 0
      %p155 = por %p153, %p154
      %p156 = scmp.ne.s32.totalorder %s144, %s145
      %p157 = scmp.eq.s32.totalorder %s51, 1
      %p158 = por %p156, %p157
      %p160 = scmp.ne.s32.totalorder %s145, %s159
      %p161 = scmp.eq.s32.totalorder %s51, 0
      %p162 = por %p160, %p161
      %s164 = sadd.s32 %s163, 1
      %p167 = scmp.eq.s32.totalorder %s45, 1
      %p168 = scmp.ne.s32.totalorder %s163, %s165
      %p169 = scmp.eq.s32.totalorder %s45, 0
      %p170 = por %p168, %p169
      %p171 = scmp.ne.s32.totalorder %s163, %s165
      %p172 = scmp.eq.s32.totalorder %s50, 1
      %p173 = por %p171, %p172
      %p174 = scmp.ne.s32.totalorder %s165, %s166
      %p175 = scmp.eq.s32.totalorder %s50, 0
      %p176 = por %p174, %p175
      %p177 = scmp.ne.s32.totalorder %s165, %s166
      %p178 = scmp.eq.s32.totalorder %s51, 1
      %p179 = por %p177, %p178
      %p181 = scmp.ne.s32.totalorder %s166, %s180
      %p182 = scmp.eq.s32.totalorder %s51, 0
      %p183 = por %p181, %p182
      %s185 = sadd.s32 %s184, 1
      %p188 = scmp.eq.s32.totalorder %s45, 1
      %p189 = scmp.ne.s32.totalorder %s184, %s186
      %p190 = scmp.eq.s32.totalorder %s45, 0
      %p191 = por %p189, %p190
      %p192 = scmp.ne.s32.totalorder %s184, %s186
      %p193 = scmp.eq.s32.totalorder %s50, 1
      %p194 = por %p192, %p193
      %p195 = scmp.ne.s32.totalorder %s186, %s187
      %p196 = scmp.eq.s32.totalorder %s50, 0
      %p197 = por %p195, %p196
      %p198 = scmp.ne.s32.totalorder %s186, %s187
      %p199 = scmp.eq.s32.totalorder %s51, 1
      %p200 = por %p198, %p199
      %p202 = scmp.ne.s32.totalorder %s187, %s201
      %p203 = scmp.eq.s32.totalorder %s51, 0
      %p204 = por %p202, %p203
      %s206 = sadd.s32 %s205, 1
      %p209 = scmp.eq.s32.totalorder %s45, 1
      %p210 = scmp.ne.s32.totalorder %s205, %s207
      %p211 = scmp.eq.s32.totalorder %s45, 0
      %p212 = por %p210, %p211
      %p213 = scmp.ne.s32.totalorder %s205, %s207
      %p214 = scmp.eq.s32.totalorder %s50, 1
      %p215 = por %p213, %p214
      %p216 = scmp.ne.s32.totalorder %s207, %s208
      %p217 = scmp.eq.s32.totalorder %s50, 0
      %p218 = por %p216, %p217
      %p219 = scmp.ne.s32.totalorder %s207, %s208
      %p220 = scmp.eq.s32.totalorder %s51, 1
      %p221 = por %p219, %p220
      %p223 = scmp.ne.s32.totalorder %s208, %s222
      %p224 = scmp.eq.s32.totalorder %s51, 0
      %p225 = por %p223, %p224
      %s227 = sadd.s32 %s226, 1
      %p230 = scmp.eq.s32.totalorder %s45, 1
      %p231 = scmp.ne.s32.totalorder %s226, %s228
      %p232 = scmp.eq.s32.totalorder %s45, 0
      %p233 = por %p231, %p232
      %p234 = scmp.ne.s32.totalorder %s226, %s228
      %p235 = scmp.eq.s32.totalorder %s50, 1
      %p236 = por %p234, %p235
      %p237 = scmp.ne.s32.totalorder %s228, %s229
      %p238 = scmp.eq.s32.totalorder %s50, 0
      %p239 = por %p237, %p238
      %p240 = scmp.ne.s32.totalorder %s228, %s229
      %p241 = scmp.eq.s32.totalorder %s51, 1
      %p242 = por %p240, %p241
      %p244 = scmp.ne.s32.totalorder %s229, %s243
      %p245 = scmp.eq.s32.totalorder %s51, 0
      %p246 = por %p244, %p245
      %s248 = sadd.s32 %s247, 1
      %p251 = scmp.eq.s32.totalorder %s45, 1
      %p252 = scmp.ne.s32.totalorder %s247, %s249
      %p253 = scmp.eq.s32.totalorder %s45, 0
      %p254 = por %p252, %p253
      %p255 = scmp.ne.s32.totalorder %s247, %s249
      %p256 = scmp.eq.s32.totalorder %s50, 1
      %p257 = por %p255, %p256
      %p258 = scmp.ne.s32.totalorder %s249, %s250
      %p259 = scmp.eq.s32.totalorder %s50, 0
      %p260 = por %p258, %p259
      %p261 = scmp.ne.s32.totalorder %s249, %s250
      %p262 = scmp.eq.s32.totalorder %s51, 1
      %p263 = por %p261, %p262
      %p265 = scmp.ne.s32.totalorder %s250, %s264
      %p266 = scmp.eq.s32.totalorder %s51, 0
      %p267 = por %p265, %p266
      %s269 = sadd.s32 %s268, 1
      %p272 = scmp.eq.s32.totalorder %s45, 1
      %p273 = scmp.ne.s32.totalorder %s268, %s270
      %p274 = scmp.eq.s32.totalorder %s45, 0
      %p275 = por %p273, %p274
      %p276 = scmp.ne.s32.totalorder %s268, %s270
      %p277 = scmp.eq.s32.totalorder %s50, 1
      %p278 = por %p276, %p277
      %p279 = scmp.ne.s32.totalorder %s270, %s271
      %p280 = scmp.eq.s32.totalorder %s50, 0
      %p281 = por %p279, %p280
      %p282 = scmp.ne.s32.totalorder %s270, %s271
      %p283 = scmp.eq.s32.totalorder %s51, 1
      %p284 = por %p282, %p283
      %p286 = scmp.ne.s32.totalorder %s271, %s285
      %p287 = scmp.eq.s32.totalorder %s51, 0
      %p288 = por %p286, %p287
      %s290 = sadd.s32 %s289, 1
      %p293 = scmp.eq.s32.totalorder %s45, 1
      %p294 = scmp.ne.s32.totalorder %s289, %s291
      %p295 = scmp.eq.s32.totalorder %s45, 0
      %p296 = por %p294, %p295
      %p297 = scmp.ne.s32.totalorder %s289, %s291
      %p298 = scmp.eq.s32.totalorder %s50, 1
      %p299 = por %p297, %p298
      %p300 = scmp.ne.s32.totalorder %s291, %s292
      %p301 = scmp.eq.s32.totalorder %s50, 0
      %p302 = por %p300, %p301
      %p303 = scmp.ne.s32.totalorder %s291, %s292
      %p304 = scmp.eq.s32.totalorder %s51, 1
      %p305 = por %p303, %p304
      %p307 = scmp.ne.s32.totalorder %s292, %s306
      %p308 = scmp.eq.s32.totalorder %s51, 0
      %p309 = por %p307, %p308
      %s311 = sadd.s32 %s310, 1
      %p314 = scmp.eq.s32.totalorder %s45, 1
      %p315 = scmp.ne.s32.totalorder %s310, %s312
      %p316 = scmp.eq.s32.totalorder %s45, 0
      %p317 = por %p315, %p316
      %p318 = scmp.ne.s32.totalorder %s310, %s312
      %p319 = scmp.eq.s32.totalorder %s50, 1
      %p320 = por %p318, %p319
      %p321 = scmp.ne.s32.totalorder %s312, %s313
      %p322 = scmp.eq.s32.totalorder %s50, 0
      %p323 = por %p321, %p322
      %p324 = scmp.ne.s32.totalorder %s312, %s313
      %p325 = scmp.eq.s32.totalorder %s51, 1
      %p326 = por %p324, %p325
      %p328 = scmp.ne.s32.totalorder %s313, %s327
      %p329 = scmp.eq.s32.totalorder %s51, 0
      %p330 = por %p328, %p329
      %s332 = sadd.s32 %s331, 1
      %p335 = scmp.eq.s32.totalorder %s45, 1
      %p336 = scmp.ne.s32.totalorder %s331, %s333
      %p337 = scmp.eq.s32.totalorder %s45, 0
      %p338 = por %p336, %p337
      %p339 = scmp.ne.s32.totalorder %s331, %s333
      %p340 = scmp.eq.s32.totalorder %s50, 1
      %p341 = por %p339, %p340
      %p342 = scmp.ne.s32.totalorder %s333, %s334
      %p343 = scmp.eq.s32.totalorder %s50, 0
      %p344 = por %p342, %p343
      %p345 = scmp.ne.s32.totalorder %s333, %s334
      %p346 = scmp.eq.s32.totalorder %s51, 1
      %p347 = por %p345, %p346
      %p349 = scmp.ne.s32.totalorder %s334, %s348
      %p350 = scmp.eq.s32.totalorder %s51, 0
      %p351 = por %p349, %p350
      %s353 = sadd.s32 %s352, 1
      %p356 = scmp.eq.s32.totalorder %s45, 1
      %p357 = scmp.ne.s32.totalorder %s352, %s354
      %p358 = scmp.eq.s32.totalorder %s45, 0
      %p359 = por %p357, %p358
      %p360 = scmp.ne.s32.totalorder %s352, %s354
      %p361 = scmp.eq.s32.totalorder %s50, 1
      %p362 = por %p360, %p361
      %p363 = scmp.ne.s32.totalorder %s354, %s355
      %p364 = scmp.eq.s32.totalorder %s50, 0
      %p365 = por %p363, %p364
      %p366 = scmp.ne.s32.totalorder %s354, %s355
      %p367 = scmp.eq.s32.totalorder %s51, 1
      %p368 = por %p366, %p367
      %p370 = scmp.ne.s32.totalorder %s355, %s369
      %p371 = scmp.eq.s32.totalorder %s51, 0
      %p372 = por %p370, %p371
      %s374 = sadd.s32 %s373, 1
      %p377 = scmp.eq.s32.totalorder %s45, 1
      %p378 = scmp.ne.s32.totalorder %s373, %s375
      %p379 = scmp.eq.s32.totalorder %s45, 0
      %p380 = por %p378, %p379
      %p381 = scmp.ne.s32.totalorder %s373, %s375
      %p382 = scmp.eq.s32.totalorder %s50, 1
      %p383 = por %p381, %p382
      %p384 = scmp.ne.s32.totalorder %s375, %s376
      %p385 = scmp.eq.s32.totalorder %s50, 0
      %p386 = por %p384, %p385
      %p387 = scmp.ne.s32.totalorder %s375, %s376
      %p388 = scmp.eq.s32.totalorder %s51, 1
      %p389 = por %p387, %p388
      %p391 = scmp.ne.s32.totalorder %s376, %s390
      %p392 = scmp.eq.s32.totalorder %s51, 0
      %p393 = por %p391, %p392
      %s395 = sadd.s32 %s394, 1
      %p398 = scmp.eq.s32.totalorder %s45, 1
      %p399 = scmp.ne.s32.totalorder %s394, %s396
      %p400 = scmp.eq.s32.totalorder %s45, 0
      %p401 = por %p399, %p400
      %p402 = scmp.ne.s32.totalorder %s394, %s396
      %p403 = scmp.eq.s32.totalorder %s50, 1
      %p404 = por %p402, %p403
      %p405 = scmp.ne.s32.totalorder %s396, %s397
      %p406 = scmp.eq.s32.totalorder %s50, 0
      %p407 = por %p405, %p406
      %p408 = scmp.ne.s32.totalorder %s396, %s397
      %p409 = scmp.eq.s32.totalorder %s51, 1
      %p410 = por %p408, %p409
      %p412 = scmp.ne.s32.totalorder %s397, %s411
      %p413 = scmp.eq.s32.totalorder %s51, 0
      %p414 = por %p412, %p413
      %s416 = sadd.s32 %s415, 1
      %p419 = scmp.eq.s32.totalorder %s45, 1
      %p420 = scmp.ne.s32.totalorder %s415, %s417
      %p421 = scmp.eq.s32.totalorder %s45, 0
      %p422 = por %p420, %p421
      %p423 = scmp.ne.s32.totalorder %s415, %s417
      %p424 = scmp.eq.s32.totalorder %s50, 1
      %p425 = por %p423, %p424
      %p426 = scmp.ne.s32.totalorder %s417, %s418
      %p427 = scmp.eq.s32.totalorder %s50, 0
      %p428 = por %p426, %p427
      %p429 = scmp.ne.s32.totalorder %s417, %s418
      %p430 = scmp.eq.s32.totalorder %s51, 1
      %p431 = por %p429, %p430
      %p433 = scmp.ne.s32.totalorder %s418, %s432
      %p434 = scmp.eq.s32.totalorder %s51, 0
      %p435 = por %p433, %p434
      %s437 = sadd.s32 %s436, 1
      %p440 = scmp.eq.s32.totalorder %s45, 1
      %p441 = scmp.ne.s32.totalorder %s436, %s438
      %p442 = scmp.eq.s32.totalorder %s45, 0
      %p443 = por %p441, %p442
      %p444 = scmp.ne.s32.totalorder %s436, %s438
      %p445 = scmp.eq.s32.totalorder %s50, 1
      %p446 = por %p444, %p445
      %p447 = scmp.ne.s32.totalorder %s438, %s439
      %p448 = scmp.eq.s32.totalorder %s50, 0
      %p449 = por %p447, %p448
      %p450 = scmp.ne.s32.totalorder %s438, %s439
      %p451 = scmp.eq.s32.totalorder %s51, 1
      %p452 = por %p450, %p451
      %p454 = scmp.ne.s32.totalorder %s439, %s453
      %p455 = scmp.eq.s32.totalorder %s51, 0
      %p456 = por %p454, %p455
      %s458 = sadd.s32 %s457, 1
      %p461 = scmp.eq.s32.totalorder %s45, 1
      %p462 = scmp.ne.s32.totalorder %s457, %s459
      %p463 = scmp.eq.s32.totalorder %s45, 0
      %p464 = por %p462, %p463
      %p465 = scmp.ne.s32.totalorder %s457, %s459
      %p466 = scmp.eq.s32.totalorder %s50, 1
      %p467 = por %p465, %p466
      %p468 = scmp.ne.s32.totalorder %s459, %s460
      %p469 = scmp.eq.s32.totalorder %s50, 0
      %p470 = por %p468, %p469
      %p471 = scmp.ne.s32.totalorder %s459, %s460
      %p472 = scmp.eq.s32.totalorder %s51, 1
      %p473 = por %p471, %p472
      %p475 = scmp.ne.s32.totalorder %s460, %s474
      %p476 = scmp.eq.s32.totalorder %s51, 0
      %p477 = por %p475, %p476
      %s479 = sadd.s32 %s478, 1
      %p482 = scmp.eq.s32.totalorder %s45, 1
      %p483 = scmp.ne.s32.totalorder %s478, %s480
      %p484 = scmp.eq.s32.totalorder %s45, 0
      %p485 = por %p483, %p484
      %p486 = scmp.ne.s32.totalorder %s478, %s480
      %p487 = scmp.eq.s32.totalorder %s50, 1
      %p488 = por %p486, %p487
      %p489 = scmp.ne.s32.totalorder %s480, %s481
      %p490 = scmp.eq.s32.totalorder %s50, 0
      %p491 = por %p489, %p490
      %p492 = scmp.ne.s32.totalorder %s480, %s481
      %p493 = scmp.eq.s32.totalorder %s51, 1
      %p494 = por %p492, %p493
      %p496 = scmp.ne.s32.totalorder %s481, %s495
      %p497 = scmp.eq.s32.totalorder %s51, 0
      %p498 = por %p496, %p497
      %s499 = ssub.s32 %s45, %s52
      %p500 = scmp.eq.s32.totalorder %s499, 0
      %s502 = sadd.s32 %s501, 1
      %s503 = scalar_select %p500, %s501, %s502
      %p506 = pneg %p500
      %p507 = scmp.eq.s32.totalorder %s45, 1
      %p508 = por %p506, %p507
      %p509 = scmp.ne.s32.totalorder %s501, %s504
      %p510 = scmp.eq.s32.totalorder %s45, 0
      %p511 = por %p509, %p510
      %p512 = scmp.ne.s32.totalorder %s501, %s504
      %p513 = scmp.eq.s32.totalorder %s50, 1
      %p514 = por %p512, %p513
      %p515 = scmp.ne.s32.totalorder %s504, %s505
      %p516 = scmp.eq.s32.totalorder %s50, 0
      %p517 = por %p515, %p516
      %p518 = scmp.ne.s32.totalorder %s504, %s505
      %p519 = scmp.eq.s32.totalorder %s51, 1
      %p520 = por %p518, %p519
      %p522 = scmp.ne.s32.totalorder %s505, %s521
      %p523 = scmp.eq.s32.totalorder %s51, 0
      %p524 = por %p522, %p523
      %p525 = scmp.le.s32.totalorder 1, %s45
      %p526 = scmp.lt.s32.totalorder %s45, 3
      %p527 = pnand %p525, %p526
      %p528 = pneg %p527
      // Predicated region
      $region9: #{search_distribution_dag_forward.1} parent=5 // pred_check
        _
      $region10: #{search_distribution_dag_forward.1} parent=5 // pred_check_branch
        %530 = sbr.rel (%p527) target = $region12
      $region11: #{search_distribution_dag_forward.1} parent=5 // pred_region
        %s531 = ssub.s32 %s45, 1
        // Predicated region
        $region13: #{search_distribution_dag_forward.1} parent=11 // pred_check
          %p532 = pneg %p92
        $region14: #{search_distribution_dag_forward.1} parent=11 // pred_check_branch
          %534 = sbr.rel (%p532) target = $region16
        $region15: #{search_distribution_dag_forward.1} parent=11 // pred_region
          _
        $region16: #{search_distribution_dag_forward.1} parent=11 // pred_fallthru
          _
        // Predicated region
        $region17: #{search_distribution_dag_forward.1} parent=11 // pred_check
          %p535 = pneg %p113
        $region18: #{search_distribution_dag_forward.1} parent=11 // pred_check_branch
          %537 = sbr.rel (%p535) target = $region20
        $region19: #{search_distribution_dag_forward.1} parent=11 // pred_region
          _
        $region20: #{search_distribution_dag_forward.1} parent=11 // pred_fallthru
          _
        // Predicated region
        $region21: #{search_distribution_dag_forward.1} parent=11 // pred_check
          %p538 = pneg %p134
        $region22: #{search_distribution_dag_forward.1} parent=11 // pred_check_branch
          %540 = sbr.rel (%p538) target = $region24
        $region23: #{search_distribution_dag_forward.1} parent=11 // pred_region
          _
        $region24: #{search_distribution_dag_forward.1} parent=11 // pred_fallthru
          _
        // Predicated region
        $region25: #{search_distribution_dag_forward.1} parent=11 // pred_check
          %p541 = pneg %p155
        $region26: #{search_distribution_dag_forward.1} parent=11 // pred_check_branch
          %543 = sbr.rel (%p541) target = $region28
        $region27: #{search_distribution_dag_forward.1} parent=11 // pred_region
          _
        $region28: #{search_distribution_dag_forward.1} parent=11 // pred_fallthru
          _
        // Predicated region
        $region29: #{search_distribution_dag_forward.1} parent=11 // pred_check
          %p544 = pneg %p176
        $region30: #{search_distribution_dag_forward.1} parent=11 // pred_check_branch
          %546 = sbr.rel (%p544) target = $region32
        $region31: #{search_distribution_dag_forward.1} parent=11 // pred_region
          _
        $region32: #{search_distribution_dag_forward.1} parent=11 // pred_fallthru
          _
        // Predicated region
        $region33: #{search_distribution_dag_forward.1} parent=11 // pred_check
          %p547 = pneg %p197
        $region34: #{search_distribution_dag_forward.1} parent=11 // pred_check_branch
          %549 = sbr.rel (%p547) target = $region36
        $region35: #{search_distribution_dag_forward.1} parent=11 // pred_region
          _
        $region36: #{search_distribution_dag_forward.1} parent=11 // pred_fallthru
          _
        // Predicated region
        $region37: #{search_distribution_dag_forward.1} parent=11 // pred_check
          %p550 = pneg %p218
        $region38: #{search_distribution_dag_forward.1} parent=11 // pred_check_branch
          %552 = sbr.rel (%p550) target = $region40
        $region39: #{search_distribution_dag_forward.1} parent=11 // pred_region
          _
        $region40: #{search_distribution_dag_forward.1} parent=11 // pred_fallthru
          _
        // Predicated region
        $region41: #{search_distribution_dag_forward.1} parent=11 // pred_check
          %p553 = pneg %p239
        $region42: #{search_distribution_dag_forward.1} parent=11 // pred_check_branch
          %555 = sbr.rel (%p553) target = $region44
        $region43: #{search_distribution_dag_forward.1} parent=11 // pred_region
          _
        $region44: #{search_distribution_dag_forward.1} parent=11 // pred_fallthru
          _
        // Predicated region
        $region45: #{search_distribution_dag_forward.1} parent=11 // pred_check
          %p556 = pneg %p260
        $region46: #{search_distribution_dag_forward.1} parent=11 // pred_check_branch
          %558 = sbr.rel (%p556) target = $region48
        $region47: #{search_distribution_dag_forward.1} parent=11 // pred_region
          _
        $region48: #{search_distribution_dag_forward.1} parent=11 // pred_fallthru
          _
        // Predicated region
        $region49: #{search_distribution_dag_forward.1} parent=11 // pred_check
          %p559 = pneg %p281
        $region50: #{search_distribution_dag_forward.1} parent=11 // pred_check_branch
          %561 = sbr.rel (%p559) target = $region52
        $region51: #{search_distribution_dag_forward.1} parent=11 // pred_region
          _
        $region52: #{search_distribution_dag_forward.1} parent=11 // pred_fallthru
          _
        // Predicated region
        $region53: #{search_distribution_dag_forward.1} parent=11 // pred_check
          %p562 = pneg %p302
        $region54: #{search_distribution_dag_forward.1} parent=11 // pred_check_branch
          %564 = sbr.rel (%p562) target = $region56
        $region55: #{search_distribution_dag_forward.1} parent=11 // pred_region
          _
        $region56: #{search_distribution_dag_forward.1} parent=11 // pred_fallthru
          _
        // Predicated region
        $region57: #{search_distribution_dag_forward.1} parent=11 // pred_check
          %p565 = pneg %p323
        $region58: #{search_distribution_dag_forward.1} parent=11 // pred_check_branch
          %567 = sbr.rel (%p565) target = $region60
        $region59: #{search_distribution_dag_forward.1} parent=11 // pred_region
          _
        $region60: #{search_distribution_dag_forward.1} parent=11 // pred_fallthru
          _
        // Predicated region
        $region61: #{search_distribution_dag_forward.1} parent=11 // pred_check
          %p568 = pneg %p344
        $region62: #{search_distribution_dag_forward.1} parent=11 // pred_check_branch
          %570 = sbr.rel (%p568) target = $region64
        $region63: #{search_distribution_dag_forward.1} parent=11 // pred_region
          _
        $region64: #{search_distribution_dag_forward.1} parent=11 // pred_fallthru
          _
        // Predicated region
        $region65: #{search_distribution_dag_forward.1} parent=11 // pred_check
          %p571 = pneg %p365
        $region66: #{search_distribution_dag_forward.1} parent=11 // pred_check_branch
          %573 = sbr.rel (%p571) target = $region68
        $region67: #{search_distribution_dag_forward.1} parent=11 // pred_region
          _
        $region68: #{search_distribution_dag_forward.1} parent=11 // pred_fallthru
          _
        // Predicated region
        $region69: #{search_distribution_dag_forward.1} parent=11 // pred_check
          %p574 = pneg %p386
        $region70: #{search_distribution_dag_forward.1} parent=11 // pred_check_branch
          %576 = sbr.rel (%p574) target = $region72
        $region71: #{search_distribution_dag_forward.1} parent=11 // pred_region
          _
        $region72: #{search_distribution_dag_forward.1} parent=11 // pred_fallthru
          _
        // Predicated region
        $region73: #{search_distribution_dag_forward.1} parent=11 // pred_check
          %p577 = pneg %p407
        $region74: #{search_distribution_dag_forward.1} parent=11 // pred_check_branch
          %579 = sbr.rel (%p577) target = $region76
        $region75: #{search_distribution_dag_forward.1} parent=11 // pred_region
          _
        $region76: #{search_distribution_dag_forward.1} parent=11 // pred_fallthru
          _
        // Predicated region
        $region77: #{search_distribution_dag_forward.1} parent=11 // pred_check
          %p580 = pneg %p428
        $region78: #{search_distribution_dag_forward.1} parent=11 // pred_check_branch
          %582 = sbr.rel (%p580) target = $region80
        $region79: #{search_distribution_dag_forward.1} parent=11 // pred_region
          _
        $region80: #{search_distribution_dag_forward.1} parent=11 // pred_fallthru
          _
        // Predicated region
        $region81: #{search_distribution_dag_forward.1} parent=11 // pred_check
          %p583 = pneg %p449
        $region82: #{search_distribution_dag_forward.1} parent=11 // pred_check_branch
          %585 = sbr.rel (%p583) target = $region84
        $region83: #{search_distribution_dag_forward.1} parent=11 // pred_region
          _
        $region84: #{search_distribution_dag_forward.1} parent=11 // pred_fallthru
          _
        // Predicated region
        $region85: #{search_distribution_dag_forward.1} parent=11 // pred_check
          %p586 = pneg %p470
        $region86: #{search_distribution_dag_forward.1} parent=11 // pred_check_branch
          %588 = sbr.rel (%p586) target = $region88
        $region87: #{search_distribution_dag_forward.1} parent=11 // pred_region
          _
        $region88: #{search_distribution_dag_forward.1} parent=11 // pred_fallthru
          _
        // Predicated region
        $region89: #{search_distribution_dag_forward.1} parent=11 // pred_check
          %p589 = pneg %p491
        $region90: #{search_distribution_dag_forward.1} parent=11 // pred_check_branch
          %591 = sbr.rel (%p589) target = $region92
        $region91: #{search_distribution_dag_forward.1} parent=11 // pred_region
          _
        $region92: #{search_distribution_dag_forward.1} parent=11 // pred_fallthru
          _
      $region12: #{search_distribution_dag_forward.1} parent=5 // pred_fallthru
        _
      %p592 = scmp.lt.s32.totalorder %s45, 2
      // Predicated region
      $region93: #{search_distribution_dag_forward.1} parent=5 // pred_check
        %p593 = pneg %p592
      $region94: #{search_distribution_dag_forward.1} parent=5 // pred_check_branch
        %595 = sbr.rel (%p593) target = $region96
      $region95: #{search_distribution_dag_forward.1} parent=5 // pred_region
        // Predicated region
        $region97: #{search_distribution_dag_forward.1} parent=95 // pred_check
          %p596 = pneg %p65
        $region98: #{search_distribution_dag_forward.1} parent=95 // pred_check_branch
          %598 = sbr.rel (%p596) target = $region100
        $region99: #{search_distribution_dag_forward.1} parent=95 // pred_region
          %p599 = scmp.lt.s32.totalorder %s45, 1
          %s600 = scalar_select %p599, %s45, 1
          %s601 = smul.addr %s600, 32
          %s602 = smul.addr %s601, 4
          %s603 = scalar_lea.vmem %s2, %s602
        $region100: #{search_distribution_dag_forward.1} parent=95 // pred_fallthru
          _
      $region96: #{search_distribution_dag_forward.1} parent=5 // pred_fallthru
        _
      %p604 = scmp.le.s32.totalorder 1, %s45
      %p605 = scmp.lt.s32.totalorder %s45, 3
      %p606 = pnand %p604, %p605
      %p607 = pneg %p606
      // Predicated region
      $region101: #{search_distribution_dag_forward.1} parent=5 // pred_check
        _
      $region102: #{search_distribution_dag_forward.1} parent=5 // pred_check_branch
        %609 = sbr.rel (%p606) target = $region104
      $region103: #{search_distribution_dag_forward.1} parent=5 // pred_region
        %s610 = ssub.s32 %s45, 1
        %p611 = scmp.lt.s32.totalorder %s50, 1
        %s612 = scalar_select %p611, %s50, 1
        %s613 = smul.addr %s612, 32
        %s614 = smul.addr %s613, 4
        %s615 = scalar_lea.vmem %s2, %s614
        %p616 = pneg %p71
        %p617 = pneg %p68
        %p618 = pneg %p92
        %p619 = pneg %p89
        %p620 = pneg %p113
        %p621 = pneg %p110
        %p622 = pneg %p134
        %p623 = pneg %p131
        %p624 = pneg %p155
        %p625 = pneg %p152
        %p626 = pneg %p176
        %p627 = pneg %p173
        %p628 = pneg %p197
        %p629 = pneg %p194
        %p630 = pneg %p218
        %p631 = pneg %p215
        %p632 = pneg %p239
        %p633 = pneg %p236
        %p634 = pneg %p260
        %p635 = pneg %p257
        %p636 = pneg %p281
        %p637 = pneg %p278
        %p638 = pneg %p302
        %p639 = pneg %p299
        %p640 = pneg %p323
        %p641 = pneg %p320
        %p642 = pneg %p344
        %p643 = pneg %p341
        %p644 = pneg %p365
        %p645 = pneg %p362
        %p646 = pneg %p386
        %p647 = pneg %p383
        %p648 = pneg %p407
        %p649 = pneg %p404
        %p650 = pneg %p428
        %p651 = pneg %p425
        %p652 = pneg %p449
        %p653 = pneg %p446
        %p654 = pneg %p470
        %p655 = pneg %p467
        %p656 = pneg %p491
        %p657 = pneg %p488
        %p658 = pneg %p517
        %p659 = pneg %p514
        %s660 = sand.u32 %s504, 1
        %s661 = scalar_lea.sflag [#allocation10], %s660
        %s662 = sand.u32 %s504, 1
        %s663 = scalar_lea.vmem [#allocation9], %s662
        %p664 = scmp.lt.s32.totalorder %s50, 1
        %s665 = scalar_select %p664, %s50, 1
        %s666 = smul.addr %s665, 32
        %s667 = smul.addr %s666, 4
        %s668 = scalar_lea.vmem %s2, %s667
        %v670 = vld [vmem:[%s668] sm:$0xf]
        %v671 = vld [vmem:[%s668 + $0x4] sm:$0xf]
        %v672 = vld [vmem:[%s668 + $0x8] sm:$0xf]
        %v673 = vld [vmem:[%s668 + $0xc] sm:$0xf]
        %v674 = vld [vmem:[%s668 + $0x10] sm:$0xf]
        %v675 = vld [vmem:[%s668 + $0x14] sm:$0xf]
        %v676 = vld [vmem:[%s668 + $0x18] sm:$0xf]
        %v677 = vld [vmem:[%s668 + $0x1c] sm:$0xf]
        %v678 = vld [vmem:[%s668 + $0x20] sm:$0xf]
        %v679 = vld [vmem:[%s668 + $0x24] sm:$0xf]
        %v680 = vld [vmem:[%s668 + $0x28] sm:$0xf]
        %v681 = vld [vmem:[%s668 + $0x2c] sm:$0xf]
        %v682 = vld [vmem:[%s668 + $0x30] sm:$0xf]
        %v683 = vld [vmem:[%s668 + $0x34] sm:$0xf]
        %v684 = vld [vmem:[%s668 + $0x38] sm:$0xf]
        %v685 = vld [vmem:[%s668 + $0x3c] sm:$0xf]
        %v686 = vld [vmem:[%s668 + $0x40] sm:$0xf]
        %v687 = vld [vmem:[%s668 + $0x44] sm:$0xf]
        %v688 = vld [vmem:[%s668 + $0x48] sm:$0xf]
        %v689 = vld [vmem:[%s668 + $0x4c] sm:$0xf]
        %v690 = vld [vmem:[%s668 + $0x50] sm:$0xf]
        %v691 = vld [vmem:[%s668 + $0x54] sm:$0xf]
        %v692 = vld [vmem:[%s668 + $0x58] sm:$0xf]
        %v693 = vld [vmem:[%s668 + $0x5c] sm:$0xf]
        %v694 = vld [vmem:[%s668 + $0x60] sm:$0xf]
        %v695 = vld [vmem:[%s668 + $0x64] sm:$0xf]
        %v696 = vld [vmem:[%s668 + $0x68] sm:$0xf]
        %v697 = vld [vmem:[%s668 + $0x6c] sm:$0xf]
        %v698 = vld [vmem:[%s668 + $0x70] sm:$0xf]
        %v699 = vld [vmem:[%s668 + $0x74] sm:$0xf]
        %v700 = vld [vmem:[%s668 + $0x78] sm:$0xf]
        %v701 = vld [vmem:[%s668 + $0x7c] sm:$0xf]
        %v702 = vld [vmem:[%s4] sm:$0x3]
        %v703 = vld [vmem:[%s3] sm:$0xf]
        %v704 = vld [vmem:[%s3 + $0x4] sm:$0xf]
        %v705 = vld [vmem:[%s3 + $0x8] sm:$0xf]
        %v706 = vld [vmem:[%s3 + $0xc] sm:$0xf]
        %v707 = vld [vmem:[%s3 + $0x10] sm:$0x3]
        %v740 = vunpack.c.l.b16 %v670
        %v741 = vunpack.c.l.b16 %v671
        %v742 = vunpack.c.l.b16 %v672
        %v743 = vunpack.c.l.b16 %v673
        %v744 = vunpack.c.l.b16 %v674
        %v745 = vunpack.c.l.b16 %v675
        %v746 = vunpack.c.l.b16 %v676
        %v747 = vunpack.c.l.b16 %v677
        %v748 = vunpack.c.l.b16 %v678
        %v749 = vunpack.c.l.b16 %v679
        %v750 = vunpack.c.l.b16 %v680
        %v751 = vunpack.c.l.b16 %v681
        %v752 = vunpack.c.l.b16 %v682
        %v753 = vunpack.c.l.b16 %v683
        %v754 = vunpack.c.l.b16 %v684
        %v755 = vunpack.c.l.b16 %v685
        %v756 = vunpack.c.l.b16 %v686
        %v757 = vunpack.c.l.b16 %v687
        %v758 = vunpack.c.l.b16 %v688
        %v759 = vunpack.c.l.b16 %v689
        %v760 = vunpack.c.l.b16 %v690
        %v761 = vunpack.c.l.b16 %v691
        %v762 = vunpack.c.l.b16 %v692
        %v763 = vunpack.c.l.b16 %v693
        %v764 = vunpack.c.l.b16 %v694
        %v765 = vunpack.c.l.b16 %v695
        %v766 = vunpack.c.l.b16 %v696
        %v767 = vunpack.c.l.b16 %v697
        %v768 = vunpack.c.l.b16 %v698
        %v769 = vunpack.c.l.b16 %v699
        %v770 = vunpack.c.l.b16 %v700
        %v771 = vunpack.c.l.b16 %v701
        %v772 = vpack.c.b16 %v741, %v740
        %v773 = vpack.c.b16 %v743, %v742
        %v774 = vpack.c.b16 %v745, %v744
        %v775 = vpack.c.b16 %v747, %v746
        %v776 = vpack.c.b16 %v749, %v748
        %v777 = vpack.c.b16 %v751, %v750
        %v778 = vpack.c.b16 %v753, %v752
        %v779 = vpack.c.b16 %v755, %v754
        %v780 = vpack.c.b16 %v757, %v756
        %v781 = vpack.c.b16 %v759, %v758
        %v782 = vpack.c.b16 %v761, %v760
        %v783 = vpack.c.b16 %v763, %v762
        %v784 = vpack.c.b16 %v765, %v764
        %v785 = vpack.c.b16 %v767, %v766
        %v786 = vpack.c.b16 %v769, %v768
        %v787 = vpack.c.b16 %v771, %v770
        %v793 = vunpack.c.l.b16 %v703
        %v794 = vunpack.c.l.b16 %v704
        %v795 = vunpack.c.l.b16 %v705
        %v796 = vunpack.c.l.b16 %v706
        %v797 = vunpack.c.l.b16 %v707
        %v798 = vpack.c.b16 %v794, %v793
        %v799 = vpack.c.b16 %v796, %v795
        %v800 = vpack.c.b16 %v797, %v797
        %vm803 = vcmask 293888
        %v805 = vsel %vm803, %v772, 0
        %v808 = vsel %vm803, %v773, 0
        %v811 = vsel %vm803, %v774, 0
        %v814 = vsel %vm803, %v775, 0
        %v817 = vsel %vm803, %v776, 0
        %v820 = vsel %vm803, %v777, 0
        %v823 = vsel %vm803, %v778, 0
        %v826 = vsel %vm803, %v779, 0
        %v829 = vsel %vm803, %v780, 0
        %v832 = vsel %vm803, %v781, 0
        %v835 = vsel %vm803, %v782, 0
        %v838 = vsel %vm803, %v783, 0
        %v841 = vsel %vm803, %v784, 0
        %v844 = vsel %vm803, %v785, 0
        %v847 = vsel %vm803, %v786, 0
        %v850 = vsel %vm803, %v787, 0
        %vm852 = vcmask 1041408
        %v854 = vsel %vm852, %v800, 0
        %856 = vmatpush.bf16.msra.mxu0 0
        %857 = vmatpush.bf16.msra.mxu0 0
        %858 = vmatpush.bf16.msra.mxu0 0
        %859 = vmatpush.bf16.msra.mxu0 0
        %860 = vmatpush.bf16.msra.mxu0 0
        %861 = vmatpush.bf16.msra.mxu0 %v854
        %862 = vmatpush.bf16.msra.mxu0 %v799
        %863 = vmatpush.bf16.msra.mxu0 %v798
        %864 = vmatmul.bf16.gmra.mxu0 %v805
        %v865 = vpop.f32.mrf.mxu0
        %v866 = vadd.f32 0.0, %v865
        %v867 = vpop.f32.mrf.mxu0
        %v868 = vadd.f32 0.0, %v867
        %869 = vmatmul.bf16.gmra.mxu0 %v808
        %v870 = vpop.f32.mrf.mxu0
        %v871 = vadd.f32 0.0, %v870
        %v872 = vpop.f32.mrf.mxu0
        %v873 = vadd.f32 0.0, %v872
        %874 = vmatmul.bf16.gmra.mxu0 %v811
        %v875 = vpop.f32.mrf.mxu0
        %v876 = vadd.f32 0.0, %v875
        %v877 = vpop.f32.mrf.mxu0
        %v878 = vadd.f32 0.0, %v877
        %879 = vmatmul.bf16.gmra.mxu0 %v814
        %v880 = vpop.f32.mrf.mxu0
        %v881 = vadd.f32 0.0, %v880
        %v882 = vpop.f32.mrf.mxu0
        %v883 = vadd.f32 0.0, %v882
        %884 = vmatmul.bf16.gmra.mxu0 %v817
        %v885 = vpop.f32.mrf.mxu0
        %v886 = vadd.f32 0.0, %v885
        %v887 = vpop.f32.mrf.mxu0
        %v888 = vadd.f32 0.0, %v887
        %889 = vmatmul.bf16.gmra.mxu0 %v820
        %v890 = vpop.f32.mrf.mxu0
        %v891 = vadd.f32 0.0, %v890
        %v892 = vpop.f32.mrf.mxu0
        %v893 = vadd.f32 0.0, %v892
        %894 = vmatmul.bf16.gmra.mxu0 %v823
        %v895 = vpop.f32.mrf.mxu0
        %v896 = vadd.f32 0.0, %v895
        %v897 = vpop.f32.mrf.mxu0
        %v898 = vadd.f32 0.0, %v897
        %899 = vmatmul.bf16.gmra.mxu0 %v826
        %v900 = vpop.f32.mrf.mxu0
        %v901 = vadd.f32 0.0, %v900
        %v902 = vpop.f32.mrf.mxu0
        %v903 = vadd.f32 0.0, %v902
        %904 = vmatmul.bf16.gmra.mxu0 %v829
        %v905 = vpop.f32.mrf.mxu0
        %v906 = vadd.f32 0.0, %v905
        %v907 = vpop.f32.mrf.mxu0
        %v908 = vadd.f32 0.0, %v907
        %909 = vmatmul.bf16.gmra.mxu0 %v832
        %v910 = vpop.f32.mrf.mxu0
        %v911 = vadd.f32 0.0, %v910
        %v912 = vpop.f32.mrf.mxu0
        %v913 = vadd.f32 0.0, %v912
        %914 = vmatmul.bf16.gmra.mxu0 %v835
        %v915 = vpop.f32.mrf.mxu0
        %v916 = vadd.f32 0.0, %v915
        %v917 = vpop.f32.mrf.mxu0
        %v918 = vadd.f32 0.0, %v917
        %919 = vmatmul.bf16.gmra.mxu0 %v838
        %v920 = vpop.f32.mrf.mxu0
        %v921 = vadd.f32 0.0, %v920
        %v922 = vpop.f32.mrf.mxu0
        %v923 = vadd.f32 0.0, %v922
        %924 = vmatmul.bf16.gmra.mxu0 %v841
        %v925 = vpop.f32.mrf.mxu0
        %v926 = vadd.f32 0.0, %v925
        %v927 = vpop.f32.mrf.mxu0
        %v928 = vadd.f32 0.0, %v927
        %929 = vmatmul.bf16.gmra.mxu0 %v844
        %v930 = vpop.f32.mrf.mxu0
        %v931 = vadd.f32 0.0, %v930
        %v932 = vpop.f32.mrf.mxu0
        %v933 = vadd.f32 0.0, %v932
        %934 = vmatmul.bf16.gmra.mxu0 %v847
        %v935 = vpop.f32.mrf.mxu0
        %v936 = vadd.f32 0.0, %v935
        %v937 = vpop.f32.mrf.mxu0
        %v938 = vadd.f32 0.0, %v937
        %939 = vmatmul.bf16.gmra.mxu0 %v850
        %v940 = vpop.f32.mrf.mxu0
        %v941 = vadd.f32 0.0, %v940
        %v942 = vpop.f32.mrf.mxu0
        %v943 = vadd.f32 0.0, %v942
        %944 = vdwg.mxu0
        %v945 = vperm.slane %v702, 0
        %v946 = vmul.f32 %v866, %v945
        %v947 = vmul.f32 %v868, %v945
        %v948 = vmul.f32 %v871, %v945
        %v949 = vmul.f32 %v873, %v945
        %v950 = vmul.f32 %v876, %v945
        %v951 = vmul.f32 %v878, %v945
        %v952 = vmul.f32 %v881, %v945
        %v953 = vmul.f32 %v883, %v945
        %v954 = vmul.f32 %v886, %v945
        %v955 = vmul.f32 %v888, %v945
        %v956 = vmul.f32 %v891, %v945
        %v957 = vmul.f32 %v893, %v945
        %v958 = vmul.f32 %v896, %v945
        %v959 = vmul.f32 %v898, %v945
        %v960 = vmul.f32 %v901, %v945
        %v961 = vmul.f32 %v903, %v945
        %v962 = vmul.f32 %v906, %v945
        %v963 = vmul.f32 %v908, %v945
        %v964 = vmul.f32 %v911, %v945
        %v965 = vmul.f32 %v913, %v945
        %v966 = vmul.f32 %v916, %v945
        %v967 = vmul.f32 %v918, %v945
        %v968 = vmul.f32 %v921, %v945
        %v969 = vmul.f32 %v923, %v945
        %v970 = vmul.f32 %v926, %v945
        %v971 = vmul.f32 %v928, %v945
        %v972 = vmul.f32 %v931, %v945
        %v973 = vmul.f32 %v933, %v945
        %v974 = vmul.f32 %v936, %v945
        %v975 = vmul.f32 %v938, %v945
        %v976 = vmul.f32 %v941, %v945
        %v977 = vmul.f32 %v943, %v945
        %v978 = vperm.slane %v702, 1
        %v979 = vadd.f32 %v946, %v978
        %v980 = vadd.f32 %v947, %v978
        %v981 = vadd.f32 %v948, %v978
        %v982 = vadd.f32 %v949, %v978
        %v983 = vadd.f32 %v950, %v978
        %v984 = vadd.f32 %v951, %v978
        %v985 = vadd.f32 %v952, %v978
        %v986 = vadd.f32 %v953, %v978
        %v987 = vadd.f32 %v954, %v978
        %v988 = vadd.f32 %v955, %v978
        %v989 = vadd.f32 %v956, %v978
        %v990 = vadd.f32 %v957, %v978
        %v991 = vadd.f32 %v958, %v978
        %v992 = vadd.f32 %v959, %v978
        %v993 = vadd.f32 %v960, %v978
        %v994 = vadd.f32 %v961, %v978
        %v995 = vadd.f32 %v962, %v978
        %v996 = vadd.f32 %v963, %v978
        %v997 = vadd.f32 %v964, %v978
        %v998 = vadd.f32 %v965, %v978
        %v999 = vadd.f32 %v966, %v978
        %v1000 = vadd.f32 %v967, %v978
        %v1001 = vadd.f32 %v968, %v978
        %v1002 = vadd.f32 %v969, %v978
        %v1003 = vadd.f32 %v970, %v978
        %v1004 = vadd.f32 %v971, %v978
        %v1005 = vadd.f32 %v972, %v978
        %v1006 = vadd.f32 %v973, %v978
        %v1007 = vadd.f32 %v974, %v978
        %v1008 = vadd.f32 %v975, %v978
        %v1009 = vadd.f32 %v976, %v978
        %v1010 = vadd.f32 %v977, %v978
        %s1011 = sld [smem:[#allocation7]]
        %s1012 = sld [smem:[#allocation7 + $0x1]]
        %s1013 = sld [smem:[#allocation7 + $0x3]]
        %s1014 = sld [smem:[#allocation7 + $0x4]]
        %s1015 = sld [smem:[#allocation7 + $0x5]]
        %s1016 = sld [smem:[#allocation8]]
        %s1017 = sld [smem:[#allocation8 + $0x1]]
        %v1018 = vld [vmem:[%s6] sm:$0x3]
        %v1019 = vmax.f32 %v979, 0.0
        %v1020 = vmax.f32 %v980, 0.0
        %v1021 = vmax.f32 %v981, 0.0
        %v1022 = vmax.f32 %v982, 0.0
        %v1023 = vmax.f32 %v983, 0.0
        %v1024 = vmax.f32 %v984, 0.0
        %v1025 = vmax.f32 %v985, 0.0
        %v1026 = vmax.f32 %v986, 0.0
        %v1027 = vmax.f32 %v987, 0.0
        %v1028 = vmax.f32 %v988, 0.0
        %v1029 = vmax.f32 %v989, 0.0
        %v1030 = vmax.f32 %v990, 0.0
        %v1031 = vmax.f32 %v991, 0.0
        %v1032 = vmax.f32 %v992, 0.0
        %v1033 = vmax.f32 %v993, 0.0
        %v1034 = vmax.f32 %v994, 0.0
        %v1035 = vmax.f32 %v995, 0.0
        %v1036 = vmax.f32 %v996, 0.0
        %v1037 = vmax.f32 %v997, 0.0
        %v1038 = vmax.f32 %v998, 0.0
        %v1039 = vmax.f32 %v999, 0.0
        %v1040 = vmax.f32 %v1000, 0.0
        %v1041 = vmax.f32 %v1001, 0.0
        %v1042 = vmax.f32 %v1002, 0.0
        %v1043 = vmax.f32 %v1003, 0.0
        %v1044 = vmax.f32 %v1004, 0.0
        %v1045 = vmax.f32 %v1005, 0.0
        %v1046 = vmax.f32 %v1006, 0.0
        %v1047 = vmax.f32 %v1007, 0.0
        %v1048 = vmax.f32 %v1008, 0.0
        %v1049 = vmax.f32 %v1009, 0.0
        %v1050 = vmax.f32 %v1010, 0.0
        %v1051 = vpack.c.bf16 %v1020, %v1019
        %v1052 = vpack.c.bf16 %v1022, %v1021
        %v1053 = vpack.c.bf16 %v1024, %v1023
        %v1054 = vpack.c.bf16 %v1026, %v1025
        %v1055 = vpack.c.bf16 %v1028, %v1027
        %v1056 = vpack.c.bf16 %v1030, %v1029
        %v1057 = vpack.c.bf16 %v1032, %v1031
        %v1058 = vpack.c.bf16 %v1034, %v1033
        %v1059 = vpack.c.bf16 %v1036, %v1035
        %v1060 = vpack.c.bf16 %v1038, %v1037
        %v1061 = vpack.c.bf16 %v1040, %v1039
        %v1062 = vpack.c.bf16 %v1042, %v1041
        %v1063 = vpack.c.bf16 %v1044, %v1043
        %v1064 = vpack.c.bf16 %v1046, %v1045
        %v1065 = vpack.c.bf16 %v1048, %v1047
        %v1066 = vpack.c.bf16 %v1050, %v1049
        %v1067 = vld [vmem:[%s5] sm:$0xf]
        %v1068 = vld [vmem:[%s5 + $0x4] sm:$0x3]
        %v1071 = vunpack.c.l.b16 %v1067
        %v1072 = vunpack.c.l.b16 %v1068
        %v1073 = vpack.c.b16 %v1072, %v1071
        %vm1074 = vcmask 97280
        %v1076 = vsel %vm1074, %v1051, 0
        %v1079 = vsel %vm1074, %v1052, 0
        %v1082 = vsel %vm1074, %v1053, 0
        %v1085 = vsel %vm1074, %v1054, 0
        %v1088 = vsel %vm1074, %v1055, 0
        %v1091 = vsel %vm1074, %v1056, 0
        %v1094 = vsel %vm1074, %v1057, 0
        %v1097 = vsel %vm1074, %v1058, 0
        %v1100 = vsel %vm1074, %v1059, 0
        %v1103 = vsel %vm1074, %v1060, 0
        %v1106 = vsel %vm1074, %v1061, 0
        %v1109 = vsel %vm1074, %v1062, 0
        %v1112 = vsel %vm1074, %v1063, 0
        %v1115 = vsel %vm1074, %v1064, 0
        %v1118 = vsel %vm1074, %v1065, 0
        %v1121 = vsel %vm1074, %v1066, 0
        %vm1123 = vcmask 1045504
        %v1125 = vsel %vm1123, %v1073, 0
        %1127 = vmatpush.bf16.msra.mxu0 0
        %1128 = vmatpush.bf16.msra.mxu0 0
        %1129 = vmatpush.bf16.msra.mxu0 0
        %1130 = vmatpush.bf16.msra.mxu0 0
        %1131 = vmatpush.bf16.msra.mxu0 0
        %1132 = vmatpush.bf16.msra.mxu0 0
        %1133 = vmatpush.bf16.msra.mxu0 0
        %1134 = vmatpush.bf16.msra.mxu0 %v1125
        %1135 = vmatmul.bf16.gmra.mxu0 %v1076
        %v1136 = vpop.f32.mrf.mxu0
        %v1137 = vadd.f32 0.0, %v1136
        %v1138 = vpop.f32.mrf.mxu0
        %v1139 = vadd.f32 0.0, %v1138
        %1140 = vmatmul.bf16.gmra.mxu0 %v1079
        %v1141 = vpop.f32.mrf.mxu0
        %v1142 = vadd.f32 0.0, %v1141
        %v1143 = vpop.f32.mrf.mxu0
        %v1144 = vadd.f32 0.0, %v1143
        %1145 = vmatmul.bf16.gmra.mxu0 %v1082
        %v1146 = vpop.f32.mrf.mxu0
        %v1147 = vadd.f32 0.0, %v1146
        %v1148 = vpop.f32.mrf.mxu0
        %v1149 = vadd.f32 0.0, %v1148
        %1150 = vmatmul.bf16.gmra.mxu0 %v1085
        %v1151 = vpop.f32.mrf.mxu0
        %v1152 = vadd.f32 0.0, %v1151
        %v1153 = vpop.f32.mrf.mxu0
        %v1154 = vadd.f32 0.0, %v1153
        %1155 = vmatmul.bf16.gmra.mxu0 %v1088
        %v1156 = vpop.f32.mrf.mxu0
        %v1157 = vadd.f32 0.0, %v1156
        %v1158 = vpop.f32.mrf.mxu0
        %v1159 = vadd.f32 0.0, %v1158
        %1160 = vmatmul.bf16.gmra.mxu0 %v1091
        %v1161 = vpop.f32.mrf.mxu0
        %v1162 = vadd.f32 0.0, %v1161
        %v1163 = vpop.f32.mrf.mxu0
        %v1164 = vadd.f32 0.0, %v1163
        %1165 = vmatmul.bf16.gmra.mxu0 %v1094
        %v1166 = vpop.f32.mrf.mxu0
        %v1167 = vadd.f32 0.0, %v1166
        %v1168 = vpop.f32.mrf.mxu0
        %v1169 = vadd.f32 0.0, %v1168
        %1170 = vmatmul.bf16.gmra.mxu0 %v1097
        %v1171 = vpop.f32.mrf.mxu0
        %v1172 = vadd.f32 0.0, %v1171
        %v1173 = vpop.f32.mrf.mxu0
        %v1174 = vadd.f32 0.0, %v1173
        %1175 = vmatmul.bf16.gmra.mxu0 %v1100
        %v1176 = vpop.f32.mrf.mxu0
        %v1177 = vadd.f32 0.0, %v1176
        %v1178 = vpop.f32.mrf.mxu0
        %v1179 = vadd.f32 0.0, %v1178
        %1180 = vmatmul.bf16.gmra.mxu0 %v1103
        %v1181 = vpop.f32.mrf.mxu0
        %v1182 = vadd.f32 0.0, %v1181
        %v1183 = vpop.f32.mrf.mxu0
        %v1184 = vadd.f32 0.0, %v1183
        %1185 = vmatmul.bf16.gmra.mxu0 %v1106
        %v1186 = vpop.f32.mrf.mxu0
        %v1187 = vadd.f32 0.0, %v1186
        %v1188 = vpop.f32.mrf.mxu0
        %v1189 = vadd.f32 0.0, %v1188
        %1190 = vmatmul.bf16.gmra.mxu0 %v1109
        %v1191 = vpop.f32.mrf.mxu0
        %v1192 = vadd.f32 0.0, %v1191
        %v1193 = vpop.f32.mrf.mxu0
        %v1194 = vadd.f32 0.0, %v1193
        %1195 = vmatmul.bf16.gmra.mxu0 %v1112
        %v1196 = vpop.f32.mrf.mxu0
        %v1197 = vadd.f32 0.0, %v1196
        %v1198 = vpop.f32.mrf.mxu0
        %v1199 = vadd.f32 0.0, %v1198
        %1200 = vmatmul.bf16.gmra.mxu0 %v1115
        %v1201 = vpop.f32.mrf.mxu0
        %v1202 = vadd.f32 0.0, %v1201
        %v1203 = vpop.f32.mrf.mxu0
        %v1204 = vadd.f32 0.0, %v1203
        %1205 = vmatmul.bf16.gmra.mxu0 %v1118
        %v1206 = vpop.f32.mrf.mxu0
        %v1207 = vadd.f32 0.0, %v1206
        %v1208 = vpop.f32.mrf.mxu0
        %v1209 = vadd.f32 0.0, %v1208
        %1210 = vmatmul.bf16.gmra.mxu0 %v1121
        %v1211 = vpop.f32.mrf.mxu0
        %v1212 = vadd.f32 0.0, %v1211
        %v1213 = vpop.f32.mrf.mxu0
        %v1214 = vadd.f32 0.0, %v1213
        %1215 = vdwg.mxu0
        %v1216 = vperm.slane %v1018, 0
        %v1217 = vmul.f32 %v1137, %v1216
        %v1218 = vmul.f32 %v1139, %v1216
        %v1219 = vmul.f32 %v1142, %v1216
        %v1220 = vmul.f32 %v1144, %v1216
        %v1221 = vmul.f32 %v1147, %v1216
        %v1222 = vmul.f32 %v1149, %v1216
        %v1223 = vmul.f32 %v1152, %v1216
        %v1224 = vmul.f32 %v1154, %v1216
        %v1225 = vmul.f32 %v1157, %v1216
        %v1226 = vmul.f32 %v1159, %v1216
        %v1227 = vmul.f32 %v1162, %v1216
        %v1228 = vmul.f32 %v1164, %v1216
        %v1229 = vmul.f32 %v1167, %v1216
        %v1230 = vmul.f32 %v1169, %v1216
        %v1231 = vmul.f32 %v1172, %v1216
        %v1232 = vmul.f32 %v1174, %v1216
        %v1233 = vmul.f32 %v1177, %v1216
        %v1234 = vmul.f32 %v1179, %v1216
        %v1235 = vmul.f32 %v1182, %v1216
        %v1236 = vmul.f32 %v1184, %v1216
        %v1237 = vmul.f32 %v1187, %v1216
        %v1238 = vmul.f32 %v1189, %v1216
        %v1239 = vmul.f32 %v1192, %v1216
        %v1240 = vmul.f32 %v1194, %v1216
        %v1241 = vmul.f32 %v1197, %v1216
        %v1242 = vmul.f32 %v1199, %v1216
        %v1243 = vmul.f32 %v1202, %v1216
        %v1244 = vmul.f32 %v1204, %v1216
        %v1245 = vmul.f32 %v1207, %v1216
        %v1246 = vmul.f32 %v1209, %v1216
        %v1247 = vmul.f32 %v1212, %v1216
        %v1248 = vmul.f32 %v1214, %v1216
        %v1249 = vperm.slane %v1018, 1
        %v1250 = vadd.f32 %v1217, %v1249
        %v1251 = vadd.f32 %v1218, %v1249
        %v1252 = vadd.f32 %v1219, %v1249
        %v1253 = vadd.f32 %v1220, %v1249
        %v1254 = vadd.f32 %v1221, %v1249
        %v1255 = vadd.f32 %v1222, %v1249
        %v1256 = vadd.f32 %v1223, %v1249
        %v1257 = vadd.f32 %v1224, %v1249
        %v1258 = vadd.f32 %v1225, %v1249
        %v1259 = vadd.f32 %v1226, %v1249
        %v1260 = vadd.f32 %v1227, %v1249
        %v1261 = vadd.f32 %v1228, %v1249
        %v1262 = vadd.f32 %v1229, %v1249
        %v1263 = vadd.f32 %v1230, %v1249
        %v1264 = vadd.f32 %v1231, %v1249
        %v1265 = vadd.f32 %v1232, %v1249
        %v1266 = vadd.f32 %v1233, %v1249
        %v1267 = vadd.f32 %v1234, %v1249
        %v1268 = vadd.f32 %v1235, %v1249
        %v1269 = vadd.f32 %v1236, %v1249
        %v1270 = vadd.f32 %v1237, %v1249
        %v1271 = vadd.f32 %v1238, %v1249
        %v1272 = vadd.f32 %v1239, %v1249
        %v1273 = vadd.f32 %v1240, %v1249
        %v1274 = vadd.f32 %v1241, %v1249
        %v1275 = vadd.f32 %v1242, %v1249
        %v1276 = vadd.f32 %v1243, %v1249
        %v1277 = vadd.f32 %v1244, %v1249
        %v1278 = vadd.f32 %v1245, %v1249
        %v1279 = vadd.f32 %v1246, %v1249
        %v1280 = vadd.f32 %v1247, %v1249
        %v1281 = vadd.f32 %v1248, %v1249
        %v1282 = vstv %s1011
        %v1283 = vmul.f32 %v1282, %v1250
        %v1284 = vmul.f32 %v1282, %v1251
        %v1285 = vmul.f32 %v1282, %v1252
        %v1286 = vmul.f32 %v1282, %v1253
        %v1287 = vmul.f32 %v1282, %v1254
        %v1288 = vmul.f32 %v1282, %v1255
        %v1289 = vmul.f32 %v1282, %v1256
        %v1290 = vmul.f32 %v1282, %v1257
        %v1291 = vmul.f32 %v1282, %v1258
        %v1292 = vmul.f32 %v1282, %v1259
        %v1293 = vmul.f32 %v1282, %v1260
        %v1294 = vmul.f32 %v1282, %v1261
        %v1295 = vmul.f32 %v1282, %v1262
        %v1296 = vmul.f32 %v1282, %v1263
        %v1297 = vmul.f32 %v1282, %v1264
        %v1298 = vmul.f32 %v1282, %v1265
        %v1299 = vmul.f32 %v1282, %v1266
        %v1300 = vmul.f32 %v1282, %v1267
        %v1301 = vmul.f32 %v1282, %v1268
        %v1302 = vmul.f32 %v1282, %v1269
        %v1303 = vmul.f32 %v1282, %v1270
        %v1304 = vmul.f32 %v1282, %v1271
        %v1305 = vmul.f32 %v1282, %v1272
        %v1306 = vmul.f32 %v1282, %v1273
        %v1307 = vmul.f32 %v1282, %v1274
        %v1308 = vmul.f32 %v1282, %v1275
        %v1309 = vmul.f32 %v1282, %v1276
        %v1310 = vmul.f32 %v1282, %v1277
        %v1311 = vmul.f32 %v1282, %v1278
        %v1312 = vmul.f32 %v1282, %v1279
        %v1313 = vmul.f32 %v1282, %v1280
        %v1314 = vmul.f32 %v1282, %v1281
        %v1315 = vstv %s1012
        %v1316 = vmul.f32 %v1315, %v1250
        %v1317 = vmul.f32 %v1315, %v1251
        %v1318 = vmul.f32 %v1315, %v1252
        %v1319 = vmul.f32 %v1315, %v1253
        %v1320 = vmul.f32 %v1315, %v1254
        %v1321 = vmul.f32 %v1315, %v1255
        %v1322 = vmul.f32 %v1315, %v1256
        %v1323 = vmul.f32 %v1315, %v1257
        %v1324 = vmul.f32 %v1315, %v1258
        %v1325 = vmul.f32 %v1315, %v1259
        %v1326 = vmul.f32 %v1315, %v1260
        %v1327 = vmul.f32 %v1315, %v1261
        %v1328 = vmul.f32 %v1315, %v1262
        %v1329 = vmul.f32 %v1315, %v1263
        %v1330 = vmul.f32 %v1315, %v1264
        %v1331 = vmul.f32 %v1315, %v1265
        %v1332 = vmul.f32 %v1315, %v1266
        %v1333 = vmul.f32 %v1315, %v1267
        %v1334 = vmul.f32 %v1315, %v1268
        %v1335 = vmul.f32 %v1315, %v1269
        %v1336 = vmul.f32 %v1315, %v1270
        %v1337 = vmul.f32 %v1315, %v1271
        %v1338 = vmul.f32 %v1315, %v1272
        %v1339 = vmul.f32 %v1315, %v1273
        %v1340 = vmul.f32 %v1315, %v1274
        %v1341 = vmul.f32 %v1315, %v1275
        %v1342 = vmul.f32 %v1315, %v1276
        %v1343 = vmul.f32 %v1315, %v1277
        %v1344 = vmul.f32 %v1315, %v1278
        %v1345 = vmul.f32 %v1315, %v1279
        %v1346 = vmul.f32 %v1315, %v1280
        %v1347 = vmul.f32 %v1315, %v1281
        %1380 = vrot.lane.b32.xlu0 %v1316, 112
        %v1381 = vpop.permute.xlu0 %1380
        %1382 = vrot.lane.b32.xlu0 %v1317, 112
        %v1383 = vpop.permute.xlu0 %1382
        %1384 = vrot.lane.b32.xlu0 %v1318, 112
        %v1385 = vpop.permute.xlu0 %1384
        %1386 = vrot.lane.b32.xlu0 %v1319, 112
        %v1387 = vpop.permute.xlu0 %1386
        %1388 = vrot.lane.b32.xlu0 %v1320, 112
        %v1389 = vpop.permute.xlu0 %1388
        %1390 = vrot.lane.b32.xlu0 %v1321, 112
        %v1391 = vpop.permute.xlu0 %1390
        %1392 = vrot.lane.b32.xlu0 %v1322, 112
        %v1393 = vpop.permute.xlu0 %1392
        %1394 = vrot.lane.b32.xlu0 %v1323, 112
        %v1395 = vpop.permute.xlu0 %1394
        %1396 = vrot.lane.b32.xlu0 %v1324, 112
        %v1397 = vpop.permute.xlu0 %1396
        %1398 = vrot.lane.b32.xlu0 %v1325, 112
        %v1399 = vpop.permute.xlu0 %1398
        %1400 = vrot.lane.b32.xlu0 %v1326, 112
        %v1401 = vpop.permute.xlu0 %1400
        %1402 = vrot.lane.b32.xlu0 %v1327, 112
        %v1403 = vpop.permute.xlu0 %1402
        %1404 = vrot.lane.b32.xlu0 %v1328, 112
        %v1405 = vpop.permute.xlu0 %1404
        %1406 = vrot.lane.b32.xlu0 %v1329, 112
        %v1407 = vpop.permute.xlu0 %1406
        %1408 = vrot.lane.b32.xlu0 %v1330, 112
        %v1409 = vpop.permute.xlu0 %1408
        %1410 = vrot.lane.b32.xlu0 %v1331, 112
        %v1411 = vpop.permute.xlu0 %1410
        %1412 = vrot.lane.b32.xlu0 %v1332, 112
        %v1413 = vpop.permute.xlu0 %1412
        %1414 = vrot.lane.b32.xlu0 %v1333, 112
        %v1415 = vpop.permute.xlu0 %1414
        %1416 = vrot.lane.b32.xlu0 %v1334, 112
        %v1417 = vpop.permute.xlu0 %1416
        %1418 = vrot.lane.b32.xlu0 %v1335, 112
        %v1419 = vpop.permute.xlu0 %1418
        %1420 = vrot.lane.b32.xlu0 %v1336, 112
        %v1421 = vpop.permute.xlu0 %1420
        %1422 = vrot.lane.b32.xlu0 %v1337, 112
        %v1423 = vpop.permute.xlu0 %1422
        %1424 = vrot.lane.b32.xlu0 %v1338, 112
        %v1425 = vpop.permute.xlu0 %1424
        %1426 = vrot.lane.b32.xlu0 %v1339, 112
        %v1427 = vpop.permute.xlu0 %1426
        %1428 = vrot.lane.b32.xlu0 %v1340, 112
        %v1429 = vpop.permute.xlu0 %1428
        %1430 = vrot.lane.b32.xlu0 %v1341, 112
        %v1431 = vpop.permute.xlu0 %1430
        %1432 = vrot.lane.b32.xlu0 %v1342, 112
        %v1433 = vpop.permute.xlu0 %1432
        %1434 = vrot.lane.b32.xlu0 %v1343, 112
        %v1435 = vpop.permute.xlu0 %1434
        %1436 = vrot.lane.b32.xlu0 %v1344, 112
        %v1437 = vpop.permute.xlu0 %1436
        %1438 = vrot.lane.b32.xlu0 %v1345, 112
        %v1439 = vpop.permute.xlu0 %1438
        %1440 = vrot.lane.b32.xlu0 %v1346, 112
        %v1441 = vpop.permute.xlu0 %1440
        %1442 = vrot.lane.b32.xlu0 %v1347, 112
        %v1443 = vpop.permute.xlu0 %1442
        %v1476 = vadd.f32 %v1283, %v1381
        %v1477 = vadd.f32 %v1284, %v1383
        %v1478 = vadd.f32 %v1285, %v1385
        %v1479 = vadd.f32 %v1286, %v1387
        %v1480 = vadd.f32 %v1287, %v1389
        %v1481 = vadd.f32 %v1288, %v1391
        %v1482 = vadd.f32 %v1289, %v1393
        %v1483 = vadd.f32 %v1290, %v1395
        %v1484 = vadd.f32 %v1291, %v1397
        %v1485 = vadd.f32 %v1292, %v1399
        %v1486 = vadd.f32 %v1293, %v1401
        %v1487 = vadd.f32 %v1294, %v1403
        %v1488 = vadd.f32 %v1295, %v1405
        %v1489 = vadd.f32 %v1296, %v1407
        %v1490 = vadd.f32 %v1297, %v1409
        %v1491 = vadd.f32 %v1298, %v1411
        %v1492 = vadd.f32 %v1299, %v1413
        %v1493 = vadd.f32 %v1300, %v1415
        %v1494 = vadd.f32 %v1301, %v1417
        %v1495 = vadd.f32 %v1302, %v1419
        %v1496 = vadd.f32 %v1303, %v1421
        %v1497 = vadd.f32 %v1304, %v1423
        %v1498 = vadd.f32 %v1305, %v1425
        %v1499 = vadd.f32 %v1306, %v1427
        %v1500 = vadd.f32 %v1307, %v1429
        %v1501 = vadd.f32 %v1308, %v1431
        %v1502 = vadd.f32 %v1309, %v1433
        %v1503 = vadd.f32 %v1310, %v1435
        %v1504 = vadd.f32 %v1311, %v1437
        %v1505 = vadd.f32 %v1312, %v1439
        %v1506 = vadd.f32 %v1313, %v1441
        %v1507 = vadd.f32 %v1314, %v1443
        %v1508 = vld [vmem:[%s8] sm:$0x3]
        %v1509 = vmax.f32 %v1476, 0.0
        %v1510 = vmax.f32 %v1477, 0.0
        %v1511 = vmax.f32 %v1478, 0.0
        %v1512 = vmax.f32 %v1479, 0.0
        %v1513 = vmax.f32 %v1480, 0.0
        %v1514 = vmax.f32 %v1481, 0.0
        %v1515 = vmax.f32 %v1482, 0.0
        %v1516 = vmax.f32 %v1483, 0.0
        %v1517 = vmax.f32 %v1484, 0.0
        %v1518 = vmax.f32 %v1485, 0.0
        %v1519 = vmax.f32 %v1486, 0.0
        %v1520 = vmax.f32 %v1487, 0.0
        %v1521 = vmax.f32 %v1488, 0.0
        %v1522 = vmax.f32 %v1489, 0.0
        %v1523 = vmax.f32 %v1490, 0.0
        %v1524 = vmax.f32 %v1491, 0.0
        %v1525 = vmax.f32 %v1492, 0.0
        %v1526 = vmax.f32 %v1493, 0.0
        %v1527 = vmax.f32 %v1494, 0.0
        %v1528 = vmax.f32 %v1495, 0.0
        %v1529 = vmax.f32 %v1496, 0.0
        %v1530 = vmax.f32 %v1497, 0.0
        %v1531 = vmax.f32 %v1498, 0.0
        %v1532 = vmax.f32 %v1499, 0.0
        %v1533 = vmax.f32 %v1500, 0.0
        %v1534 = vmax.f32 %v1501, 0.0
        %v1535 = vmax.f32 %v1502, 0.0
        %v1536 = vmax.f32 %v1503, 0.0
        %v1537 = vmax.f32 %v1504, 0.0
        %v1538 = vmax.f32 %v1505, 0.0
        %v1539 = vmax.f32 %v1506, 0.0
        %v1540 = vmax.f32 %v1507, 0.0
        %v1541 = vpack.c.bf16 %v1510, %v1509
        %v1542 = vpack.c.bf16 %v1512, %v1511
        %v1543 = vpack.c.bf16 %v1514, %v1513
        %v1544 = vpack.c.bf16 %v1516, %v1515
        %v1545 = vpack.c.bf16 %v1518, %v1517
        %v1546 = vpack.c.bf16 %v1520, %v1519
        %v1547 = vpack.c.bf16 %v1522, %v1521
        %v1548 = vpack.c.bf16 %v1524, %v1523
        %v1549 = vpack.c.bf16 %v1526, %v1525
        %v1550 = vpack.c.bf16 %v1528, %v1527
        %v1551 = vpack.c.bf16 %v1530, %v1529
        %v1552 = vpack.c.bf16 %v1532, %v1531
        %v1553 = vpack.c.bf16 %v1534, %v1533
        %v1554 = vpack.c.bf16 %v1536, %v1535
        %v1555 = vpack.c.bf16 %v1538, %v1537
        %v1556 = vpack.c.bf16 %v1540, %v1539
        %v1557 = vld [vmem:[%s7] sm:$0xf]
        %v1558 = vld [vmem:[%s7 + $0x4] sm:$0xf]
        %v1561 = vunpack.c.l.b16 %v1557
        %v1562 = vunpack.c.l.b16 %v1558
        %v1563 = vpack.c.b16 %v1562, %v1561
        %vm1565 = vcmask 130048
        %v1567 = vsel %vm1565, %v1541, 0
        %v1570 = vsel %vm1565, %v1542, 0
        %v1573 = vsel %vm1565, %v1543, 0
        %v1576 = vsel %vm1565, %v1544, 0
        %v1579 = vsel %vm1565, %v1545, 0
        %v1582 = vsel %vm1565, %v1546, 0
        %v1585 = vsel %vm1565, %v1547, 0
        %v1588 = vsel %vm1565, %v1548, 0
        %v1591 = vsel %vm1565, %v1549, 0
        %v1594 = vsel %vm1565, %v1550, 0
        %v1597 = vsel %vm1565, %v1551, 0
        %v1600 = vsel %vm1565, %v1552, 0
        %v1603 = vsel %vm1565, %v1553, 0
        %v1606 = vsel %vm1565, %v1554, 0
        %v1609 = vsel %vm1565, %v1555, 0
        %v1612 = vsel %vm1565, %v1556, 0
        %1614 = vmatpush.bf16.msra.mxu0 0
        %1615 = vmatpush.bf16.msra.mxu0 0
        %1616 = vmatpush.bf16.msra.mxu0 0
        %1617 = vmatpush.bf16.msra.mxu0 0
        %1618 = vmatpush.bf16.msra.mxu0 0
        %1619 = vmatpush.bf16.msra.mxu0 0
        %1620 = vmatpush.bf16.msra.mxu0 0
        %1621 = vmatpush.bf16.msra.mxu0 %v1563
        %1622 = vmatmul.bf16.gmra.mxu0 %v1567
        %v1623 = vpop.f32.mrf.mxu0
        %v1624 = vadd.f32 0.0, %v1623
        %v1625 = vpop.f32.mrf.mxu0
        %v1626 = vadd.f32 0.0, %v1625
        %1627 = vmatmul.bf16.gmra.mxu0 %v1570
        %v1628 = vpop.f32.mrf.mxu0
        %v1629 = vadd.f32 0.0, %v1628
        %v1630 = vpop.f32.mrf.mxu0
        %v1631 = vadd.f32 0.0, %v1630
        %1632 = vmatmul.bf16.gmra.mxu0 %v1573
        %v1633 = vpop.f32.mrf.mxu0
        %v1634 = vadd.f32 0.0, %v1633
        %v1635 = vpop.f32.mrf.mxu0
        %v1636 = vadd.f32 0.0, %v1635
        %1637 = vmatmul.bf16.gmra.mxu0 %v1576
        %v1638 = vpop.f32.mrf.mxu0
        %v1639 = vadd.f32 0.0, %v1638
        %v1640 = vpop.f32.mrf.mxu0
        %v1641 = vadd.f32 0.0, %v1640
        %1642 = vmatmul.bf16.gmra.mxu0 %v1579
        %v1643 = vpop.f32.mrf.mxu0
        %v1644 = vadd.f32 0.0, %v1643
        %v1645 = vpop.f32.mrf.mxu0
        %v1646 = vadd.f32 0.0, %v1645
        %1647 = vmatmul.bf16.gmra.mxu0 %v1582
        %v1648 = vpop.f32.mrf.mxu0
        %v1649 = vadd.f32 0.0, %v1648
        %v1650 = vpop.f32.mrf.mxu0
        %v1651 = vadd.f32 0.0, %v1650
        %1652 = vmatmul.bf16.gmra.mxu0 %v1585
        %v1653 = vpop.f32.mrf.mxu0
        %v1654 = vadd.f32 0.0, %v1653
        %v1655 = vpop.f32.mrf.mxu0
        %v1656 = vadd.f32 0.0, %v1655
        %1657 = vmatmul.bf16.gmra.mxu0 %v1588
        %v1658 = vpop.f32.mrf.mxu0
        %v1659 = vadd.f32 0.0, %v1658
        %v1660 = vpop.f32.mrf.mxu0
        %v1661 = vadd.f32 0.0, %v1660
        %1662 = vmatmul.bf16.gmra.mxu0 %v1591
        %v1663 = vpop.f32.mrf.mxu0
        %v1664 = vadd.f32 0.0, %v1663
        %v1665 = vpop.f32.mrf.mxu0
        %v1666 = vadd.f32 0.0, %v1665
        %1667 = vmatmul.bf16.gmra.mxu0 %v1594
        %v1668 = vpop.f32.mrf.mxu0
        %v1669 = vadd.f32 0.0, %v1668
        %v1670 = vpop.f32.mrf.mxu0
        %v1671 = vadd.f32 0.0, %v1670
        %1672 = vmatmul.bf16.gmra.mxu0 %v1597
        %v1673 = vpop.f32.mrf.mxu0
        %v1674 = vadd.f32 0.0, %v1673
        %v1675 = vpop.f32.mrf.mxu0
        %v1676 = vadd.f32 0.0, %v1675
        %1677 = vmatmul.bf16.gmra.mxu0 %v1600
        %v1678 = vpop.f32.mrf.mxu0
        %v1679 = vadd.f32 0.0, %v1678
        %v1680 = vpop.f32.mrf.mxu0
        %v1681 = vadd.f32 0.0, %v1680
        %1682 = vmatmul.bf16.gmra.mxu0 %v1603
        %v1683 = vpop.f32.mrf.mxu0
        %v1684 = vadd.f32 0.0, %v1683
        %v1685 = vpop.f32.mrf.mxu0
        %v1686 = vadd.f32 0.0, %v1685
        %1687 = vmatmul.bf16.gmra.mxu0 %v1606
        %v1688 = vpop.f32.mrf.mxu0
        %v1689 = vadd.f32 0.0, %v1688
        %v1690 = vpop.f32.mrf.mxu0
        %v1691 = vadd.f32 0.0, %v1690
        %1692 = vmatmul.bf16.gmra.mxu0 %v1609
        %v1693 = vpop.f32.mrf.mxu0
        %v1694 = vadd.f32 0.0, %v1693
        %v1695 = vpop.f32.mrf.mxu0
        %v1696 = vadd.f32 0.0, %v1695
        %1697 = vmatmul.bf16.gmra.mxu0 %v1612
        %v1698 = vpop.f32.mrf.mxu0
        %v1699 = vadd.f32 0.0, %v1698
        %v1700 = vpop.f32.mrf.mxu0
        %v1701 = vadd.f32 0.0, %v1700
        %1702 = vdwg.mxu0
        %v1703 = vperm.slane %v1508, 0
        %v1704 = vmul.f32 %v1624, %v1703
        %v1705 = vmul.f32 %v1626, %v1703
        %v1706 = vmul.f32 %v1629, %v1703
        %v1707 = vmul.f32 %v1631, %v1703
        %v1708 = vmul.f32 %v1634, %v1703
        %v1709 = vmul.f32 %v1636, %v1703
        %v1710 = vmul.f32 %v1639, %v1703
        %v1711 = vmul.f32 %v1641, %v1703
        %v1712 = vmul.f32 %v1644, %v1703
        %v1713 = vmul.f32 %v1646, %v1703
        %v1714 = vmul.f32 %v1649, %v1703
        %v1715 = vmul.f32 %v1651, %v1703
        %v1716 = vmul.f32 %v1654, %v1703
        %v1717 = vmul.f32 %v1656, %v1703
        %v1718 = vmul.f32 %v1659, %v1703
        %v1719 = vmul.f32 %v1661, %v1703
        %v1720 = vmul.f32 %v1664, %v1703
        %v1721 = vmul.f32 %v1666, %v1703
        %v1722 = vmul.f32 %v1669, %v1703
        %v1723 = vmul.f32 %v1671, %v1703
        %v1724 = vmul.f32 %v1674, %v1703
        %v1725 = vmul.f32 %v1676, %v1703
        %v1726 = vmul.f32 %v1679, %v1703
        %v1727 = vmul.f32 %v1681, %v1703
        %v1728 = vmul.f32 %v1684, %v1703
        %v1729 = vmul.f32 %v1686, %v1703
        %v1730 = vmul.f32 %v1689, %v1703
        %v1731 = vmul.f32 %v1691, %v1703
        %v1732 = vmul.f32 %v1694, %v1703
        %v1733 = vmul.f32 %v1696, %v1703
        %v1734 = vmul.f32 %v1699, %v1703
        %v1735 = vmul.f32 %v1701, %v1703
        %v1736 = vperm.slane %v1508, 1
        %v1737 = vadd.f32 %v1704, %v1736
        %v1738 = vadd.f32 %v1705, %v1736
        %v1739 = vadd.f32 %v1706, %v1736
        %v1740 = vadd.f32 %v1707, %v1736
        %v1741 = vadd.f32 %v1708, %v1736
        %v1742 = vadd.f32 %v1709, %v1736
        %v1743 = vadd.f32 %v1710, %v1736
        %v1744 = vadd.f32 %v1711, %v1736
        %v1745 = vadd.f32 %v1712, %v1736
        %v1746 = vadd.f32 %v1713, %v1736
        %v1747 = vadd.f32 %v1714, %v1736
        %v1748 = vadd.f32 %v1715, %v1736
        %v1749 = vadd.f32 %v1716, %v1736
        %v1750 = vadd.f32 %v1717, %v1736
        %v1751 = vadd.f32 %v1718, %v1736
        %v1752 = vadd.f32 %v1719, %v1736
        %v1753 = vadd.f32 %v1720, %v1736
        %v1754 = vadd.f32 %v1721, %v1736
        %v1755 = vadd.f32 %v1722, %v1736
        %v1756 = vadd.f32 %v1723, %v1736
        %v1757 = vadd.f32 %v1724, %v1736
        %v1758 = vadd.f32 %v1725, %v1736
        %v1759 = vadd.f32 %v1726, %v1736
        %v1760 = vadd.f32 %v1727, %v1736
        %v1761 = vadd.f32 %v1728, %v1736
        %v1762 = vadd.f32 %v1729, %v1736
        %v1763 = vadd.f32 %v1730, %v1736
        %v1764 = vadd.f32 %v1731, %v1736
        %v1765 = vadd.f32 %v1732, %v1736
        %v1766 = vadd.f32 %v1733, %v1736
        %v1767 = vadd.f32 %v1734, %v1736
        %v1768 = vadd.f32 %v1735, %v1736
        %v1769 = vstv %s1013
        %v1770 = vmul.f32 %v1769, %v1250
        %v1771 = vmul.f32 %v1769, %v1251
        %v1772 = vmul.f32 %v1769, %v1252
        %v1773 = vmul.f32 %v1769, %v1253
        %v1774 = vmul.f32 %v1769, %v1254
        %v1775 = vmul.f32 %v1769, %v1255
        %v1776 = vmul.f32 %v1769, %v1256
        %v1777 = vmul.f32 %v1769, %v1257
        %v1778 = vmul.f32 %v1769, %v1258
        %v1779 = vmul.f32 %v1769, %v1259
        %v1780 = vmul.f32 %v1769, %v1260
        %v1781 = vmul.f32 %v1769, %v1261
        %v1782 = vmul.f32 %v1769, %v1262
        %v1783 = vmul.f32 %v1769, %v1263
        %v1784 = vmul.f32 %v1769, %v1264
        %v1785 = vmul.f32 %v1769, %v1265
        %v1786 = vmul.f32 %v1769, %v1266
        %v1787 = vmul.f32 %v1769, %v1267
        %v1788 = vmul.f32 %v1769, %v1268
        %v1789 = vmul.f32 %v1769, %v1269
        %v1790 = vmul.f32 %v1769, %v1270
        %v1791 = vmul.f32 %v1769, %v1271
        %v1792 = vmul.f32 %v1769, %v1272
        %v1793 = vmul.f32 %v1769, %v1273
        %v1794 = vmul.f32 %v1769, %v1274
        %v1795 = vmul.f32 %v1769, %v1275
        %v1796 = vmul.f32 %v1769, %v1276
        %v1797 = vmul.f32 %v1769, %v1277
        %v1798 = vmul.f32 %v1769, %v1278
        %v1799 = vmul.f32 %v1769, %v1279
        %v1800 = vmul.f32 %v1769, %v1280
        %v1801 = vmul.f32 %v1769, %v1281
        %v1802 = vstv %s1014
        %v1803 = vmul.f32 %v1802, %v1250
        %v1804 = vmul.f32 %v1802, %v1251
        %v1805 = vmul.f32 %v1802, %v1252
        %v1806 = vmul.f32 %v1802, %v1253
        %v1807 = vmul.f32 %v1802, %v1254
        %v1808 = vmul.f32 %v1802, %v1255
        %v1809 = vmul.f32 %v1802, %v1256
        %v1810 = vmul.f32 %v1802, %v1257
        %v1811 = vmul.f32 %v1802, %v1258
        %v1812 = vmul.f32 %v1802, %v1259
        %v1813 = vmul.f32 %v1802, %v1260
        %v1814 = vmul.f32 %v1802, %v1261
        %v1815 = vmul.f32 %v1802, %v1262
        %v1816 = vmul.f32 %v1802, %v1263
        %v1817 = vmul.f32 %v1802, %v1264
        %v1818 = vmul.f32 %v1802, %v1265
        %v1819 = vmul.f32 %v1802, %v1266
        %v1820 = vmul.f32 %v1802, %v1267
        %v1821 = vmul.f32 %v1802, %v1268
        %v1822 = vmul.f32 %v1802, %v1269
        %v1823 = vmul.f32 %v1802, %v1270
        %v1824 = vmul.f32 %v1802, %v1271
        %v1825 = vmul.f32 %v1802, %v1272
        %v1826 = vmul.f32 %v1802, %v1273
        %v1827 = vmul.f32 %v1802, %v1274
        %v1828 = vmul.f32 %v1802, %v1275
        %v1829 = vmul.f32 %v1802, %v1276
        %v1830 = vmul.f32 %v1802, %v1277
        %v1831 = vmul.f32 %v1802, %v1278
        %v1832 = vmul.f32 %v1802, %v1279
        %v1833 = vmul.f32 %v1802, %v1280
        %v1834 = vmul.f32 %v1802, %v1281
        %1867 = vrot.lane.b32.xlu0 %v1803, 112
        %v1868 = vpop.permute.xlu0 %1867
        %1869 = vrot.lane.b32.xlu0 %v1804, 112
        %v1870 = vpop.permute.xlu0 %1869
        %1871 = vrot.lane.b32.xlu0 %v1805, 112
        %v1872 = vpop.permute.xlu0 %1871
        %1873 = vrot.lane.b32.xlu0 %v1806, 112
        %v1874 = vpop.permute.xlu0 %1873
        %1875 = vrot.lane.b32.xlu0 %v1807, 112
        %v1876 = vpop.permute.xlu0 %1875
        %1877 = vrot.lane.b32.xlu0 %v1808, 112
        %v1878 = vpop.permute.xlu0 %1877
        %1879 = vrot.lane.b32.xlu0 %v1809, 112
        %v1880 = vpop.permute.xlu0 %1879
        %1881 = vrot.lane.b32.xlu0 %v1810, 112
        %v1882 = vpop.permute.xlu0 %1881
        %1883 = vrot.lane.b32.xlu0 %v1811, 112
        %v1884 = vpop.permute.xlu0 %1883
        %1885 = vrot.lane.b32.xlu0 %v1812, 112
        %v1886 = vpop.permute.xlu0 %1885
        %1887 = vrot.lane.b32.xlu0 %v1813, 112
        %v1888 = vpop.permute.xlu0 %1887
        %1889 = vrot.lane.b32.xlu0 %v1814, 112
        %v1890 = vpop.permute.xlu0 %1889
        %1891 = vrot.lane.b32.xlu0 %v1815, 112
        %v1892 = vpop.permute.xlu0 %1891
        %1893 = vrot.lane.b32.xlu0 %v1816, 112
        %v1894 = vpop.permute.xlu0 %1893
        %1895 = vrot.lane.b32.xlu0 %v1817, 112
        %v1896 = vpop.permute.xlu0 %1895
        %1897 = vrot.lane.b32.xlu0 %v1818, 112
        %v1898 = vpop.permute.xlu0 %1897
        %1899 = vrot.lane.b32.xlu0 %v1819, 112
        %v1900 = vpop.permute.xlu0 %1899
        %1901 = vrot.lane.b32.xlu0 %v1820, 112
        %v1902 = vpop.permute.xlu0 %1901
        %1903 = vrot.lane.b32.xlu0 %v1821, 112
        %v1904 = vpop.permute.xlu0 %1903
        %1905 = vrot.lane.b32.xlu0 %v1822, 112
        %v1906 = vpop.permute.xlu0 %1905
        %1907 = vrot.lane.b32.xlu0 %v1823, 112
        %v1908 = vpop.permute.xlu0 %1907
        %1909 = vrot.lane.b32.xlu0 %v1824, 112
        %v1910 = vpop.permute.xlu0 %1909
        %1911 = vrot.lane.b32.xlu0 %v1825, 112
        %v1912 = vpop.permute.xlu0 %1911
        %1913 = vrot.lane.b32.xlu0 %v1826, 112
        %v1914 = vpop.permute.xlu0 %1913
        %1915 = vrot.lane.b32.xlu0 %v1827, 112
        %v1916 = vpop.permute.xlu0 %1915
        %1917 = vrot.lane.b32.xlu0 %v1828, 112
        %v1918 = vpop.permute.xlu0 %1917
        %1919 = vrot.lane.b32.xlu0 %v1829, 112
        %v1920 = vpop.permute.xlu0 %1919
        %1921 = vrot.lane.b32.xlu0 %v1830, 112
        %v1922 = vpop.permute.xlu0 %1921
        %1923 = vrot.lane.b32.xlu0 %v1831, 112
        %v1924 = vpop.permute.xlu0 %1923
        %1925 = vrot.lane.b32.xlu0 %v1832, 112
        %v1926 = vpop.permute.xlu0 %1925
        %1927 = vrot.lane.b32.xlu0 %v1833, 112
        %v1928 = vpop.permute.xlu0 %1927
        %1929 = vrot.lane.b32.xlu0 %v1834, 112
        %v1930 = vpop.permute.xlu0 %1929
        %v1963 = vadd.f32 %v1770, %v1868
        %v1964 = vadd.f32 %v1771, %v1870
        %v1965 = vadd.f32 %v1772, %v1872
        %v1966 = vadd.f32 %v1773, %v1874
        %v1967 = vadd.f32 %v1774, %v1876
        %v1968 = vadd.f32 %v1775, %v1878
        %v1969 = vadd.f32 %v1776, %v1880
        %v1970 = vadd.f32 %v1777, %v1882
        %v1971 = vadd.f32 %v1778, %v1884
        %v1972 = vadd.f32 %v1779, %v1886
        %v1973 = vadd.f32 %v1780, %v1888
        %v1974 = vadd.f32 %v1781, %v1890
        %v1975 = vadd.f32 %v1782, %v1892
        %v1976 = vadd.f32 %v1783, %v1894
        %v1977 = vadd.f32 %v1784, %v1896
        %v1978 = vadd.f32 %v1785, %v1898
        %v1979 = vadd.f32 %v1786, %v1900
        %v1980 = vadd.f32 %v1787, %v1902
        %v1981 = vadd.f32 %v1788, %v1904
        %v1982 = vadd.f32 %v1789, %v1906
        %v1983 = vadd.f32 %v1790, %v1908
        %v1984 = vadd.f32 %v1791, %v1910
        %v1985 = vadd.f32 %v1792, %v1912
        %v1986 = vadd.f32 %v1793, %v1914
        %v1987 = vadd.f32 %v1794, %v1916
        %v1988 = vadd.f32 %v1795, %v1918
        %v1989 = vadd.f32 %v1796, %v1920
        %v1990 = vadd.f32 %v1797, %v1922
        %v1991 = vadd.f32 %v1798, %v1924
        %v1992 = vadd.f32 %v1799, %v1926
        %v1993 = vadd.f32 %v1800, %v1928
        %v1994 = vadd.f32 %v1801, %v1930
        %v1995 = vstv %s1015
        %v1996 = vmul.f32 %v1995, %v1737
        %v1997 = vmul.f32 %v1995, %v1738
        %v1998 = vmul.f32 %v1995, %v1739
        %v1999 = vmul.f32 %v1995, %v1740
        %v2000 = vmul.f32 %v1995, %v1741
        %v2001 = vmul.f32 %v1995, %v1742
        %v2002 = vmul.f32 %v1995, %v1743
        %v2003 = vmul.f32 %v1995, %v1744
        %v2004 = vmul.f32 %v1995, %v1745
        %v2005 = vmul.f32 %v1995, %v1746
        %v2006 = vmul.f32 %v1995, %v1747
        %v2007 = vmul.f32 %v1995, %v1748
        %v2008 = vmul.f32 %v1995, %v1749
        %v2009 = vmul.f32 %v1995, %v1750
        %v2010 = vmul.f32 %v1995, %v1751
        %v2011 = vmul.f32 %v1995, %v1752
        %v2012 = vmul.f32 %v1995, %v1753
        %v2013 = vmul.f32 %v1995, %v1754
        %v2014 = vmul.f32 %v1995, %v1755
        %v2015 = vmul.f32 %v1995, %v1756
        %v2016 = vmul.f32 %v1995, %v1757
        %v2017 = vmul.f32 %v1995, %v1758
        %v2018 = vmul.f32 %v1995, %v1759
        %v2019 = vmul.f32 %v1995, %v1760
        %v2020 = vmul.f32 %v1995, %v1761
        %v2021 = vmul.f32 %v1995, %v1762
        %v2022 = vmul.f32 %v1995, %v1763
        %v2023 = vmul.f32 %v1995, %v1764
        %v2024 = vmul.f32 %v1995, %v1765
        %v2025 = vmul.f32 %v1995, %v1766
        %v2026 = vmul.f32 %v1995, %v1767
        %v2027 = vmul.f32 %v1995, %v1768
        %v2028 = vadd.f32 %v1963, %v1996
        %v2029 = vadd.f32 %v1964, %v1997
        %v2030 = vadd.f32 %v1965, %v1998
        %v2031 = vadd.f32 %v1966, %v1999
        %v2032 = vadd.f32 %v1967, %v2000
        %v2033 = vadd.f32 %v1968, %v2001
        %v2034 = vadd.f32 %v1969, %v2002
        %v2035 = vadd.f32 %v1970, %v2003
        %v2036 = vadd.f32 %v1971, %v2004
        %v2037 = vadd.f32 %v1972, %v2005
        %v2038 = vadd.f32 %v1973, %v2006
        %v2039 = vadd.f32 %v1974, %v2007
        %v2040 = vadd.f32 %v1975, %v2008
        %v2041 = vadd.f32 %v1976, %v2009
        %v2042 = vadd.f32 %v1977, %v2010
        %v2043 = vadd.f32 %v1978, %v2011
        %v2044 = vadd.f32 %v1979, %v2012
        %v2045 = vadd.f32 %v1980, %v2013
        %v2046 = vadd.f32 %v1981, %v2014
        %v2047 = vadd.f32 %v1982, %v2015
        %v2048 = vadd.f32 %v1983, %v2016
        %v2049 = vadd.f32 %v1984, %v2017
        %v2050 = vadd.f32 %v1985, %v2018
        %v2051 = vadd.f32 %v1986, %v2019
        %v2052 = vadd.f32 %v1987, %v2020
        %v2053 = vadd.f32 %v1988, %v2021
        %v2054 = vadd.f32 %v1989, %v2022
        %v2055 = vadd.f32 %v1990, %v2023
        %v2056 = vadd.f32 %v1991, %v2024
        %v2057 = vadd.f32 %v1992, %v2025
        %v2058 = vadd.f32 %v1993, %v2026
        %v2059 = vadd.f32 %v1994, %v2027
        %s2060 = scalar_lea.vmem %s8, 2
        %v2061 = vld [vmem:[%s2060] sm:$0x3]
        %v2062 = vmax.f32 %v2028, 0.0
        %v2063 = vmax.f32 %v2029, 0.0
        %v2064 = vmax.f32 %v2030, 0.0
        %v2065 = vmax.f32 %v2031, 0.0
        %v2066 = vmax.f32 %v2032, 0.0
        %v2067 = vmax.f32 %v2033, 0.0
        %v2068 = vmax.f32 %v2034, 0.0
        %v2069 = vmax.f32 %v2035, 0.0
        %v2070 = vmax.f32 %v2036, 0.0
        %v2071 = vmax.f32 %v2037, 0.0
        %v2072 = vmax.f32 %v2038, 0.0
        %v2073 = vmax.f32 %v2039, 0.0
        %v2074 = vmax.f32 %v2040, 0.0
        %v2075 = vmax.f32 %v2041, 0.0
        %v2076 = vmax.f32 %v2042, 0.0
        %v2077 = vmax.f32 %v2043, 0.0
        %v2078 = vmax.f32 %v2044, 0.0
        %v2079 = vmax.f32 %v2045, 0.0
        %v2080 = vmax.f32 %v2046, 0.0
        %v2081 = vmax.f32 %v2047, 0.0
        %v2082 = vmax.f32 %v2048, 0.0
        %v2083 = vmax.f32 %v2049, 0.0
        %v2084 = vmax.f32 %v2050, 0.0
        %v2085 = vmax.f32 %v2051, 0.0
        %v2086 = vmax.f32 %v2052, 0.0
        %v2087 = vmax.f32 %v2053, 0.0
        %v2088 = vmax.f32 %v2054, 0.0
        %v2089 = vmax.f32 %v2055, 0.0
        %v2090 = vmax.f32 %v2056, 0.0
        %v2091 = vmax.f32 %v2057, 0.0
        %v2092 = vmax.f32 %v2058, 0.0
        %v2093 = vmax.f32 %v2059, 0.0
        %v2094 = vpack.c.bf16 %v2063, %v2062
        %v2095 = vpack.c.bf16 %v2065, %v2064
        %v2096 = vpack.c.bf16 %v2067, %v2066
        %v2097 = vpack.c.bf16 %v2069, %v2068
        %v2098 = vpack.c.bf16 %v2071, %v2070
        %v2099 = vpack.c.bf16 %v2073, %v2072
        %v2100 = vpack.c.bf16 %v2075, %v2074
        %v2101 = vpack.c.bf16 %v2077, %v2076
        %v2102 = vpack.c.bf16 %v2079, %v2078
        %v2103 = vpack.c.bf16 %v2081, %v2080
        %v2104 = vpack.c.bf16 %v2083, %v2082
        %v2105 = vpack.c.bf16 %v2085, %v2084
        %v2106 = vpack.c.bf16 %v2087, %v2086
        %v2107 = vpack.c.bf16 %v2089, %v2088
        %v2108 = vpack.c.bf16 %v2091, %v2090
        %v2109 = vpack.c.bf16 %v2093, %v2092
        %s2110 = scalar_lea.vmem %s7, 8
        %v2111 = vld [vmem:[%s2110] sm:$0xf]
        %v2112 = vld [vmem:[%s2110 + $0x4] sm:$0xf]
        %v2115 = vunpack.c.l.b16 %v2111
        %v2116 = vunpack.c.l.b16 %v2112
        %v2117 = vpack.c.b16 %v2116, %v2115
        %v2120 = vsel %vm1565, %v2094, 0
        %v2123 = vsel %vm1565, %v2095, 0
        %v2126 = vsel %vm1565, %v2096, 0
        %v2129 = vsel %vm1565, %v2097, 0
        %v2132 = vsel %vm1565, %v2098, 0
        %v2135 = vsel %vm1565, %v2099, 0
        %v2138 = vsel %vm1565, %v2100, 0
        %v2141 = vsel %vm1565, %v2101, 0
        %v2144 = vsel %vm1565, %v2102, 0
        %v2147 = vsel %vm1565, %v2103, 0
        %v2150 = vsel %vm1565, %v2104, 0
        %v2153 = vsel %vm1565, %v2105, 0
        %v2156 = vsel %vm1565, %v2106, 0
        %v2159 = vsel %vm1565, %v2107, 0
        %v2162 = vsel %vm1565, %v2108, 0
        %v2165 = vsel %vm1565, %v2109, 0
        %2167 = vmatpush.bf16.msra.mxu0 0
        %2168 = vmatpush.bf16.msra.mxu0 0
        %2169 = vmatpush.bf16.msra.mxu0 0
        %2170 = vmatpush.bf16.msra.mxu0 0
        %2171 = vmatpush.bf16.msra.mxu0 0
        %2172 = vmatpush.bf16.msra.mxu0 0
        %2173 = vmatpush.bf16.msra.mxu0 0
        %2174 = vmatpush.bf16.msra.mxu0 %v2117
        %2175 = vmatmul.bf16.gmra.mxu0 %v2120
        %v2176 = vpop.f32.mrf.mxu0
        %v2177 = vadd.f32 0.0, %v2176
        %v2178 = vpop.f32.mrf.mxu0
        %v2179 = vadd.f32 0.0, %v2178
        %2180 = vmatmul.bf16.gmra.mxu0 %v2123
        %v2181 = vpop.f32.mrf.mxu0
        %v2182 = vadd.f32 0.0, %v2181
        %v2183 = vpop.f32.mrf.mxu0
        %v2184 = vadd.f32 0.0, %v2183
        %2185 = vmatmul.bf16.gmra.mxu0 %v2126
        %v2186 = vpop.f32.mrf.mxu0
        %v2187 = vadd.f32 0.0, %v2186
        %v2188 = vpop.f32.mrf.mxu0
        %v2189 = vadd.f32 0.0, %v2188
        %2190 = vmatmul.bf16.gmra.mxu0 %v2129
        %v2191 = vpop.f32.mrf.mxu0
        %v2192 = vadd.f32 0.0, %v2191
        %v2193 = vpop.f32.mrf.mxu0
        %v2194 = vadd.f32 0.0, %v2193
        %2195 = vmatmul.bf16.gmra.mxu0 %v2132
        %v2196 = vpop.f32.mrf.mxu0
        %v2197 = vadd.f32 0.0, %v2196
        %v2198 = vpop.f32.mrf.mxu0
        %v2199 = vadd.f32 0.0, %v2198
        %2200 = vmatmul.bf16.gmra.mxu0 %v2135
        %v2201 = vpop.f32.mrf.mxu0
        %v2202 = vadd.f32 0.0, %v2201
        %v2203 = vpop.f32.mrf.mxu0
        %v2204 = vadd.f32 0.0, %v2203
        %2205 = vmatmul.bf16.gmra.mxu0 %v2138
        %v2206 = vpop.f32.mrf.mxu0
        %v2207 = vadd.f32 0.0, %v2206
        %v2208 = vpop.f32.mrf.mxu0
        %v2209 = vadd.f32 0.0, %v2208
        %2210 = vmatmul.bf16.gmra.mxu0 %v2141
        %v2211 = vpop.f32.mrf.mxu0
        %v2212 = vadd.f32 0.0, %v2211
        %v2213 = vpop.f32.mrf.mxu0
        %v2214 = vadd.f32 0.0, %v2213
        %2215 = vmatmul.bf16.gmra.mxu0 %v2144
        %v2216 = vpop.f32.mrf.mxu0
        %v2217 = vadd.f32 0.0, %v2216
        %v2218 = vpop.f32.mrf.mxu0
        %v2219 = vadd.f32 0.0, %v2218
        %2220 = vmatmul.bf16.gmra.mxu0 %v2147
        %v2221 = vpop.f32.mrf.mxu0
        %v2222 = vadd.f32 0.0, %v2221
        %v2223 = vpop.f32.mrf.mxu0
        %v2224 = vadd.f32 0.0, %v2223
        %2225 = vmatmul.bf16.gmra.mxu0 %v2150
        %v2226 = vpop.f32.mrf.mxu0
        %v2227 = vadd.f32 0.0, %v2226
        %v2228 = vpop.f32.mrf.mxu0
        %v2229 = vadd.f32 0.0, %v2228
        %2230 = vmatmul.bf16.gmra.mxu0 %v2153
        %v2231 = vpop.f32.mrf.mxu0
        %v2232 = vadd.f32 0.0, %v2231
        %v2233 = vpop.f32.mrf.mxu0
        %v2234 = vadd.f32 0.0, %v2233
        %2235 = vmatmul.bf16.gmra.mxu0 %v2156
        %v2236 = vpop.f32.mrf.mxu0
        %v2237 = vadd.f32 0.0, %v2236
        %v2238 = vpop.f32.mrf.mxu0
        %v2239 = vadd.f32 0.0, %v2238
        %2240 = vmatmul.bf16.gmra.mxu0 %v2159
        %v2241 = vpop.f32.mrf.mxu0
        %v2242 = vadd.f32 0.0, %v2241
        %v2243 = vpop.f32.mrf.mxu0
        %v2244 = vadd.f32 0.0, %v2243
        %2245 = vmatmul.bf16.gmra.mxu0 %v2162
        %v2246 = vpop.f32.mrf.mxu0
        %v2247 = vadd.f32 0.0, %v2246
        %v2248 = vpop.f32.mrf.mxu0
        %v2249 = vadd.f32 0.0, %v2248
        %2250 = vmatmul.bf16.gmra.mxu0 %v2165
        %v2251 = vpop.f32.mrf.mxu0
        %v2252 = vadd.f32 0.0, %v2251
        %v2253 = vpop.f32.mrf.mxu0
        %v2254 = vadd.f32 0.0, %v2253
        %2255 = vdwg.mxu0
        %v2256 = vperm.slane %v2061, 0
        %v2257 = vmul.f32 %v2177, %v2256
        %v2258 = vmul.f32 %v2179, %v2256
        %v2259 = vmul.f32 %v2182, %v2256
        %v2260 = vmul.f32 %v2184, %v2256
        %v2261 = vmul.f32 %v2187, %v2256
        %v2262 = vmul.f32 %v2189, %v2256
        %v2263 = vmul.f32 %v2192, %v2256
        %v2264 = vmul.f32 %v2194, %v2256
        %v2265 = vmul.f32 %v2197, %v2256
        %v2266 = vmul.f32 %v2199, %v2256
        %v2267 = vmul.f32 %v2202, %v2256
        %v2268 = vmul.f32 %v2204, %v2256
        %v2269 = vmul.f32 %v2207, %v2256
        %v2270 = vmul.f32 %v2209, %v2256
        %v2271 = vmul.f32 %v2212, %v2256
        %v2272 = vmul.f32 %v2214, %v2256
        %v2273 = vmul.f32 %v2217, %v2256
        %v2274 = vmul.f32 %v2219, %v2256
        %v2275 = vmul.f32 %v2222, %v2256
        %v2276 = vmul.f32 %v2224, %v2256
        %v2277 = vmul.f32 %v2227, %v2256
        %v2278 = vmul.f32 %v2229, %v2256
        %v2279 = vmul.f32 %v2232, %v2256
        %v2280 = vmul.f32 %v2234, %v2256
        %v2281 = vmul.f32 %v2237, %v2256
        %v2282 = vmul.f32 %v2239, %v2256
        %v2283 = vmul.f32 %v2242, %v2256
        %v2284 = vmul.f32 %v2244, %v2256
        %v2285 = vmul.f32 %v2247, %v2256
        %v2286 = vmul.f32 %v2249, %v2256
        %v2287 = vmul.f32 %v2252, %v2256
        %v2288 = vmul.f32 %v2254, %v2256
        %v2289 = vperm.slane %v2061, 1
        %v2290 = vadd.f32 %v2257, %v2289
        %v2291 = vadd.f32 %v2258, %v2289
        %v2292 = vadd.f32 %v2259, %v2289
        %v2293 = vadd.f32 %v2260, %v2289
        %v2294 = vadd.f32 %v2261, %v2289
        %v2295 = vadd.f32 %v2262, %v2289
        %v2296 = vadd.f32 %v2263, %v2289
        %v2297 = vadd.f32 %v2264, %v2289
        %v2298 = vadd.f32 %v2265, %v2289
        %v2299 = vadd.f32 %v2266, %v2289
        %v2300 = vadd.f32 %v2267, %v2289
        %v2301 = vadd.f32 %v2268, %v2289
        %v2302 = vadd.f32 %v2269, %v2289
        %v2303 = vadd.f32 %v2270, %v2289
        %v2304 = vadd.f32 %v2271, %v2289
        %v2305 = vadd.f32 %v2272, %v2289
        %v2306 = vadd.f32 %v2273, %v2289
        %v2307 = vadd.f32 %v2274, %v2289
        %v2308 = vadd.f32 %v2275, %v2289
        %v2309 = vadd.f32 %v2276, %v2289
        %v2310 = vadd.f32 %v2277, %v2289
        %v2311 = vadd.f32 %v2278, %v2289
        %v2312 = vadd.f32 %v2279, %v2289
        %v2313 = vadd.f32 %v2280, %v2289
        %v2314 = vadd.f32 %v2281, %v2289
        %v2315 = vadd.f32 %v2282, %v2289
        %v2316 = vadd.f32 %v2283, %v2289
        %v2317 = vadd.f32 %v2284, %v2289
        %v2318 = vadd.f32 %v2285, %v2289
        %v2319 = vadd.f32 %v2286, %v2289
        %v2320 = vadd.f32 %v2287, %v2289
        %v2321 = vadd.f32 %v2288, %v2289
        %v2322 = vstv %s1016
        %v2323 = vmul.f32 %v2322, %v1737
        %v2324 = vmul.f32 %v2322, %v1738
        %v2325 = vmul.f32 %v2322, %v1739
        %v2326 = vmul.f32 %v2322, %v1740
        %v2327 = vmul.f32 %v2322, %v1741
        %v2328 = vmul.f32 %v2322, %v1742
        %v2329 = vmul.f32 %v2322, %v1743
        %v2330 = vmul.f32 %v2322, %v1744
        %v2331 = vmul.f32 %v2322, %v1745
        %v2332 = vmul.f32 %v2322, %v1746
        %v2333 = vmul.f32 %v2322, %v1747
        %v2334 = vmul.f32 %v2322, %v1748
        %v2335 = vmul.f32 %v2322, %v1749
        %v2336 = vmul.f32 %v2322, %v1750
        %v2337 = vmul.f32 %v2322, %v1751
        %v2338 = vmul.f32 %v2322, %v1752
        %v2339 = vmul.f32 %v2322, %v1753
        %v2340 = vmul.f32 %v2322, %v1754
        %v2341 = vmul.f32 %v2322, %v1755
        %v2342 = vmul.f32 %v2322, %v1756
        %v2343 = vmul.f32 %v2322, %v1757
        %v2344 = vmul.f32 %v2322, %v1758
        %v2345 = vmul.f32 %v2322, %v1759
        %v2346 = vmul.f32 %v2322, %v1760
        %v2347 = vmul.f32 %v2322, %v1761
        %v2348 = vmul.f32 %v2322, %v1762
        %v2349 = vmul.f32 %v2322, %v1763
        %v2350 = vmul.f32 %v2322, %v1764
        %v2351 = vmul.f32 %v2322, %v1765
        %v2352 = vmul.f32 %v2322, %v1766
        %v2353 = vmul.f32 %v2322, %v1767
        %v2354 = vmul.f32 %v2322, %v1768
        %v2355 = vstv %s1017
        %v2356 = vmul.f32 %v2355, %v2290
        %v2357 = vmul.f32 %v2355, %v2291
        %v2358 = vmul.f32 %v2355, %v2292
        %v2359 = vmul.f32 %v2355, %v2293
        %v2360 = vmul.f32 %v2355, %v2294
        %v2361 = vmul.f32 %v2355, %v2295
        %v2362 = vmul.f32 %v2355, %v2296
        %v2363 = vmul.f32 %v2355, %v2297
        %v2364 = vmul.f32 %v2355, %v2298
        %v2365 = vmul.f32 %v2355, %v2299
        %v2366 = vmul.f32 %v2355, %v2300
        %v2367 = vmul.f32 %v2355, %v2301
        %v2368 = vmul.f32 %v2355, %v2302
        %v2369 = vmul.f32 %v2355, %v2303
        %v2370 = vmul.f32 %v2355, %v2304
        %v2371 = vmul.f32 %v2355, %v2305
        %v2372 = vmul.f32 %v2355, %v2306
        %v2373 = vmul.f32 %v2355, %v2307
        %v2374 = vmul.f32 %v2355, %v2308
        %v2375 = vmul.f32 %v2355, %v2309
        %v2376 = vmul.f32 %v2355, %v2310
        %v2377 = vmul.f32 %v2355, %v2311
        %v2378 = vmul.f32 %v2355, %v2312
        %v2379 = vmul.f32 %v2355, %v2313
        %v2380 = vmul.f32 %v2355, %v2314
        %v2381 = vmul.f32 %v2355, %v2315
        %v2382 = vmul.f32 %v2355, %v2316
        %v2383 = vmul.f32 %v2355, %v2317
        %v2384 = vmul.f32 %v2355, %v2318
        %v2385 = vmul.f32 %v2355, %v2319
        %v2386 = vmul.f32 %v2355, %v2320
        %v2387 = vmul.f32 %v2355, %v2321
        %v2388 = vadd.f32 %v2323, %v2356
        %v2389 = vadd.f32 %v2324, %v2357
        %v2390 = vadd.f32 %v2325, %v2358
        %v2391 = vadd.f32 %v2326, %v2359
        %v2392 = vadd.f32 %v2327, %v2360
        %v2393 = vadd.f32 %v2328, %v2361
        %v2394 = vadd.f32 %v2329, %v2362
        %v2395 = vadd.f32 %v2330, %v2363
        %v2396 = vadd.f32 %v2331, %v2364
        %v2397 = vadd.f32 %v2332, %v2365
        %v2398 = vadd.f32 %v2333, %v2366
        %v2399 = vadd.f32 %v2334, %v2367
        %v2400 = vadd.f32 %v2335, %v2368
        %v2401 = vadd.f32 %v2336, %v2369
        %v2402 = vadd.f32 %v2337, %v2370
        %v2403 = vadd.f32 %v2338, %v2371
        %v2404 = vadd.f32 %v2339, %v2372
        %v2405 = vadd.f32 %v2340, %v2373
        %v2406 = vadd.f32 %v2341, %v2374
        %v2407 = vadd.f32 %v2342, %v2375
        %v2408 = vadd.f32 %v2343, %v2376
        %v2409 = vadd.f32 %v2344, %v2377
        %v2410 = vadd.f32 %v2345, %v2378
        %v2411 = vadd.f32 %v2346, %v2379
        %v2412 = vadd.f32 %v2347, %v2380
        %v2413 = vadd.f32 %v2348, %v2381
        %v2414 = vadd.f32 %v2349, %v2382
        %v2415 = vadd.f32 %v2350, %v2383
        %v2416 = vadd.f32 %v2351, %v2384
        %v2417 = vadd.f32 %v2352, %v2385
        %v2418 = vadd.f32 %v2353, %v2386
        %v2419 = vadd.f32 %v2354, %v2387
        %2452 = vrot.lane.b32.xlu0 %v2290, 16
        %v2453 = vpop.permute.xlu0 %2452
        %2454 = vrot.lane.b32.xlu0 %v2291, 16
        %v2455 = vpop.permute.xlu0 %2454
        %2456 = vrot.lane.b32.xlu0 %v2292, 16
        %v2457 = vpop.permute.xlu0 %2456
        %2458 = vrot.lane.b32.xlu0 %v2293, 16
        %v2459 = vpop.permute.xlu0 %2458
        %2460 = vrot.lane.b32.xlu0 %v2294, 16
        %v2461 = vpop.permute.xlu0 %2460
        %2462 = vrot.lane.b32.xlu0 %v2295, 16
        %v2463 = vpop.permute.xlu0 %2462
        %2464 = vrot.lane.b32.xlu0 %v2296, 16
        %v2465 = vpop.permute.xlu0 %2464
        %2466 = vrot.lane.b32.xlu0 %v2297, 16
        %v2467 = vpop.permute.xlu0 %2466
        %2468 = vrot.lane.b32.xlu0 %v2298, 16
        %v2469 = vpop.permute.xlu0 %2468
        %2470 = vrot.lane.b32.xlu0 %v2299, 16
        %v2471 = vpop.permute.xlu0 %2470
        %2472 = vrot.lane.b32.xlu0 %v2300, 16
        %v2473 = vpop.permute.xlu0 %2472
        %2474 = vrot.lane.b32.xlu0 %v2301, 16
        %v2475 = vpop.permute.xlu0 %2474
        %2476 = vrot.lane.b32.xlu0 %v2302, 16
        %v2477 = vpop.permute.xlu0 %2476
        %2478 = vrot.lane.b32.xlu0 %v2303, 16
        %v2479 = vpop.permute.xlu0 %2478
        %2480 = vrot.lane.b32.xlu0 %v2304, 16
        %v2481 = vpop.permute.xlu0 %2480
        %2482 = vrot.lane.b32.xlu0 %v2305, 16
        %v2483 = vpop.permute.xlu0 %2482
        %2484 = vrot.lane.b32.xlu0 %v2306, 16
        %v2485 = vpop.permute.xlu0 %2484
        %2486 = vrot.lane.b32.xlu0 %v2307, 16
        %v2487 = vpop.permute.xlu0 %2486
        %2488 = vrot.lane.b32.xlu0 %v2308, 16
        %v2489 = vpop.permute.xlu0 %2488
        %2490 = vrot.lane.b32.xlu0 %v2309, 16
        %v2491 = vpop.permute.xlu0 %2490
        %2492 = vrot.lane.b32.xlu0 %v2310, 16
        %v2493 = vpop.permute.xlu0 %2492
        %2494 = vrot.lane.b32.xlu0 %v2311, 16
        %v2495 = vpop.permute.xlu0 %2494
        %2496 = vrot.lane.b32.xlu0 %v2312, 16
        %v2497 = vpop.permute.xlu0 %2496
        %2498 = vrot.lane.b32.xlu0 %v2313, 16
        %v2499 = vpop.permute.xlu0 %2498
        %2500 = vrot.lane.b32.xlu0 %v2314, 16
        %v2501 = vpop.permute.xlu0 %2500
        %2502 = vrot.lane.b32.xlu0 %v2315, 16
        %v2503 = vpop.permute.xlu0 %2502
        %2504 = vrot.lane.b32.xlu0 %v2316, 16
        %v2505 = vpop.permute.xlu0 %2504
        %2506 = vrot.lane.b32.xlu0 %v2317, 16
        %v2507 = vpop.permute.xlu0 %2506
        %2508 = vrot.lane.b32.xlu0 %v2318, 16
        %v2509 = vpop.permute.xlu0 %2508
        %2510 = vrot.lane.b32.xlu0 %v2319, 16
        %v2511 = vpop.permute.xlu0 %2510
        %2512 = vrot.lane.b32.xlu0 %v2320, 16
        %v2513 = vpop.permute.xlu0 %2512
        %2514 = vrot.lane.b32.xlu0 %v2321, 16
        %v2515 = vpop.permute.xlu0 %2514
        %v2548 = vsel %vm1565, %v2388, %v2453
        %v2549 = vsel %vm1565, %v2389, %v2455
        %v2550 = vsel %vm1565, %v2390, %v2457
        %v2551 = vsel %vm1565, %v2391, %v2459
        %v2552 = vsel %vm1565, %v2392, %v2461
        %v2553 = vsel %vm1565, %v2393, %v2463
        %v2554 = vsel %vm1565, %v2394, %v2465
        %v2555 = vsel %vm1565, %v2395, %v2467
        %v2556 = vsel %vm1565, %v2396, %v2469
        %v2557 = vsel %vm1565, %v2397, %v2471
        %v2558 = vsel %vm1565, %v2398, %v2473
        %v2559 = vsel %vm1565, %v2399, %v2475
        %v2560 = vsel %vm1565, %v2400, %v2477
        %v2561 = vsel %vm1565, %v2401, %v2479
        %v2562 = vsel %vm1565, %v2402, %v2481
        %v2563 = vsel %vm1565, %v2403, %v2483
        %v2564 = vsel %vm1565, %v2404, %v2485
        %v2565 = vsel %vm1565, %v2405, %v2487
        %v2566 = vsel %vm1565, %v2406, %v2489
        %v2567 = vsel %vm1565, %v2407, %v2491
        %v2568 = vsel %vm1565, %v2408, %v2493
        %v2569 = vsel %vm1565, %v2409, %v2495
        %v2570 = vsel %vm1565, %v2410, %v2497
        %v2571 = vsel %vm1565, %v2411, %v2499
        %v2572 = vsel %vm1565, %v2412, %v2501
        %v2573 = vsel %vm1565, %v2413, %v2503
        %v2574 = vsel %vm1565, %v2414, %v2505
        %v2575 = vsel %vm1565, %v2415, %v2507
        %v2576 = vsel %vm1565, %v2416, %v2509
        %v2577 = vsel %vm1565, %v2417, %v2511
        %v2578 = vsel %vm1565, %v2418, %v2513
        %v2579 = vsel %vm1565, %v2419, %v2515
        %vm2580 = vcmask 261120
        %2581 = vst.msk [vmem:[#allocation2] sm:$0xff] %vm2580, %v2548
        %2582 = vst.msk [vmem:[#allocation2 + $0x8] sm:$0xff] %vm2580, %v2549
        %2583 = vst.msk [vmem:[#allocation2 + $0x10] sm:$0xff] %vm2580, %v2550
        %2584 = vst.msk [vmem:[#allocation2 + $0x18] sm:$0xff] %vm2580, %v2551
        %2585 = vst.msk [vmem:[#allocation2 + $0x20] sm:$0xff] %vm2580, %v2552
        %2586 = vst.msk [vmem:[#allocation2 + $0x28] sm:$0xff] %vm2580, %v2553
        %2587 = vst.msk [vmem:[#allocation2 + $0x30] sm:$0xff] %vm2580, %v2554
        %2588 = vst.msk [vmem:[#allocation2 + $0x38] sm:$0xff] %vm2580, %v2555
        %2589 = vst.msk [vmem:[#allocation2 + $0x40] sm:$0xff] %vm2580, %v2556
        %2590 = vst.msk [vmem:[#allocation2 + $0x48] sm:$0xff] %vm2580, %v2557
        %2591 = vst.msk [vmem:[#allocation2 + $0x50] sm:$0xff] %vm2580, %v2558
        %2592 = vst.msk [vmem:[#allocation2 + $0x58] sm:$0xff] %vm2580, %v2559
        %2593 = vst.msk [vmem:[#allocation2 + $0x60] sm:$0xff] %vm2580, %v2560
        %2594 = vst.msk [vmem:[#allocation2 + $0x68] sm:$0xff] %vm2580, %v2561
        %2595 = vst.msk [vmem:[#allocation2 + $0x70] sm:$0xff] %vm2580, %v2562
        %2596 = vst.msk [vmem:[#allocation2 + $0x78] sm:$0xff] %vm2580, %v2563
        %2597 = vst.msk [vmem:[#allocation2 + $0x80] sm:$0xff] %vm2580, %v2564
        %2598 = vst.msk [vmem:[#allocation2 + $0x88] sm:$0xff] %vm2580, %v2565
        %2599 = vst.msk [vmem:[#allocation2 + $0x90] sm:$0xff] %vm2580, %v2566
        %2600 = vst.msk [vmem:[#allocation2 + $0x98] sm:$0xff] %vm2580, %v2567
        %2601 = vst.msk [vmem:[#allocation2 + $0xa0] sm:$0xff] %vm2580, %v2568
        %2602 = vst.msk [vmem:[#allocation2 + $0xa8] sm:$0xff] %vm2580, %v2569
        %2603 = vst.msk [vmem:[#allocation2 + $0xb0] sm:$0xff] %vm2580, %v2570
        %2604 = vst.msk [vmem:[#allocation2 + $0xb8] sm:$0xff] %vm2580, %v2571
        %2605 = vst.msk [vmem:[#allocation2 + $0xc0] sm:$0xff] %vm2580, %v2572
        %2606 = vst.msk [vmem:[#allocation2 + $0xc8] sm:$0xff] %vm2580, %v2573
        %2607 = vst.msk [vmem:[#allocation2 + $0xd0] sm:$0xff] %vm2580, %v2574
        %2608 = vst.msk [vmem:[#allocation2 + $0xd8] sm:$0xff] %vm2580, %v2575
        %2609 = vst.msk [vmem:[#allocation2 + $0xe0] sm:$0xff] %vm2580, %v2576
        %2610 = vst.msk [vmem:[#allocation2 + $0xe8] sm:$0xff] %vm2580, %v2577
        %2611 = vst.msk [vmem:[#allocation2 + $0xf0] sm:$0xff] %vm2580, %v2578
        %2612 = vst.msk [vmem:[#allocation2 + $0xf8] sm:$0xff] %vm2580, %v2579
        %v2613 = vld [vmem:[#allocation2] sm:$0xff]
        %v2614 = vld [vmem:[#allocation2 + $0x8] sm:$0xff]
        %v2615 = vld [vmem:[#allocation2 + $0x20] sm:$0xff]
        %v2616 = vld [vmem:[#allocation2 + $0x28] sm:$0xff]
        %v2617 = vld [vmem:[#allocation2 + $0x40] sm:$0xff]
        %v2618 = vld [vmem:[#allocation2 + $0x48] sm:$0xff]
        %v2619 = vld [vmem:[#allocation2 + $0x60] sm:$0xff]
        %v2620 = vld [vmem:[#allocation2 + $0x68] sm:$0xff]
        %v2621 = vld [vmem:[#allocation2 + $0x80] sm:$0xff]
        %v2622 = vld [vmem:[#allocation2 + $0x88] sm:$0xff]
        %v2623 = vld [vmem:[#allocation2 + $0xa0] sm:$0xff]
        %v2624 = vld [vmem:[#allocation2 + $0xa8] sm:$0xff]
        %v2625 = vld [vmem:[#allocation2 + $0xc0] sm:$0xff]
        %v2626 = vld [vmem:[#allocation2 + $0xc8] sm:$0xff]
        %v2627 = vld [vmem:[#allocation2 + $0xe0] sm:$0xff]
        %v2628 = vld [vmem:[#allocation2 + $0xe8] sm:$0xff]
        %2629 = vst.msk [vmem:[#allocation3] sm:$0xff] %vm2580, %v2613
        %2630 = vst.msk [vmem:[#allocation3 + $0x8] sm:$0xff] %vm2580, %v2614
        %2631 = vst.msk [vmem:[#allocation3 + $0x10] sm:$0xff] %vm2580, %v2615
        %2632 = vst.msk [vmem:[#allocation3 + $0x18] sm:$0xff] %vm2580, %v2616
        %2633 = vst.msk [vmem:[#allocation3 + $0x20] sm:$0xff] %vm2580, %v2617
        %2634 = vst.msk [vmem:[#allocation3 + $0x28] sm:$0xff] %vm2580, %v2618
        %2635 = vst.msk [vmem:[#allocation3 + $0x30] sm:$0xff] %vm2580, %v2619
        %2636 = vst.msk [vmem:[#allocation3 + $0x38] sm:$0xff] %vm2580, %v2620
        %2637 = vst.msk [vmem:[#allocation3 + $0x40] sm:$0xff] %vm2580, %v2621
        %2638 = vst.msk [vmem:[#allocation3 + $0x48] sm:$0xff] %vm2580, %v2622
        %2639 = vst.msk [vmem:[#allocation3 + $0x50] sm:$0xff] %vm2580, %v2623
        %2640 = vst.msk [vmem:[#allocation3 + $0x58] sm:$0xff] %vm2580, %v2624
        %2641 = vst.msk [vmem:[#allocation3 + $0x60] sm:$0xff] %vm2580, %v2625
        %2642 = vst.msk [vmem:[#allocation3 + $0x68] sm:$0xff] %vm2580, %v2626
        %2643 = vst.msk [vmem:[#allocation3 + $0x70] sm:$0xff] %vm2580, %v2627
        %2644 = vst.msk [vmem:[#allocation3 + $0x78] sm:$0xff] %vm2580, %v2628
        %v2645 = vld [vmem:[#allocation3] ss:$2 sm:$0xff]
        %s2646 = scalar_lea.vmem [#allocation3], 16
        %v2647 = vld [vmem:[%s2646] ss:$2 sm:$0xff]
        %s2648 = scalar_lea.vmem [#allocation3], 32
        %v2649 = vld [vmem:[%s2648] ss:$2 sm:$0xff]
        %s2650 = scalar_lea.vmem [#allocation3], 48
        %v2651 = vld [vmem:[%s2650] ss:$2 sm:$0xff]
        %s2652 = scalar_lea.vmem [#allocation3], 64
        %v2653 = vld [vmem:[%s2652] ss:$2 sm:$0xff]
        %s2654 = scalar_lea.vmem [#allocation3], 80
        %v2655 = vld [vmem:[%s2654] ss:$2 sm:$0xff]
        %s2656 = scalar_lea.vmem [#allocation3], 96
        %v2657 = vld [vmem:[%s2656] ss:$2 sm:$0xff]
        %s2658 = scalar_lea.vmem [#allocation3], 112
        %v2659 = vld [vmem:[%s2658] ss:$2 sm:$0xff]
        %v2660 = vld [vmem:[%s10] sm:$0x3]
        %v2661 = vmax.f32 %v2645, 0.0
        %v2662 = vmax.f32 %v2647, 0.0
        %v2663 = vmax.f32 %v2649, 0.0
        %v2664 = vmax.f32 %v2651, 0.0
        %v2665 = vmax.f32 %v2653, 0.0
        %v2666 = vmax.f32 %v2655, 0.0
        %v2667 = vmax.f32 %v2657, 0.0
        %v2668 = vmax.f32 %v2659, 0.0
        %v2669 = vpack.c.bf16 %v2662, %v2661
        %v2670 = vpack.c.bf16 %v2664, %v2663
        %v2671 = vpack.c.bf16 %v2666, %v2665
        %v2672 = vpack.c.bf16 %v2668, %v2667
        %v2673 = vld [vmem:[%s9] sm:$0xf]
        %v2674 = vld [vmem:[%s9 + $0x4] sm:$0xf]
        %v2675 = vld [vmem:[%s9 + $0x8] sm:$0xf]
        %v2676 = vld [vmem:[%s9 + $0xc] sm:$0xf]
        %v2681 = vunpack.c.l.b16 %v2673
        %v2682 = vunpack.c.l.b16 %v2674
        %v2683 = vunpack.c.l.b16 %v2675
        %v2684 = vunpack.c.l.b16 %v2676
        %v2685 = vpack.c.b16 %v2682, %v2681
        %v2686 = vpack.c.b16 %v2684, %v2683
        %v2690 = vsel %vm2580, %v2669, 0
        %v2693 = vsel %vm2580, %v2670, 0
        %v2696 = vsel %vm2580, %v2671, 0
        %v2699 = vsel %vm2580, %v2672, 0
        %2701 = vmatpush.bf16.msra.mxu0 0
        %2702 = vmatpush.bf16.msra.mxu0 0
        %2703 = vmatpush.bf16.msra.mxu0 0
        %2704 = vmatpush.bf16.msra.mxu0 0
        %2705 = vmatpush.bf16.msra.mxu0 0
        %2706 = vmatpush.bf16.msra.mxu0 0
        %2707 = vmatpush.bf16.msra.mxu0 %v2686
        %2708 = vmatpush.bf16.msra.mxu0 %v2685
        %2709 = vmatmul.bf16.gmra.mxu0 %v2690
        %v2710 = vpop.f32.mrf.mxu0
        %v2711 = vadd.f32 0.0, %v2710
        %v2712 = vpop.f32.mrf.mxu0
        %v2713 = vadd.f32 0.0, %v2712
        %2714 = vmatmul.bf16.gmra.mxu0 %v2693
        %v2715 = vpop.f32.mrf.mxu0
        %v2716 = vadd.f32 0.0, %v2715
        %v2717 = vpop.f32.mrf.mxu0
        %v2718 = vadd.f32 0.0, %v2717
        %2719 = vmatmul.bf16.gmra.mxu0 %v2696
        %v2720 = vpop.f32.mrf.mxu0
        %v2721 = vadd.f32 0.0, %v2720
        %v2722 = vpop.f32.mrf.mxu0
        %v2723 = vadd.f32 0.0, %v2722
        %2724 = vmatmul.bf16.gmra.mxu0 %v2699
        %v2725 = vpop.f32.mrf.mxu0
        %v2726 = vadd.f32 0.0, %v2725
        %v2727 = vpop.f32.mrf.mxu0
        %v2728 = vadd.f32 0.0, %v2727
        %2729 = vdwg.mxu0
        %v2730 = vperm.slane %v2660, 0
        %v2731 = vmul.f32 %v2711, %v2730
        %v2732 = vmul.f32 %v2713, %v2730
        %v2733 = vmul.f32 %v2716, %v2730
        %v2734 = vmul.f32 %v2718, %v2730
        %v2735 = vmul.f32 %v2721, %v2730
        %v2736 = vmul.f32 %v2723, %v2730
        %v2737 = vmul.f32 %v2726, %v2730
        %v2738 = vmul.f32 %v2728, %v2730
        %v2739 = vperm.slane %v2660, 1
        %v2740 = vadd.f32 %v2731, %v2739
        %v2741 = vadd.f32 %v2732, %v2739
        %v2742 = vadd.f32 %v2733, %v2739
        %v2743 = vadd.f32 %v2734, %v2739
        %v2744 = vadd.f32 %v2735, %v2739
        %v2745 = vadd.f32 %v2736, %v2739
        %v2746 = vadd.f32 %v2737, %v2739
        %v2747 = vadd.f32 %v2738, %v2739
        %s2748 = sld [smem:[#allocation7 + $0x6]]
        %s2749 = sld [smem:[#allocation7 + $0x7]]
        %s2750 = sld [smem:[#allocation7 + $0x9]]
        %s2751 = sld [smem:[#allocation7 + $0xa]]
        %s2752 = sld [smem:[#allocation7 + $0xb]]
        %s2753 = sld [smem:[#allocation8 + $0x2]]
        %s2754 = sld [smem:[#allocation8 + $0x3]]
        %v2755 = vld [vmem:[%s12] sm:$0x3]
        %v2756 = vmax.f32 %v2740, 0.0
        %v2757 = vmax.f32 %v2741, 0.0
        %v2758 = vmax.f32 %v2742, 0.0
        %v2759 = vmax.f32 %v2743, 0.0
        %v2760 = vmax.f32 %v2744, 0.0
        %v2761 = vmax.f32 %v2745, 0.0
        %v2762 = vmax.f32 %v2746, 0.0
        %v2763 = vmax.f32 %v2747, 0.0
        %v2764 = vpack.c.bf16 %v2757, %v2756
        %v2765 = vpack.c.bf16 %v2759, %v2758
        %v2766 = vpack.c.bf16 %v2761, %v2760
        %v2767 = vpack.c.bf16 %v2763, %v2762
        %v2768 = vld [vmem:[%s11] sm:$0xf]
        %v2769 = vld [vmem:[%s11 + $0x4] sm:$0xf]
        %v2770 = vld [vmem:[%s11 + $0x8] sm:$0xf]
        %v2771 = vld [vmem:[%s11 + $0xc] sm:$0xf]
        %v2776 = vunpack.c.l.b16 %v2768
        %v2777 = vunpack.c.l.b16 %v2769
        %v2778 = vunpack.c.l.b16 %v2770
        %v2779 = vunpack.c.l.b16 %v2771
        %v2780 = vpack.c.b16 %v2777, %v2776
        %v2781 = vpack.c.b16 %v2779, %v2778
        %v2785 = vsel %vm2580, %v2764, 0
        %v2788 = vsel %vm2580, %v2765, 0
        %v2791 = vsel %vm2580, %v2766, 0
        %v2794 = vsel %vm2580, %v2767, 0
        %2796 = vmatpush.bf16.msra.mxu0 0
        %2797 = vmatpush.bf16.msra.mxu0 0
        %2798 = vmatpush.bf16.msra.mxu0 0
        %2799 = vmatpush.bf16.msra.mxu0 0
        %2800 = vmatpush.bf16.msra.mxu0 0
        %2801 = vmatpush.bf16.msra.mxu0 0
        %2802 = vmatpush.bf16.msra.mxu0 %v2781
        %2803 = vmatpush.bf16.msra.mxu0 %v2780
        %2804 = vmatmul.bf16.gmra.mxu0 %v2785
        %v2805 = vpop.f32.mrf.mxu0
        %v2806 = vadd.f32 0.0, %v2805
        %v2807 = vpop.f32.mrf.mxu0
        %v2808 = vadd.f32 0.0, %v2807
        %2809 = vmatmul.bf16.gmra.mxu0 %v2788
        %v2810 = vpop.f32.mrf.mxu0
        %v2811 = vadd.f32 0.0, %v2810
        %v2812 = vpop.f32.mrf.mxu0
        %v2813 = vadd.f32 0.0, %v2812
        %2814 = vmatmul.bf16.gmra.mxu0 %v2791
        %v2815 = vpop.f32.mrf.mxu0
        %v2816 = vadd.f32 0.0, %v2815
        %v2817 = vpop.f32.mrf.mxu0
        %v2818 = vadd.f32 0.0, %v2817
        %2819 = vmatmul.bf16.gmra.mxu0 %v2794
        %v2820 = vpop.f32.mrf.mxu0
        %v2821 = vadd.f32 0.0, %v2820
        %v2822 = vpop.f32.mrf.mxu0
        %v2823 = vadd.f32 0.0, %v2822
        %2824 = vdwg.mxu0
        %v2825 = vperm.slane %v2755, 0
        %v2826 = vmul.f32 %v2806, %v2825
        %v2827 = vmul.f32 %v2808, %v2825
        %v2828 = vmul.f32 %v2811, %v2825
        %v2829 = vmul.f32 %v2813, %v2825
        %v2830 = vmul.f32 %v2816, %v2825
        %v2831 = vmul.f32 %v2818, %v2825
        %v2832 = vmul.f32 %v2821, %v2825
        %v2833 = vmul.f32 %v2823, %v2825
        %v2834 = vperm.slane %v2755, 1
        %v2835 = vadd.f32 %v2826, %v2834
        %v2836 = vadd.f32 %v2827, %v2834
        %v2837 = vadd.f32 %v2828, %v2834
        %v2838 = vadd.f32 %v2829, %v2834
        %v2839 = vadd.f32 %v2830, %v2834
        %v2840 = vadd.f32 %v2831, %v2834
        %v2841 = vadd.f32 %v2832, %v2834
        %v2842 = vadd.f32 %v2833, %v2834
        %v2843 = vstv %s2748
        %v2844 = vmul.f32 %v2843, %v2835
        %v2845 = vmul.f32 %v2843, %v2836
        %v2846 = vmul.f32 %v2843, %v2837
        %v2847 = vmul.f32 %v2843, %v2838
        %v2848 = vmul.f32 %v2843, %v2839
        %v2849 = vmul.f32 %v2843, %v2840
        %v2850 = vmul.f32 %v2843, %v2841
        %v2851 = vmul.f32 %v2843, %v2842
        %v2852 = vstv %s2749
        %v2853 = vmul.f32 %v2852, %v2835
        %v2854 = vmul.f32 %v2852, %v2836
        %v2855 = vmul.f32 %v2852, %v2837
        %v2856 = vmul.f32 %v2852, %v2838
        %v2857 = vmul.f32 %v2852, %v2839
        %v2858 = vmul.f32 %v2852, %v2840
        %v2859 = vmul.f32 %v2852, %v2841
        %v2860 = vmul.f32 %v2852, %v2842
        %2869 = vrot.lane.b32.xlu0 %v2853, 96
        %v2870 = vpop.permute.xlu0 %2869
        %2871 = vrot.lane.b32.xlu0 %v2854, 96
        %v2872 = vpop.permute.xlu0 %2871
        %2873 = vrot.lane.b32.xlu0 %v2855, 96
        %v2874 = vpop.permute.xlu0 %2873
        %2875 = vrot.lane.b32.xlu0 %v2856, 96
        %v2876 = vpop.permute.xlu0 %2875
        %2877 = vrot.lane.b32.xlu0 %v2857, 96
        %v2878 = vpop.permute.xlu0 %2877
        %2879 = vrot.lane.b32.xlu0 %v2858, 96
        %v2880 = vpop.permute.xlu0 %2879
        %2881 = vrot.lane.b32.xlu0 %v2859, 96
        %v2882 = vpop.permute.xlu0 %2881
        %2883 = vrot.lane.b32.xlu0 %v2860, 96
        %v2884 = vpop.permute.xlu0 %2883
        %v2893 = vadd.f32 %v2844, %v2870
        %v2894 = vadd.f32 %v2845, %v2872
        %v2895 = vadd.f32 %v2846, %v2874
        %v2896 = vadd.f32 %v2847, %v2876
        %v2897 = vadd.f32 %v2848, %v2878
        %v2898 = vadd.f32 %v2849, %v2880
        %v2899 = vadd.f32 %v2850, %v2882
        %v2900 = vadd.f32 %v2851, %v2884
        %v2901 = vld [vmem:[%s14] sm:$0x3]
        %v2902 = vmax.f32 %v2893, 0.0
        %v2903 = vmax.f32 %v2894, 0.0
        %v2904 = vmax.f32 %v2895, 0.0
        %v2905 = vmax.f32 %v2896, 0.0
        %v2906 = vmax.f32 %v2897, 0.0
        %v2907 = vmax.f32 %v2898, 0.0
        %v2908 = vmax.f32 %v2899, 0.0
        %v2909 = vmax.f32 %v2900, 0.0
        %v2910 = vpack.c.bf16 %v2903, %v2902
        %v2911 = vpack.c.bf16 %v2905, %v2904
        %v2912 = vpack.c.bf16 %v2907, %v2906
        %v2913 = vpack.c.bf16 %v2909, %v2908
        %v2914 = vld [vmem:[%s13] sm:$0xf]
        %v2915 = vld [vmem:[%s13 + $0x4] sm:$0xf]
        %v2916 = vld [vmem:[%s13 + $0x8] sm:$0xf]
        %v2917 = vld [vmem:[%s13 + $0xc] sm:$0xf]
        %v2922 = vunpack.c.l.b16 %v2914
        %v2923 = vunpack.c.l.b16 %v2915
        %v2924 = vunpack.c.l.b16 %v2916
        %v2925 = vunpack.c.l.b16 %v2917
        %v2926 = vpack.c.b16 %v2923, %v2922
        %v2927 = vpack.c.b16 %v2925, %v2924
        %v2931 = vsel %vm2580, %v2910, 0
        %v2934 = vsel %vm2580, %v2911, 0
        %v2937 = vsel %vm2580, %v2912, 0
        %v2940 = vsel %vm2580, %v2913, 0
        %2942 = vmatpush.bf16.msra.mxu0 0
        %2943 = vmatpush.bf16.msra.mxu0 0
        %2944 = vmatpush.bf16.msra.mxu0 0
        %2945 = vmatpush.bf16.msra.mxu0 0
        %2946 = vmatpush.bf16.msra.mxu0 0
        %2947 = vmatpush.bf16.msra.mxu0 0
        %2948 = vmatpush.bf16.msra.mxu0 %v2927
        %2949 = vmatpush.bf16.msra.mxu0 %v2926
        %2950 = vmatmul.bf16.gmra.mxu0 %v2931
        %v2951 = vpop.f32.mrf.mxu0
        %v2952 = vadd.f32 0.0, %v2951
        %v2953 = vpop.f32.mrf.mxu0
        %v2954 = vadd.f32 0.0, %v2953
        %2955 = vmatmul.bf16.gmra.mxu0 %v2934
        %v2956 = vpop.f32.mrf.mxu0
        %v2957 = vadd.f32 0.0, %v2956
        %v2958 = vpop.f32.mrf.mxu0
        %v2959 = vadd.f32 0.0, %v2958
        %2960 = vmatmul.bf16.gmra.mxu0 %v2937
        %v2961 = vpop.f32.mrf.mxu0
        %v2962 = vadd.f32 0.0, %v2961
        %v2963 = vpop.f32.mrf.mxu0
        %v2964 = vadd.f32 0.0, %v2963
        %2965 = vmatmul.bf16.gmra.mxu0 %v2940
        %v2966 = vpop.f32.mrf.mxu0
        %v2967 = vadd.f32 0.0, %v2966
        %v2968 = vpop.f32.mrf.mxu0
        %v2969 = vadd.f32 0.0, %v2968
        %2970 = vdwg.mxu0
        %v2971 = vperm.slane %v2901, 0
        %v2972 = vmul.f32 %v2952, %v2971
        %v2973 = vmul.f32 %v2954, %v2971
        %v2974 = vmul.f32 %v2957, %v2971
        %v2975 = vmul.f32 %v2959, %v2971
        %v2976 = vmul.f32 %v2962, %v2971
        %v2977 = vmul.f32 %v2964, %v2971
        %v2978 = vmul.f32 %v2967, %v2971
        %v2979 = vmul.f32 %v2969, %v2971
        %v2980 = vperm.slane %v2901, 1
        %v2981 = vadd.f32 %v2972, %v2980
        %v2982 = vadd.f32 %v2973, %v2980
        %v2983 = vadd.f32 %v2974, %v2980
        %v2984 = vadd.f32 %v2975, %v2980
        %v2985 = vadd.f32 %v2976, %v2980
        %v2986 = vadd.f32 %v2977, %v2980
        %v2987 = vadd.f32 %v2978, %v2980
        %v2988 = vadd.f32 %v2979, %v2980
        %v2989 = vstv %s2750
        %v2990 = vmul.f32 %v2989, %v2835
        %v2991 = vmul.f32 %v2989, %v2836
        %v2992 = vmul.f32 %v2989, %v2837
        %v2993 = vmul.f32 %v2989, %v2838
        %v2994 = vmul.f32 %v2989, %v2839
        %v2995 = vmul.f32 %v2989, %v2840
        %v2996 = vmul.f32 %v2989, %v2841
        %v2997 = vmul.f32 %v2989, %v2842
        %v2998 = vstv %s2751
        %v2999 = vmul.f32 %v2998, %v2835
        %v3000 = vmul.f32 %v2998, %v2836
        %v3001 = vmul.f32 %v2998, %v2837
        %v3002 = vmul.f32 %v2998, %v2838
        %v3003 = vmul.f32 %v2998, %v2839
        %v3004 = vmul.f32 %v2998, %v2840
        %v3005 = vmul.f32 %v2998, %v2841
        %v3006 = vmul.f32 %v2998, %v2842
        %3015 = vrot.lane.b32.xlu0 %v2999, 96
        %v3016 = vpop.permute.xlu0 %3015
        %3017 = vrot.lane.b32.xlu0 %v3000, 96
        %v3018 = vpop.permute.xlu0 %3017
        %3019 = vrot.lane.b32.xlu0 %v3001, 96
        %v3020 = vpop.permute.xlu0 %3019
        %3021 = vrot.lane.b32.xlu0 %v3002, 96
        %v3022 = vpop.permute.xlu0 %3021
        %3023 = vrot.lane.b32.xlu0 %v3003, 96
        %v3024 = vpop.permute.xlu0 %3023
        %3025 = vrot.lane.b32.xlu0 %v3004, 96
        %v3026 = vpop.permute.xlu0 %3025
        %3027 = vrot.lane.b32.xlu0 %v3005, 96
        %v3028 = vpop.permute.xlu0 %3027
        %3029 = vrot.lane.b32.xlu0 %v3006, 96
        %v3030 = vpop.permute.xlu0 %3029
        %v3039 = vadd.f32 %v2990, %v3016
        %v3040 = vadd.f32 %v2991, %v3018
        %v3041 = vadd.f32 %v2992, %v3020
        %v3042 = vadd.f32 %v2993, %v3022
        %v3043 = vadd.f32 %v2994, %v3024
        %v3044 = vadd.f32 %v2995, %v3026
        %v3045 = vadd.f32 %v2996, %v3028
        %v3046 = vadd.f32 %v2997, %v3030
        %v3047 = vstv %s2752
        %v3048 = vmul.f32 %v3047, %v2981
        %v3049 = vmul.f32 %v3047, %v2982
        %v3050 = vmul.f32 %v3047, %v2983
        %v3051 = vmul.f32 %v3047, %v2984
        %v3052 = vmul.f32 %v3047, %v2985
        %v3053 = vmul.f32 %v3047, %v2986
        %v3054 = vmul.f32 %v3047, %v2987
        %v3055 = vmul.f32 %v3047, %v2988
        %v3056 = vadd.f32 %v3039, %v3048
        %v3057 = vadd.f32 %v3040, %v3049
        %v3058 = vadd.f32 %v3041, %v3050
        %v3059 = vadd.f32 %v3042, %v3051
        %v3060 = vadd.f32 %v3043, %v3052
        %v3061 = vadd.f32 %v3044, %v3053
        %v3062 = vadd.f32 %v3045, %v3054
        %v3063 = vadd.f32 %v3046, %v3055
        %s3064 = scalar_lea.vmem %s14, 2
        %v3065 = vld [vmem:[%s3064] sm:$0x3]
        %v3066 = vmax.f32 %v3056, 0.0
        %v3067 = vmax.f32 %v3057, 0.0
        %v3068 = vmax.f32 %v3058, 0.0
        %v3069 = vmax.f32 %v3059, 0.0
        %v3070 = vmax.f32 %v3060, 0.0
        %v3071 = vmax.f32 %v3061, 0.0
        %v3072 = vmax.f32 %v3062, 0.0
        %v3073 = vmax.f32 %v3063, 0.0
        %v3074 = vpack.c.bf16 %v3067, %v3066
        %v3075 = vpack.c.bf16 %v3069, %v3068
        %v3076 = vpack.c.bf16 %v3071, %v3070
        %v3077 = vpack.c.bf16 %v3073, %v3072
        %s3078 = scalar_lea.vmem %s13, 16
        %v3079 = vld [vmem:[%s3078] sm:$0xf]
        %v3080 = vld [vmem:[%s3078 + $0x4] sm:$0xf]
        %v3081 = vld [vmem:[%s3078 + $0x8] sm:$0xf]
        %v3082 = vld [vmem:[%s3078 + $0xc] sm:$0xf]
        %v3087 = vunpack.c.l.b16 %v3079
        %v3088 = vunpack.c.l.b16 %v3080
        %v3089 = vunpack.c.l.b16 %v3081
        %v3090 = vunpack.c.l.b16 %v3082
        %v3091 = vpack.c.b16 %v3088, %v3087
        %v3092 = vpack.c.b16 %v3090, %v3089
        %v3096 = vsel %vm2580, %v3074, 0
        %v3099 = vsel %vm2580, %v3075, 0
        %v3102 = vsel %vm2580, %v3076, 0
        %v3105 = vsel %vm2580, %v3077, 0
        %3107 = vmatpush.bf16.msra.mxu0 0
        %3108 = vmatpush.bf16.msra.mxu0 0
        %3109 = vmatpush.bf16.msra.mxu0 0
        %3110 = vmatpush.bf16.msra.mxu0 0
        %3111 = vmatpush.bf16.msra.mxu0 0
        %3112 = vmatpush.bf16.msra.mxu0 0
        %3113 = vmatpush.bf16.msra.mxu0 %v3092
        %3114 = vmatpush.bf16.msra.mxu0 %v3091
        %3115 = vmatmul.bf16.gmra.mxu0 %v3096
        %v3116 = vpop.f32.mrf.mxu0
        %v3117 = vadd.f32 0.0, %v3116
        %v3118 = vpop.f32.mrf.mxu0
        %v3119 = vadd.f32 0.0, %v3118
        %3120 = vmatmul.bf16.gmra.mxu0 %v3099
        %v3121 = vpop.f32.mrf.mxu0
        %v3122 = vadd.f32 0.0, %v3121
        %v3123 = vpop.f32.mrf.mxu0
        %v3124 = vadd.f32 0.0, %v3123
        %3125 = vmatmul.bf16.gmra.mxu0 %v3102
        %v3126 = vpop.f32.mrf.mxu0
        %v3127 = vadd.f32 0.0, %v3126
        %v3128 = vpop.f32.mrf.mxu0
        %v3129 = vadd.f32 0.0, %v3128
        %3130 = vmatmul.bf16.gmra.mxu0 %v3105
        %v3131 = vpop.f32.mrf.mxu0
        %v3132 = vadd.f32 0.0, %v3131
        %v3133 = vpop.f32.mrf.mxu0
        %v3134 = vadd.f32 0.0, %v3133
        %3135 = vdwg.mxu0
        %v3136 = vperm.slane %v3065, 0
        %v3137 = vmul.f32 %v3117, %v3136
        %v3138 = vmul.f32 %v3119, %v3136
        %v3139 = vmul.f32 %v3122, %v3136
        %v3140 = vmul.f32 %v3124, %v3136
        %v3141 = vmul.f32 %v3127, %v3136
        %v3142 = vmul.f32 %v3129, %v3136
        %v3143 = vmul.f32 %v3132, %v3136
        %v3144 = vmul.f32 %v3134, %v3136
        %v3145 = vperm.slane %v3065, 1
        %v3146 = vadd.f32 %v3137, %v3145
        %v3147 = vadd.f32 %v3138, %v3145
        %v3148 = vadd.f32 %v3139, %v3145
        %v3149 = vadd.f32 %v3140, %v3145
        %v3150 = vadd.f32 %v3141, %v3145
        %v3151 = vadd.f32 %v3142, %v3145
        %v3152 = vadd.f32 %v3143, %v3145
        %v3153 = vadd.f32 %v3144, %v3145
        %v3154 = vstv %s2753
        %v3155 = vmul.f32 %v3154, %v2981
        %v3156 = vmul.f32 %v3154, %v2982
        %v3157 = vmul.f32 %v3154, %v2983
        %v3158 = vmul.f32 %v3154, %v2984
        %v3159 = vmul.f32 %v3154, %v2985
        %v3160 = vmul.f32 %v3154, %v2986
        %v3161 = vmul.f32 %v3154, %v2987
        %v3162 = vmul.f32 %v3154, %v2988
        %v3163 = vstv %s2754
        %v3164 = vmul.f32 %v3163, %v3146
        %v3165 = vmul.f32 %v3163, %v3147
        %v3166 = vmul.f32 %v3163, %v3148
        %v3167 = vmul.f32 %v3163, %v3149
        %v3168 = vmul.f32 %v3163, %v3150
        %v3169 = vmul.f32 %v3163, %v3151
        %v3170 = vmul.f32 %v3163, %v3152
        %v3171 = vmul.f32 %v3163, %v3153
        %v3172 = vadd.f32 %v3155, %v3164
        %v3173 = vadd.f32 %v3156, %v3165
        %v3174 = vadd.f32 %v3157, %v3166
        %v3175 = vadd.f32 %v3158, %v3167
        %v3176 = vadd.f32 %v3159, %v3168
        %v3177 = vadd.f32 %v3160, %v3169
        %v3178 = vadd.f32 %v3161, %v3170
        %v3179 = vadd.f32 %v3162, %v3171
        %3188 = vrot.lane.b32.xlu0 %v3146, 32
        %v3189 = vpop.permute.xlu0 %3188
        %3190 = vrot.lane.b32.xlu0 %v3147, 32
        %v3191 = vpop.permute.xlu0 %3190
        %3192 = vrot.lane.b32.xlu0 %v3148, 32
        %v3193 = vpop.permute.xlu0 %3192
        %3194 = vrot.lane.b32.xlu0 %v3149, 32
        %v3195 = vpop.permute.xlu0 %3194
        %3196 = vrot.lane.b32.xlu0 %v3150, 32
        %v3197 = vpop.permute.xlu0 %3196
        %3198 = vrot.lane.b32.xlu0 %v3151, 32
        %v3199 = vpop.permute.xlu0 %3198
        %3200 = vrot.lane.b32.xlu0 %v3152, 32
        %v3201 = vpop.permute.xlu0 %3200
        %3202 = vrot.lane.b32.xlu0 %v3153, 32
        %v3203 = vpop.permute.xlu0 %3202
        %v3212 = vsel %vm2580, %v3172, %v3189
        %v3213 = vsel %vm2580, %v3173, %v3191
        %v3214 = vsel %vm2580, %v3174, %v3193
        %v3215 = vsel %vm2580, %v3175, %v3195
        %v3216 = vsel %vm2580, %v3176, %v3197
        %v3217 = vsel %vm2580, %v3177, %v3199
        %v3218 = vsel %vm2580, %v3178, %v3201
        %v3219 = vsel %vm2580, %v3179, %v3203
        %vm3220 = vcmask 523264
        %3221 = vst.msk [vmem:[#allocation4] sm:$0xff] %vm3220, %v3212
        %3222 = vst.msk [vmem:[#allocation4 + $0x8] sm:$0xff] %vm3220, %v3213
        %3223 = vst.msk [vmem:[#allocation4 + $0x10] sm:$0xff] %vm3220, %v3214
        %3224 = vst.msk [vmem:[#allocation4 + $0x18] sm:$0xff] %vm3220, %v3215
        %3225 = vst.msk [vmem:[#allocation4 + $0x20] sm:$0xff] %vm3220, %v3216
        %3226 = vst.msk [vmem:[#allocation4 + $0x28] sm:$0xff] %vm3220, %v3217
        %3227 = vst.msk [vmem:[#allocation4 + $0x30] sm:$0xff] %vm3220, %v3218
        %3228 = vst.msk [vmem:[#allocation4 + $0x38] sm:$0xff] %vm3220, %v3219
        %v3229 = vld [vmem:[#allocation4] sm:$0xff]
        %v3230 = vld [vmem:[#allocation4 + $0x10] sm:$0xff]
        %v3231 = vld [vmem:[#allocation4 + $0x20] sm:$0xff]
        %v3232 = vld [vmem:[#allocation4 + $0x30] sm:$0xff]
        %3233 = vst.msk [vmem:[#allocation5] sm:$0xff] %vm3220, %v3229
        %3234 = vst.msk [vmem:[#allocation5 + $0x8] sm:$0xff] %vm3220, %v3230
        %3235 = vst.msk [vmem:[#allocation5 + $0x10] sm:$0xff] %vm3220, %v3231
        %3236 = vst.msk [vmem:[#allocation5 + $0x18] sm:$0xff] %vm3220, %v3232
        %v3237 = vld [vmem:[#allocation5] ss:$2 sm:$0xff]
        %s3238 = scalar_lea.vmem [#allocation5], 16
        %v3239 = vld [vmem:[%s3238] ss:$2 sm:$0xff]
        %v3240 = vld [vmem:[%s16] sm:$0x3]
        %v3241 = vmax.f32 %v3237, 0.0
        %v3242 = vmax.f32 %v3239, 0.0
        %v3243 = vpack.c.bf16 %v3242, %v3241
        %v3244 = vld [vmem:[%s15] sm:$0xf]
        %v3245 = vld [vmem:[%s15 + $0x4] sm:$0xf]
        %v3246 = vld [vmem:[%s15 + $0x8] sm:$0xf]
        %v3247 = vld [vmem:[%s15 + $0xc] sm:$0xf]
        %v3248 = vld [vmem:[%s15 + $0x10] sm:$0xf]
        %v3249 = vld [vmem:[%s15 + $0x14] sm:$0xf]
        %v3250 = vld [vmem:[%s15 + $0x18] sm:$0xf]
        %v3251 = vld [vmem:[%s15 + $0x1c] sm:$0xf]
        %v3260 = vunpack.c.l.b16 %v3244
        %v3261 = vunpack.c.l.b16 %v3245
        %v3262 = vunpack.c.l.b16 %v3246
        %v3263 = vunpack.c.l.b16 %v3247
        %v3264 = vunpack.c.l.b16 %v3248
        %v3265 = vunpack.c.l.b16 %v3249
        %v3266 = vunpack.c.l.b16 %v3250
        %v3267 = vunpack.c.l.b16 %v3251
        %v3268 = vpack.c.b16 %v3261, %v3260
        %v3269 = vpack.c.b16 %v3263, %v3262
        %v3270 = vpack.c.b16 %v3265, %v3264
        %v3271 = vpack.c.b16 %v3267, %v3266
        %v3277 = vsel %vm3220, %v3243, 0
        %3279 = vmatpush.bf16.msra.mxu0 0
        %3280 = vmatpush.bf16.msra.mxu0 0
        %3281 = vmatpush.bf16.msra.mxu0 0
        %3282 = vmatpush.bf16.msra.mxu0 0
        %3283 = vmatpush.bf16.msra.mxu0 %v3271
        %3284 = vmatpush.bf16.msra.mxu0 %v3270
        %3285 = vmatpush.bf16.msra.mxu0 %v3269
        %3286 = vmatpush.bf16.msra.mxu0 %v3268
        %3287 = vmatmul.bf16.gmra.mxu0 %v3277
        %v3288 = vpop.f32.mrf.mxu0
        %v3289 = vadd.f32 0.0, %v3288
        %v3290 = vpop.f32.mrf.mxu0
        %v3291 = vadd.f32 0.0, %v3290
        %3292 = vdwg.mxu0
        %v3293 = vperm.slane %v3240, 0
        %v3294 = vmul.f32 %v3289, %v3293
        %v3295 = vmul.f32 %v3291, %v3293
        %v3296 = vperm.slane %v3240, 1
        %v3297 = vadd.f32 %v3294, %v3296
        %v3298 = vadd.f32 %v3295, %v3296
        %s3299 = sld [smem:[#allocation7 + $0xc]]
        %s3300 = sld [smem:[#allocation7 + $0xd]]
        %s3301 = sld [smem:[#allocation7 + $0xf]]
        %s3302 = sld [smem:[#allocation7 + $0x10]]
        %s3303 = sld [smem:[#allocation7 + $0x11]]
        %s3304 = sld [smem:[#allocation8 + $0x4]]
        %s3305 = sld [smem:[#allocation8 + $0x5]]
        %v3306 = vld [vmem:[%s18] sm:$0x3]
        %v3307 = vmax.f32 %v3297, 0.0
        %v3308 = vmax.f32 %v3298, 0.0
        %v3309 = vpack.c.bf16 %v3308, %v3307
        %v3310 = vld [vmem:[%s17] sm:$0xf]
        %v3311 = vld [vmem:[%s17 + $0x4] sm:$0xf]
        %v3312 = vld [vmem:[%s17 + $0x8] sm:$0xf]
        %v3313 = vld [vmem:[%s17 + $0xc] sm:$0xf]
        %v3314 = vld [vmem:[%s17 + $0x10] sm:$0xf]
        %v3315 = vld [vmem:[%s17 + $0x14] sm:$0xf]
        %v3316 = vld [vmem:[%s17 + $0x18] sm:$0xf]
        %v3317 = vld [vmem:[%s17 + $0x1c] sm:$0xf]
        %v3326 = vunpack.c.l.b16 %v3310
        %v3327 = vunpack.c.l.b16 %v3311
        %v3328 = vunpack.c.l.b16 %v3312
        %v3329 = vunpack.c.l.b16 %v3313
        %v3330 = vunpack.c.l.b16 %v3314
        %v3331 = vunpack.c.l.b16 %v3315
        %v3332 = vunpack.c.l.b16 %v3316
        %v3333 = vunpack.c.l.b16 %v3317
        %v3334 = vpack.c.b16 %v3327, %v3326
        %v3335 = vpack.c.b16 %v3329, %v3328
        %v3336 = vpack.c.b16 %v3331, %v3330
        %v3337 = vpack.c.b16 %v3333, %v3332
        %v3343 = vsel %vm3220, %v3309, 0
        %3345 = vmatpush.bf16.msra.mxu0 0
        %3346 = vmatpush.bf16.msra.mxu0 0
        %3347 = vmatpush.bf16.msra.mxu0 0
        %3348 = vmatpush.bf16.msra.mxu0 0
        %3349 = vmatpush.bf16.msra.mxu0 %v3337
        %3350 = vmatpush.bf16.msra.mxu0 %v3336
        %3351 = vmatpush.bf16.msra.mxu0 %v3335
        %3352 = vmatpush.bf16.msra.mxu0 %v3334
        %3353 = vmatmul.bf16.gmra.mxu0 %v3343
        %v3354 = vpop.f32.mrf.mxu0
        %v3355 = vadd.f32 0.0, %v3354
        %v3356 = vpop.f32.mrf.mxu0
        %v3357 = vadd.f32 0.0, %v3356
        %3358 = vdwg.mxu0
        %v3359 = vperm.slane %v3306, 0
        %v3360 = vmul.f32 %v3355, %v3359
        %v3361 = vmul.f32 %v3357, %v3359
        %v3362 = vperm.slane %v3306, 1
        %v3363 = vadd.f32 %v3360, %v3362
        %v3364 = vadd.f32 %v3361, %v3362
        %v3365 = vstv %s3299
        %v3366 = vmul.f32 %v3365, %v3363
        %v3367 = vmul.f32 %v3365, %v3364
        %v3368 = vstv %s3300
        %v3369 = vmul.f32 %v3368, %v3363
        %v3370 = vmul.f32 %v3368, %v3364
        %3373 = vrot.lane.b32.xlu0 %v3369, 64
        %v3374 = vpop.permute.xlu0 %3373
        %3375 = vrot.lane.b32.xlu0 %v3370, 64
        %v3376 = vpop.permute.xlu0 %3375
        %v3379 = vadd.f32 %v3366, %v3374
        %v3380 = vadd.f32 %v3367, %v3376
        %v3381 = vld [vmem:[%s20] sm:$0x3]
        %v3382 = vmax.f32 %v3379, 0.0
        %v3383 = vmax.f32 %v3380, 0.0
        %v3384 = vpack.c.bf16 %v3383, %v3382
        %v3385 = vld [vmem:[%s19] sm:$0xf]
        %v3386 = vld [vmem:[%s19 + $0x4] sm:$0xf]
        %v3387 = vld [vmem:[%s19 + $0x8] sm:$0xf]
        %v3388 = vld [vmem:[%s19 + $0xc] sm:$0xf]
        %v3389 = vld [vmem:[%s19 + $0x10] sm:$0xf]
        %v3390 = vld [vmem:[%s19 + $0x14] sm:$0xf]
        %v3391 = vld [vmem:[%s19 + $0x18] sm:$0xf]
        %v3392 = vld [vmem:[%s19 + $0x1c] sm:$0xf]
        %v3401 = vunpack.c.l.b16 %v3385
        %v3402 = vunpack.c.l.b16 %v3386
        %v3403 = vunpack.c.l.b16 %v3387
        %v3404 = vunpack.c.l.b16 %v3388
        %v3405 = vunpack.c.l.b16 %v3389
        %v3406 = vunpack.c.l.b16 %v3390
        %v3407 = vunpack.c.l.b16 %v3391
        %v3408 = vunpack.c.l.b16 %v3392
        %v3409 = vpack.c.b16 %v3402, %v3401
        %v3410 = vpack.c.b16 %v3404, %v3403
        %v3411 = vpack.c.b16 %v3406, %v3405
        %v3412 = vpack.c.b16 %v3408, %v3407
        %v3418 = vsel %vm3220, %v3384, 0
        %3420 = vmatpush.bf16.msra.mxu0 0
        %3421 = vmatpush.bf16.msra.mxu0 0
        %3422 = vmatpush.bf16.msra.mxu0 0
        %3423 = vmatpush.bf16.msra.mxu0 0
        %3424 = vmatpush.bf16.msra.mxu0 %v3412
        %3425 = vmatpush.bf16.msra.mxu0 %v3411
        %3426 = vmatpush.bf16.msra.mxu0 %v3410
        %3427 = vmatpush.bf16.msra.mxu0 %v3409
        %3428 = vmatmul.bf16.gmra.mxu0 %v3418
        %v3429 = vpop.f32.mrf.mxu0
        %v3430 = vadd.f32 0.0, %v3429
        %v3431 = vpop.f32.mrf.mxu0
        %v3432 = vadd.f32 0.0, %v3431
        %3433 = vdwg.mxu0
        %v3434 = vperm.slane %v3381, 0
        %v3435 = vmul.f32 %v3430, %v3434
        %v3436 = vmul.f32 %v3432, %v3434
        %v3437 = vperm.slane %v3381, 1
        %v3438 = vadd.f32 %v3435, %v3437
        %v3439 = vadd.f32 %v3436, %v3437
        %v3440 = vstv %s3301
        %v3441 = vmul.f32 %v3440, %v3363
        %v3442 = vmul.f32 %v3440, %v3364
        %v3443 = vstv %s3302
        %v3444 = vmul.f32 %v3443, %v3363
        %v3445 = vmul.f32 %v3443, %v3364
        %3448 = vrot.lane.b32.xlu0 %v3444, 64
        %v3449 = vpop.permute.xlu0 %3448
        %3450 = vrot.lane.b32.xlu0 %v3445, 64
        %v3451 = vpop.permute.xlu0 %3450
        %v3454 = vadd.f32 %v3441, %v3449
        %v3455 = vadd.f32 %v3442, %v3451
        %v3456 = vstv %s3303
        %v3457 = vmul.f32 %v3456, %v3438
        %v3458 = vmul.f32 %v3456, %v3439
        %v3459 = vadd.f32 %v3454, %v3457
        %v3460 = vadd.f32 %v3455, %v3458
        %s3461 = scalar_lea.vmem %s20, 2
        %v3462 = vld [vmem:[%s3461] sm:$0x3]
        %v3463 = vmax.f32 %v3459, 0.0
        %v3464 = vmax.f32 %v3460, 0.0
        %v3465 = vpack.c.bf16 %v3464, %v3463
        %s3466 = scalar_lea.vmem %s19, 32
        %v3467 = vld [vmem:[%s3466] sm:$0xf]
        %v3468 = vld [vmem:[%s3466 + $0x4] sm:$0xf]
        %v3469 = vld [vmem:[%s3466 + $0x8] sm:$0xf]
        %v3470 = vld [vmem:[%s3466 + $0xc] sm:$0xf]
        %v3471 = vld [vmem:[%s3466 + $0x10] sm:$0xf]
        %v3472 = vld [vmem:[%s3466 + $0x14] sm:$0xf]
        %v3473 = vld [vmem:[%s3466 + $0x18] sm:$0xf]
        %v3474 = vld [vmem:[%s3466 + $0x1c] sm:$0xf]
        %v3483 = vunpack.c.l.b16 %v3467
        %v3484 = vunpack.c.l.b16 %v3468
        %v3485 = vunpack.c.l.b16 %v3469
        %v3486 = vunpack.c.l.b16 %v3470
        %v3487 = vunpack.c.l.b16 %v3471
        %v3488 = vunpack.c.l.b16 %v3472
        %v3489 = vunpack.c.l.b16 %v3473
        %v3490 = vunpack.c.l.b16 %v3474
        %v3491 = vpack.c.b16 %v3484, %v3483
        %v3492 = vpack.c.b16 %v3486, %v3485
        %v3493 = vpack.c.b16 %v3488, %v3487
        %v3494 = vpack.c.b16 %v3490, %v3489
        %v3500 = vsel %vm3220, %v3465, 0
        %3502 = vmatpush.bf16.msra.mxu0 0
        %3503 = vmatpush.bf16.msra.mxu0 0
        %3504 = vmatpush.bf16.msra.mxu0 0
        %3505 = vmatpush.bf16.msra.mxu0 0
        %3506 = vmatpush.bf16.msra.mxu0 %v3494
        %3507 = vmatpush.bf16.msra.mxu0 %v3493
        %3508 = vmatpush.bf16.msra.mxu0 %v3492
        %3509 = vmatpush.bf16.msra.mxu0 %v3491
        %3510 = vmatmul.bf16.gmra.mxu0 %v3500
        %v3511 = vpop.f32.mrf.mxu0
        %v3512 = vadd.f32 0.0, %v3511
        %v3513 = vpop.f32.mrf.mxu0
        %v3514 = vadd.f32 0.0, %v3513
        %3515 = vdwg.mxu0
        %v3516 = vperm.slane %v3462, 0
        %v3517 = vmul.f32 %v3512, %v3516
        %v3518 = vmul.f32 %v3514, %v3516
        %v3519 = vperm.slane %v3462, 1
        %v3520 = vadd.f32 %v3517, %v3519
        %v3521 = vadd.f32 %v3518, %v3519
        %v3522 = vstv %s3304
        %v3523 = vmul.f32 %v3522, %v3438
        %v3524 = vmul.f32 %v3522, %v3439
        %v3525 = vstv %s3305
        %v3526 = vmul.f32 %v3525, %v3520
        %v3527 = vmul.f32 %v3525, %v3521
        %v3528 = vadd.f32 %v3523, %v3526
        %v3529 = vadd.f32 %v3524, %v3527
        %3532 = vrot.lane.b32.xlu0 %v3520, 64
        %v3533 = vpop.permute.xlu0 %3532
        %3534 = vrot.lane.b32.xlu0 %v3521, 64
        %v3535 = vpop.permute.xlu0 %3534
        %v3538 = vsel %vm3220, %v3528, %v3533
        %v3539 = vsel %vm3220, %v3529, %v3535
        %v3540 = vadd.f32 %v3538, %v3539
        %v3541 = vrot.slane %v3540, 4
        %v3542 = vadd.f32 %v3540, %v3541
        %v3543 = vrot.slane %v3542, 2
        %v3544 = vadd.f32 %v3542, %v3543
        %v3545 = vrot.slane %v3544, 1
        %v3546 = vadd.f32 %v3544, %v3545
        %v3547 = vrcp.pop 16.0
        %v3548 = vmul.f32 16.0, %v3547
        %v3549 = vsub.f32 1.0, %v3548
        %v3550 = vmul.f32 %v3547, %v3549
        %v3551 = vadd.f32 %v3547, %v3550
        %vm3552 = vweird.f32 %v3547
        %v3553 = vsel %vm3552, %v3547, %v3551
        %v3554 = vmul.f32 %v3546, %v3553
        %v3555 = vpack.c.bf16 %v3554, %v3554
        %v3556 = vld [vmem:[%s21] sm:$0xf]
        %v3557 = vld [vmem:[%s21 + $0x4] sm:$0xf]
        %v3558 = vld [vmem:[%s21 + $0x8] sm:$0xf]
        %v3559 = vld [vmem:[%s21 + $0xc] sm:$0xf]
        %v3560 = vld [vmem:[%s21 + $0x10] sm:$0xf]
        %v3561 = vld [vmem:[%s21 + $0x14] sm:$0xf]
        %v3562 = vld [vmem:[%s21 + $0x18] sm:$0xf]
        %v3563 = vld [vmem:[%s21 + $0x1c] sm:$0xf]
        %v3564 = vld [vmem:[%s21 + $0x20] sm:$0xf]
        %v3565 = vld [vmem:[%s21 + $0x24] sm:$0xf]
        %v3566 = vld [vmem:[%s21 + $0x28] sm:$0xf]
        %v3567 = vld [vmem:[%s21 + $0x2c] sm:$0xf]
        %v3568 = vld [vmem:[%s21 + $0x30] sm:$0xf]
        %v3569 = vld [vmem:[%s21 + $0x34] sm:$0xf]
        %v3570 = vld [vmem:[%s21 + $0x38] sm:$0xf]
        %v3571 = vld [vmem:[%s21 + $0x3c] sm:$0xf]
        %v3572 = vld [vmem:[%s22] sm:$0x1]
        %v3589 = vunpack.c.l.b16 %v3556
        %v3590 = vunpack.c.l.b16 %v3557
        %v3591 = vunpack.c.l.b16 %v3558
        %v3592 = vunpack.c.l.b16 %v3559
        %v3593 = vunpack.c.l.b16 %v3560
        %v3594 = vunpack.c.l.b16 %v3561
        %v3595 = vunpack.c.l.b16 %v3562
        %v3596 = vunpack.c.l.b16 %v3563
        %v3597 = vunpack.c.l.b16 %v3564
        %v3598 = vunpack.c.l.b16 %v3565
        %v3599 = vunpack.c.l.b16 %v3566
        %v3600 = vunpack.c.l.b16 %v3567
        %v3601 = vunpack.c.l.b16 %v3568
        %v3602 = vunpack.c.l.b16 %v3569
        %v3603 = vunpack.c.l.b16 %v3570
        %v3604 = vunpack.c.l.b16 %v3571
        %v3605 = vpack.c.b16 %v3590, %v3589
        %v3606 = vpack.c.b16 %v3592, %v3591
        %v3607 = vpack.c.b16 %v3594, %v3593
        %v3608 = vpack.c.b16 %v3596, %v3595
        %v3609 = vpack.c.b16 %v3598, %v3597
        %v3610 = vpack.c.b16 %v3600, %v3599
        %v3611 = vpack.c.b16 %v3602, %v3601
        %v3612 = vpack.c.b16 %v3604, %v3603
        %3621 = vmatpush.bf16.msra.mxu0 %v3612
        %3622 = vmatpush.bf16.msra.mxu0 %v3611
        %3623 = vmatpush.bf16.msra.mxu0 %v3610
        %3624 = vmatpush.bf16.msra.mxu0 %v3609
        %3625 = vmatpush.bf16.msra.mxu0 %v3608
        %3626 = vmatpush.bf16.msra.mxu0 %v3607
        %3627 = vmatpush.bf16.msra.mxu0 %v3606
        %3628 = vmatpush.bf16.msra.mxu0 %v3605
        %3629 = vmatmul.bf16.gmra.mxu0 %v3555
        %v3630 = vpop.f32.mrf.mxu0
        %v3631 = vadd.f32 %v3572, %v3630
        %v3632 = vpop.f32.mrf.mxu0
        %3633 = vdwg.mxu0
        %vm3634 = vcmask 73728
        %3635 = vst.msk [vmem:[%s663] sm:$0x1] %vm3634, %v3631
        %s3636 = sand.u32 %s504, 1
        %s3637 = scalar_lea.sflag [#allocation10], %s3636
        %s3638 = sand.u32 %s504, 1
        %s3639 = scalar_lea.vmem [#allocation9], %s3638
        // Predicated region
        $region105: #{search_distribution_dag_forward.1} parent=103 // pred_check
          %p3640 = pneg %p514
        $region106: #{search_distribution_dag_forward.1} parent=103 // pred_check_branch
          %3642 = sbr.rel (%p3640) target = $region108
        $region107: #{search_distribution_dag_forward.1} parent=103 // pred_region
          %3644 = vsyncadd %s3637, 0
          %s3645 = scalar_lea.hbm %s23, %s50
          %s3647 = sshll.u32 %s3639, 4
          %s3648 = int_to_ptr.vmem [resolvable:$true] %s3647
          %s3649 = sshll.u32 %s3645, 4
          %s3650 = int_to_ptr.hbm [resolvable:$true] %s3649
          %3652 = dma.vmem_to_hbm [thread:$0]  %s3648, 16, %s3650, %s3637
        $region108: #{search_distribution_dag_forward.1} parent=103 // pred_fallthru
          _
      $region104: #{search_distribution_dag_forward.1} parent=5 // pred_fallthru
        _
      %p3653 = scmp.le.s32.totalorder 2, %s45
      // Predicated region
      $region109: #{search_distribution_dag_forward.1} parent=5 // pred_check
        %p3654 = pneg %p3653
      $region110: #{search_distribution_dag_forward.1} parent=5 // pred_check_branch
        %3656 = sbr.rel (%p3654) target = $region112
      $region111: #{search_distribution_dag_forward.1} parent=5 // pred_region
        %s3657 = ssub.s32 %s45, 2
        // Predicated region
        $region113: #{search_distribution_dag_forward.1} parent=111 // pred_check
          %p3658 = pneg %p520
        $region114: #{search_distribution_dag_forward.1} parent=111 // pred_check_branch
          %3660 = sbr.rel (%p3658) target = $region116
        $region115: #{search_distribution_dag_forward.1} parent=111 // pred_region
          %s3661 = sand.u32 %s505, 1
          %s3662 = scalar_lea.sflag [#allocation10], %s3661
          %s3663 = sand.u32 %s505, 1
          %s3664 = scalar_lea.vmem [#allocation9], %s3663
          %3666 = dma.done %s3662, 16
        $region116: #{search_distribution_dag_forward.1} parent=111 // pred_fallthru
          _
      $region112: #{search_distribution_dag_forward.1} parent=5 // pred_fallthru
        _
    $region6: #{search_distribution_dag_forward.1} parent=1 // loop_footer
      %s49 = sadd.s32 1, %s45
    $region7: #{search_distribution_dag_forward.1} parent=1 // loop_footer_branch
      %44 = sbr.rel target = $region3
    $region8: #{search_distribution_dag_forward.1} parent=1 // loop_exit
      _
    %3667 = vsyncpa [#allocation10], 1
    %s3668 = scalar_lea.sflag [#allocation10], 1
    %3669 = vsyncpa %s3668, 1

</llo_original>
